<compile_context>
chip_gen: v5e
topology: v5e:2x2
jax: 0.10.0
libtpu: 0.0.40
codegen_flags: <defaults>
</compile_context>

<pallas_src>
import functools

import jax
import jax.numpy as jnp
from jax.experimental import pallas as pl
from jax.experimental.pallas import tpu as pltpu


# ----------------------------------------------------------------------------
# small helpers
# ----------------------------------------------------------------------------
def _pick_row_tile(n_rows, bytes_per_row, budget_bytes, max_tile=512):
    """Largest row tile (multiple of 8, or all rows) whose double-buffered blocks
    stay within `budget_bytes`."""
    t = budget_bytes // max(1, 2 * bytes_per_row)
    t = max(8, min(int(t), int(max_tile), int(n_rows)))
    if t < n_rows:
        t = max(8, (t // 8) * 8)
    return int(t)


def _compiler_params(dim_sem, est_bytes):
    # Only raise the scoped-VMEM limit when the chosen tiles actually need it;
    # cap below v7x's 64 MiB physical VMEM to keep double-buffering headroom.
    limit = None
    if est_bytes > (24 << 20):
        limit = int(min(2 * est_bytes + (8 << 20), 56 << 20))
    return pltpu.CompilerParams(dimension_semantics=dim_sem,
                                vmem_limit_bytes=limit)


# ----------------------------------------------------------------------------
# StackGCNEncoder (one "side"): out[s, tile_i] = relu(A[s, tile_i] @ (X_src @ W[s]))
#   grid = (S, n_dst_tiles); tmp = X_src @ W[s] is computed once per s (tile 0)
#   into a VMEM scratch and reused for every node tile of that rating level.
# ----------------------------------------------------------------------------
def _gcn_side_kernel(src_ref, w_ref, a_ref, o_ref, tmp_ref):
    @pl.when(pl.program_id(1) == 0)
    def _():
        tmp_ref[...] = jnp.dot(
            src_ref[...], w_ref[0], preferred_element_type=jnp.float32
        ).astype(tmp_ref.dtype)

    h = jnp.dot(a_ref[0], tmp_ref[...], preferred_element_type=jnp.float32)
    o_ref[0] = jnp.maximum(h, 0.0)


def _stack_gcn_side(supports, src_inputs, weight, *, max_tile=512):
    s_num, n_dst, n_src = supports.shape
    d_in = src_inputs.shape[1]
    d_h = weight.shape[2]
    isz = supports.dtype.itemsize
    # support tiles dominate VMEM traffic; keep double-buffered tiles ~<= 24 MiB
    tn = _pick_row_tile(n_dst, n_src * isz + d_h * 4, 24 << 20, max_tile=max_tile)
    grid = (s_num, pl.cdiv(n_dst, tn))
    est = (2 * tn * (n_src * isz + d_h * 4)
           + n_src * (d_in * 4 + d_h * isz)
           + 2 * d_in * d_h * 4)
    return pl.pallas_call(
        _gcn_side_kernel,
        out_shape=jax.ShapeDtypeStruct((s_num, n_dst, d_h), jnp.float32),
        grid=grid,
        in_specs=[
            pl.BlockSpec((n_src, d_in), lambda s, i: (0, 0)),      # resident X_src
            pl.BlockSpec((1, d_in, d_h), lambda s, i: (s, 0, 0)),  # W[s]
            pl.BlockSpec((1, tn, n_src), lambda s, i: (s, i, 0)),  # support tile
        ],
        out_specs=pl.BlockSpec((1, tn, d_h), lambda s, i: (s, i, 0)),
        scratch_shapes=[pltpu.VMEM((n_src, d_h), supports.dtype)],
        compiler_params=_compiler_params(("parallel", "arbitrary"), est),
    )(src_inputs, weight, supports)


# ----------------------------------------------------------------------------
# Fused dense1 + concat + dense2 (one side):
#   embed = sum_s gcn_stacked[s] @ W2_gcn[s] + relu(side @ W1 + b1) @ W2_side
# consuming the stacked (S, N, Dh) encoder output directly (no concat/transpose).
# ----------------------------------------------------------------------------
def _fused_dense_kernel(gcn_ref, side_ref, w1_ref, b1_ref, w2g_ref, w2s_ref,
                        o_ref, *, num_support):
    side_h = jnp.dot(side_ref[...], w1_ref[...], preferred_element_type=jnp.float32)
    side_h = jnp.maximum(side_h + b1_ref[...], 0.0)
    acc = jnp.dot(side_h, w2s_ref[...], preferred_element_type=jnp.float32)
    for s in range(num_support):
        acc = acc + jnp.dot(gcn_ref[s], w2g_ref[s],
                            preferred_element_type=jnp.float32)
    o_ref[...] = acc


def _fused_dense(gcn_stacked, side_inputs, w1, b1, w2g, w2s, *, max_tile=512):
    s_num, n, d_h = gcn_stacked.shape
    f_side = side_inputs.shape[1]
    h_side = w1.shape[1]
    e_dim = w2g.shape[2]
    tm = _pick_row_tile(n, (s_num * d_h + f_side + e_dim) * 4, 16 << 20,
                        max_tile=max_tile)
    grid = (pl.cdiv(n, tm),)
    est = (2 * tm * (s_num * d_h + f_side + e_dim) * 4
           + (f_side * h_side + h_side + s_num * d_h * e_dim + h_side * e_dim) * 4)
    return pl.pallas_call(
        functools.partial(_fused_dense_kernel, num_support=s_num),
        out_shape=jax.ShapeDtypeStruct((n, e_dim), jnp.float32),
        grid=grid,
        in_specs=[
            pl.BlockSpec((s_num, tm, d_h), lambda i: (0, i, 0)),   # gcn row tile
            pl.BlockSpec((tm, f_side), lambda i: (i, 0)),          # side row tile
            pl.BlockSpec((f_side, h_side), lambda i: (0, 0)),      # W1 (resident)
            pl.BlockSpec((1, h_side), lambda i: (0, 0)),           # b1
            pl.BlockSpec((s_num, d_h, e_dim), lambda i: (0, 0, 0)),  # W2_gcn
            pl.BlockSpec((h_side, e_dim), lambda i: (0, 0)),       # W2_side
        ],
        out_specs=pl.BlockSpec((tm, e_dim), lambda i: (i, 0)),
        compiler_params=_compiler_params(("parallel",), est),
    )(gcn_stacked, side_inputs, w1, b1.reshape(1, -1), w2g, w2s)


# ----------------------------------------------------------------------------
# Decoder: one wide matmul (E, D) @ (D, B*D), per-basis reduce against v,
#          then basis @ classifier; tiled over edges.
# ----------------------------------------------------------------------------
def _decoder_kernel(u_ref, v_ref, w_ref, cls_ref, o_ref, *, num_basis, d):
    v = v_ref[...]
    t = jnp.dot(u_ref[...], w_ref[...], preferred_element_type=jnp.float32)
    cols = [
        jnp.sum(t[:, b * d:(b + 1) * d] * v, axis=1, keepdims=True)
        for b in range(num_basis)
    ]
    basis = jnp.concatenate(cols, axis=1)                       # (te, B)
    o_ref[...] = jnp.dot(basis, cls_ref[...], preferred_element_type=jnp.float32)


def _decoder(u_emb, v_emb, dec_w, dec_cls, *, max_tile=1024):
    n_e, d = u_emb.shape
    nb = dec_w.shape[0]
    nc = dec_cls.shape[1]
    # W_all[:, b*D:(b+1)*D] = dec_w[b]
    w_all = jnp.transpose(dec_w, (1, 0, 2)).reshape(d, nb * d)
    te = _pick_row_tile(n_e, (2 * d + nb * d + nc) * 4, 16 << 20, max_tile=max_tile)
    grid = (pl.cdiv(n_e, te),)
    est = (2 * te * (2 * d + nc) * 4 + (d * nb * d + nb * nc) * 4 + te * nb * d * 4)
    return pl.pallas_call(
        functools.partial(_decoder_kernel, num_basis=nb, d=d),
        out_shape=jax.ShapeDtypeStruct((n_e, nc), jnp.float32),
        grid=grid,
        in_specs=[
            pl.BlockSpec((te, d), lambda i: (i, 0)),
            pl.BlockSpec((te, d), lambda i: (i, 0)),
            pl.BlockSpec((d, nb * d), lambda i: (0, 0)),
            pl.BlockSpec((nb, nc), lambda i: (0, 0)),
        ],
        out_specs=pl.BlockSpec((te, nc), lambda i: (i, 0)),
        compiler_params=_compiler_params(("parallel",), est),
    )(u_emb, v_emb, w_all, dec_cls)


# ----------------------------------------------------------------------------
# Full model forward
# ----------------------------------------------------------------------------
def graph_matrix_completion_forward(params, user_supports, item_supports,
                                    user_inputs, item_inputs,
                                    user_side_inputs, item_side_inputs,
                                    user_edge_idx, item_edge_idx,
                                    support_dtype=jnp.bfloat16):
    # encoder (StackGCNEncoder): user side aggregates item features and vice versa
    a_u = user_supports.astype(support_dtype)
    a_i = item_supports.astype(support_dtype)
    user_gcn = _stack_gcn_side(a_u, item_inputs, params["enc_w"])   # (S, Nu, Dh)
    item_gcn = _stack_gcn_side(a_i, user_inputs, params["enc_w"])   # (S, Ni, Dh)

    # fused dense1 + concat + dense2 (W2 split at the gcn/side boundary)
    s_num, _, d_h = user_gcn.shape
    e_dim = params["d2_wu"].shape[1]
    g_rows = s_num * d_h
    w2gu = params["d2_wu"][:g_rows].reshape(s_num, d_h, e_dim)
    w2su = params["d2_wu"][g_rows:]
    w2gi = params["d2_wi"][:g_rows].reshape(s_num, d_h, e_dim)
    w2si = params["d2_wi"][g_rows:]
    user_embed = _fused_dense(user_gcn, user_side_inputs,
                              params["d1_wu"], params["d1_bu"], w2gu, w2su)
    item_embed = _fused_dense(item_gcn, item_side_inputs,
                              params["d1_wi"], params["d1_bi"], w2gi, w2si)

    # decoder: gather edge endpoints (wrapper glue), bilinear scores + classifier
    u_emb = jnp.take(user_embed, user_edge_idx, axis=0)
    v_emb = jnp.take(item_embed, item_edge_idx, axis=0)
    return _decoder(u_emb, v_emb, params["dec_w"], params["dec_cls"])


# ----------------------------------------------------------------------------
# Pure-JAX reference (mirrors the kernel math; support_dtype=f32 gives the exact
# PyTorch eval-mode semantics) and deterministic parameter init
# ----------------------------------------------------------------------------
def reference_forward(params, user_supports, item_supports, user_inputs, item_inputs,
                      user_side_inputs, item_side_inputs, user_edge_idx, item_edge_idx,
                      support_dtype=jnp.float32):
    s_num = user_supports.shape[0]
    a_u = user_supports.astype(support_dtype)
    a_i = item_supports.astype(support_dtype)
    u_hid, i_hid = [], []
    for s in range(s_num):
        tmp_u = (user_inputs @ params["enc_w"][s]).astype(support_dtype)
        tmp_v = (item_inputs @ params["enc_w"][s]).astype(support_dtype)
        u_hid.append(jnp.dot(a_u[s], tmp_v, preferred_element_type=jnp.float32))
        i_hid.append(jnp.dot(a_i[s], tmp_u, preferred_element_type=jnp.float32))
    user_gcn = jax.nn.relu(jnp.concatenate(u_hid, axis=1))
    item_gcn = jax.nn.relu(jnp.concatenate(i_hid, axis=1))
    user_side = jax.nn.relu(user_side_inputs @ params["d1_wu"] + params["d1_bu"])
    item_side = jax.nn.relu(item_side_inputs @ params["d1_wi"] + params["d1_bi"])
    user_embed = jnp.concatenate([user_gcn, user_side], axis=1) @ params["d2_wu"]
    item_embed = jnp.concatenate([item_gcn, item_side], axis=1) @ params["d2_wi"]
    u = user_embed[user_edge_idx]
    v = item_embed[item_edge_idx]
    basis = jnp.stack([jnp.sum((u @ params["dec_w"][b]) * v, axis=1)
                       for b in range(params["dec_w"].shape[0])], axis=1)
    return basis @ params["dec_cls"]


def init_params(key, input_dim, side_feat_dim, gcn_hidden_dim, side_hidden_dim,
                encode_hidden_dim, num_support, num_classes, num_basis):
    ks = jax.random.split(key, 8)
    dh = gcn_hidden_dim // num_support

    def unif(k, shape, fan_in):
        bound = (6.0 / fan_in) ** 0.5   # kaiming-uniform-style bound (deterministic)
        return jax.random.uniform(k, shape, jnp.float32, -bound, bound)

    feat_dim = gcn_hidden_dim + side_hidden_dim
    return {
        "enc_w":  unif(ks[0], (num_support, input_dim, dh), input_dim),
        # nn.Linear weights stored already transposed to (in, out)
        "d1_wu":  unif(ks[1], (side_feat_dim, side_hidden_dim), side_feat_dim),
        "d1_bu":  jnp.zeros((side_hidden_dim,), jnp.float32),
        "d1_wi":  unif(ks[2], (side_feat_dim, side_hidden_dim), side_feat_dim),
        "d1_bi":  jnp.zeros((side_hidden_dim,), jnp.float32),
        "d2_wu":  unif(ks[3], (feat_dim, encode_hidden_dim), feat_dim),
        "d2_wi":  unif(ks[4], (feat_dim, encode_hidden_dim), feat_dim),
        "dec_w":  unif(ks[5], (num_basis, encode_hidden_dim, encode_hidden_dim),
                       encode_hidden_dim),
        "dec_cls": unif(ks[6], (num_basis, num_classes), num_basis),
    }


def _assert_close(got, want, rel, name):
    scale = float(jnp.max(jnp.abs(want)))
    err = float(jnp.max(jnp.abs(got - want)))
    assert err <= rel * scale + 1e-5, (name, err, scale)


if __name__ == "__main__":
    # small, deterministic problem (Dh = 128 so encoder stores are lane-dense)
    num_users, num_items = 64, 48
    input_dim, side_feat_dim = 64, 32
    num_support, num_classes, num_basis = 5, 5, 3
    gcn_hidden_dim, side_hidden_dim, encode_hidden_dim = 5 * 128, 64, 128
    num_edges = 96

    key = jax.random.PRNGKey(0)
    k_par, k_us, k_is, k_xu, k_xi, k_su, k_si, k_eu, k_ei = jax.random.split(key, 9)

    params = init_params(k_par, input_dim, side_feat_dim, gcn_hidden_dim,
                         side_hidden_dim, encode_hidden_dim,
                         num_support, num_classes, num_basis)

    user_supports = jax.random.uniform(k_us, (num_support, num_users, num_items), jnp.float32)
    item_supports = jax.random.uniform(k_is, (num_support, num_items, num_users), jnp.float32)
    user_inputs = jax.random.normal(k_xu, (num_users, input_dim), jnp.float32)
    item_inputs = jax.random.normal(k_xi, (num_items, input_dim), jnp.float32)
    user_side_inputs = jax.random.normal(k_su, (num_users, side_feat_dim), jnp.float32)
    item_side_inputs = jax.random.normal(k_si, (num_items, side_feat_dim), jnp.float32)
    user_edge_idx = jax.random.randint(k_eu, (num_edges,), 0, num_users, jnp.int32)
    item_edge_idx = jax.random.randint(k_ei, (num_edges,), 0, num_items, jnp.int32)

    args = (params, user_supports, item_supports, user_inputs, item_inputs,
            user_side_inputs, item_side_inputs, user_edge_idx, item_edge_idx)

    fwd_f32 = jax.jit(functools.partial(graph_matrix_completion_forward,
                                        support_dtype=jnp.float32))
    fwd_bf16 = jax.jit(functools.partial(graph_matrix_completion_forward,
                                         support_dtype=jnp.bfloat16))

    out_f32 = jax.block_until_ready(fwd_f32(*args))
    out_bf16 = jax.block_until_ready(fwd_bf16(*args))
    assert out_f32.shape == (num_edges, num_classes), out_f32.shape
    assert out_bf16.shape == (num_edges, num_classes), out_bf16.shape

    with jax.default_matmul_precision("float32"):
        ref_f32 = reference_forward(*args, support_dtype=jnp.float32)
        ref_bf16 = reference_forward(*args, support_dtype=jnp.bfloat16)
    ref_f32, ref_bf16 = jax.block_until_ready((ref_f32, ref_bf16))

    # exact-semantics check (f32 supports) against the PyTorch-equivalent reference
    _assert_close(out_f32, ref_f32, 1e-3, "f32 path vs f32 reference")
    # fast path (bf16 supports) against a matched-precision reference
    _assert_close(out_bf16, ref_bf16, 3e-3, "bf16 path vs matched reference")
    # bf16-supports fast path stays close to the full-f32 math
    _assert_close(out_bf16, ref_f32, 5e-2, "bf16 path vs f32 reference")

    print("KERNEL_OK")
</pallas_src>

<mosaic_0001>
module attributes {stable_mosaic.version = 11 : i64} {
  func.func @_gcn_side_kernel(%arg0: i32, %arg1: i32, %arg2: memref<48x64xf32, #tpu.memory_space<vmem>>, %arg3: memref<1x64x128xf32, #tpu.memory_space<vmem>>, %arg4: memref<1x64x48xf32, #tpu.memory_space<vmem>>, %arg5: memref<1x64x128xf32, #tpu.memory_space<vmem>>, %arg6: memref<48x128xf32, #tpu.memory_space<vmem>>) attributes {dimension_semantics = [#tpu.dimension_semantics<parallel>, #tpu.dimension_semantics<arbitrary>], iteration_bounds = array<i64: 5, 1>, scalar_prefetch = 0 : i64, scratch_operands = 1 : i64, tpu.core_type = #tpu.core_type<tc>, window_params = [{pipeline_mode = #tpu.pipeline_mode<synchronous>, transform_indices = @transform_0, window_bounds = array<i64: 48, 64>}, {transform_indices = @transform_1, window_bounds = array<i64: 1, 64, 128>}, {transform_indices = @transform_2, window_bounds = array<i64: 1, 64, 48>}, {transform_indices = @transform_3, window_bounds = array<i64: 1, 64, 128>}]} {
    %c0_i32 = arith.constant 0 : i32
    %0 = arith.cmpi eq, %arg1, %c0_i32 : i32
    %1 = arith.extui %0 : i1 to i32
    %c0_i32_0 = arith.constant 0 : i32
    %2 = arith.cmpi ne, %1, %c0_i32_0 : i32
    scf.if %2 {
      %c0_9 = arith.constant 0 : index
      %c0_10 = arith.constant 0 : index
      %12 = vector.load %arg2[%c0_9, %c0_10] : memref<48x64xf32, #tpu.memory_space<vmem>>, vector<48x64xf32>
      %c0_11 = arith.constant 0 : index
      %c0_12 = arith.constant 0 : index
      %c0_13 = arith.constant 0 : index
      %13 = vector.load %arg3[%c0_11, %c0_12, %c0_13] : memref<1x64x128xf32, #tpu.memory_space<vmem>>, vector<1x64x128xf32>
      %14 = vector.shape_cast %13 : vector<1x64x128xf32> to vector<64x128xf32>
      %cst_14 = arith.constant dense<0.000000e+00> : vector<48x128xf32>
      %15 = tpu.matmul %12, %14, %cst_14 {dimension_numbers = #tpu.dot_dimension_numbers<[1], [0], [0], [1], [0, 0, 1, 1], [], []>} : vector<48x64xf32>, vector<64x128xf32>, vector<48x128xf32> -> vector<48x128xf32>
      %c0_15 = arith.constant 0 : index
      %c0_16 = arith.constant 0 : index
      %16 = vector.load %arg6[%c0_15, %c0_16] : memref<48x128xf32, #tpu.memory_space<vmem>>, vector<48x128xf32>
      tpu.vector_store %arg6[%c0_15, %c0_16], %15 {strides = array<i32>} : memref<48x128xf32, #tpu.memory_space<vmem>>, vector<48x128xf32>,
    } else {
    }
    %c0 = arith.constant 0 : index
    %c0_1 = arith.constant 0 : index
    %c0_2 = arith.constant 0 : index
    %3 = vector.load %arg4[%c0, %c0_1, %c0_2] : memref<1x64x48xf32, #tpu.memory_space<vmem>>, vector<1x64x48xf32>
    %4 = vector.shape_cast %3 : vector<1x64x48xf32> to vector<64x48xf32>
    %c0_3 = arith.constant 0 : index
    %c0_4 = arith.constant 0 : index
    %5 = vector.load %arg6[%c0_3, %c0_4] : memref<48x128xf32, #tpu.memory_space<vmem>>, vector<48x128xf32>
    %cst = arith.constant dense<0.000000e+00> : vector<64x128xf32>
    %6 = tpu.matmul %4, %5, %cst {dimension_numbers = #tpu.dot_dimension_numbers<[1], [0], [0], [1], [0, 0, 1, 1], [], []>} : vector<64x48xf32>, vector<48x128xf32>, vector<64x128xf32> -> vector<64x128xf32>
    %cst_5 = arith.constant 0.000000e+00 : f32
    %7 = vector.broadcast %cst_5 : f32 to vector<64x128xf32>
    %8 = arith.maximumf %6, %7 : vector<64x128xf32>
    %c0_6 = arith.constant 0 : index
    %c0_7 = arith.constant 0 : index
    %c0_8 = arith.constant 0 : index
    %9 = vector.load %arg5[%c0_6, %c0_7, %c0_8] : memref<1x64x128xf32, #tpu.memory_space<vmem>>, vector<1x64x128xf32>
    %10 = vector.shape_cast %9 : vector<1x64x128xf32> to vector<64x128xf32>
    %11 = vector.shape_cast %8 : vector<64x128xf32> to vector<1x64x128xf32>
    tpu.vector_store %arg5[%c0_6, %c0_7, %c0_8], %11 {strides = array<i32>} : memref<1x64x128xf32, #tpu.memory_space<vmem>>, vector<1x64x128xf32>,
    return
  }
  func.func @transform_0(%arg0: i32, %arg1: i32) -> (i32, i32) {
    %c0_i32 = arith.constant 0 : i32
    %c0_i32_0 = arith.constant 0 : i32
    %c0_i32_1 = arith.constant 0 : i32
    return %c0_i32, %c0_i32_0 : i32, i32
  }
  func.func @transform_1(%arg0: i32, %arg1: i32) -> (i32, i32, i32) {
    %c0_i32 = arith.constant 0 : i32
    %c0_i32_0 = arith.constant 0 : i32
    %c0_i32_1 = arith.constant 0 : i32
    return %arg0, %c0_i32, %c0_i32_0 : i32, i32, i32
  }
  func.func @transform_2(%arg0: i32, %arg1: i32) -> (i32, i32, i32) {
    %c0_i32 = arith.constant 0 : i32
    %c0_i32_0 = arith.constant 0 : i32
    return %arg0, %arg1, %c0_i32 : i32, i32, i32
  }
  func.func @transform_3(%arg0: i32, %arg1: i32) -> (i32, i32, i32) {
    %c0_i32 = arith.constant 0 : i32
    %c0_i32_0 = arith.constant 0 : i32
    return %arg0, %arg1, %c0_i32 : i32, i32, i32
  }
}

module attributes {stable_mosaic.version = 11 : i64} {
  func.func @_fused_dense_kernel(%arg0: i32, %arg1: memref<5x64x128xf32, #tpu.memory_space<vmem>>, %arg2: memref<64x32xf32, #tpu.memory_space<vmem>>, %arg3: memref<32x64xf32, #tpu.memory_space<vmem>>, %arg4: memref<1x64xf32, #tpu.memory_space<vmem>>, %arg5: memref<5x128x128xf32, #tpu.memory_space<vmem>>, %arg6: memref<64x128xf32, #tpu.memory_space<vmem>>, %arg7: memref<64x128xf32, #tpu.memory_space<vmem>>) attributes {dimension_semantics = [#tpu.dimension_semantics<parallel>], iteration_bounds = array<i64: 1>, scalar_prefetch = 0 : i64, scratch_operands = 0 : i64, tpu.core_type = #tpu.core_type<tc>, window_params = [{transform_indices = @transform_0, window_bounds = array<i64: 5, 64, 128>}, {transform_indices = @transform_1, window_bounds = array<i64: 64, 32>}, {pipeline_mode = #tpu.pipeline_mode<synchronous>, transform_indices = @transform_2, window_bounds = array<i64: 32, 64>}, {pipeline_mode = #tpu.pipeline_mode<synchronous>, transform_indices = @transform_3, window_bounds = array<i64: 1, 64>}, {pipeline_mode = #tpu.pipeline_mode<synchronous>, transform_indices = @transform_4, window_bounds = array<i64: 5, 128, 128>}, {pipeline_mode = #tpu.pipeline_mode<synchronous>, transform_indices = @transform_5, window_bounds = array<i64: 64, 128>}, {transform_indices = @transform_6, window_bounds = array<i64: 64, 128>}]} {
    %c0 = arith.constant 0 : index
    %c0_0 = arith.constant 0 : index
    %0 = vector.load %arg2[%c0, %c0_0] : memref<64x32xf32, #tpu.memory_space<vmem>>, vector<64x32xf32>
    %c0_1 = arith.constant 0 : index
    %c0_2 = arith.constant 0 : index
    %1 = vector.load %arg3[%c0_1, %c0_2] : memref<32x64xf32, #tpu.memory_space<vmem>>, vector<32x64xf32>
    %cst = arith.constant dense<0.000000e+00> : vector<64x64xf32>
    %2 = tpu.matmul %0, %1, %cst {dimension_numbers = #tpu.dot_dimension_numbers<[1], [0], [0], [1], [0, 0, 1, 1], [], []>} : vector<64x32xf32>, vector<32x64xf32>, vector<64x64xf32> -> vector<64x64xf32>
    %c0_3 = arith.constant 0 : index
    %c0_4 = arith.constant 0 : index
    %3 = vector.load %arg4[%c0_3, %c0_4] : memref<1x64xf32, #tpu.memory_space<vmem>>, vector<1x64xf32>
    %4 = vector.broadcast %3 : vector<1x64xf32> to vector<64x64xf32>
    %5 = arith.addf %2, %4 : vector<64x64xf32>
    %cst_5 = arith.constant 0.000000e+00 : f32
    %6 = vector.broadcast %cst_5 : f32 to vector<64x64xf32>
    %7 = arith.maximumf %5, %6 : vector<64x64xf32>
    %c0_6 = arith.constant 0 : index
    %c0_7 = arith.constant 0 : index
    %8 = vector.load %arg6[%c0_6, %c0_7] : memref<64x128xf32, #tpu.memory_space<vmem>>, vector<64x128xf32>
    %cst_8 = arith.constant dense<0.000000e+00> : vector<64x128xf32>
    %9 = tpu.matmul %7, %8, %cst_8 {dimension_numbers = #tpu.dot_dimension_numbers<[1], [0], [0], [1], [0, 0, 1, 1], [], []>} : vector<64x64xf32>, vector<64x128xf32>, vector<64x128xf32> -> vector<64x128xf32>
    %c0_9 = arith.constant 0 : index
    %c0_10 = arith.constant 0 : index
    %c0_11 = arith.constant 0 : index
    %10 = vector.load %arg1[%c0_9, %c0_10, %c0_11] : memref<5x64x128xf32, #tpu.memory_space<vmem>>, vector<1x64x128xf32>
    %11 = vector.shape_cast %10 : vector<1x64x128xf32> to vector<64x128xf32>
    %c0_12 = arith.constant 0 : index
    %c0_13 = arith.constant 0 : index
    %c0_14 = arith.constant 0 : index
    %12 = vector.load %arg5[%c0_12, %c0_13, %c0_14] : memref<5x128x128xf32, #tpu.memory_space<vmem>>, vector<1x128x128xf32>
    %13 = vector.shape_cast %12 : vector<1x128x128xf32> to vector<128x128xf32>
    %cst_15 = arith.constant dense<0.000000e+00> : vector<64x128xf32>
    %14 = tpu.matmul %11, %13, %cst_15 {dimension_numbers = #tpu.dot_dimension_numbers<[1], [0], [0], [1], [0, 0, 1, 1], [], []>} : vector<64x128xf32>, vector<128x128xf32>, vector<64x128xf32> -> vector<64x128xf32>
    %15 = arith.addf %9, %14 : vector<64x128xf32>
    %c1 = arith.constant 1 : index
    %c0_16 = arith.constant 0 : index
    %c0_17 = arith.constant 0 : index
    %16 = vector.load %arg1[%c1, %c0_16, %c0_17] : memref<5x64x128xf32, #tpu.memory_space<vmem>>, vector<1x64x128xf32>
    %17 = vector.shape_cast %16 : vector<1x64x128xf32> to vector<64x128xf32>
    %c1_18 = arith.constant 1 : index
    %c0_19 = arith.constant 0 : index
    %c0_20 = arith.constant 0 : index
    %18 = vector.load %arg5[%c1_18, %c0_19, %c0_20] : memref<5x128x128xf32, #tpu.memory_space<vmem>>, vector<1x128x128xf32>
    %19 = vector.shape_cast %18 : vector<1x128x128xf32> to vector<128x128xf32>
    %cst_21 = arith.constant dense<0.000000e+00> : vector<64x128xf32>
    %20 = tpu.matmul %17, %19, %cst_21 {dimension_numbers = #tpu.dot_dimension_numbers<[1], [0], [0], [1], [0, 0, 1, 1], [], []>} : vector<64x128xf32>, vector<128x128xf32>, vector<64x128xf32> -> vector<64x128xf32>
    %21 = arith.addf %15, %20 : vector<64x128xf32>
    %c2 = arith.constant 2 : index
    %c0_22 = arith.constant 0 : index
    %c0_23 = arith.constant 0 : index
    %22 = vector.load %arg1[%c2, %c0_22, %c0_23] : memref<5x64x128xf32, #tpu.memory_space<vmem>>, vector<1x64x128xf32>
    %23 = vector.shape_cast %22 : vector<1x64x128xf32> to vector<64x128xf32>
    %c2_24 = arith.constant 2 : index
    %c0_25 = arith.constant 0 : index
    %c0_26 = arith.constant 0 : index
    %24 = vector.load %arg5[%c2_24, %c0_25, %c0_26] : memref<5x128x128xf32, #tpu.memory_space<vmem>>, vector<1x128x128xf32>
    %25 = vector.shape_cast %24 : vector<1x128x128xf32> to vector<128x128xf32>
    %cst_27 = arith.constant dense<0.000000e+00> : vector<64x128xf32>
    %26 = tpu.matmul %23, %25, %cst_27 {dimension_numbers = #tpu.dot_dimension_numbers<[1], [0], [0], [1], [0, 0, 1, 1], [], []>} : vector<64x128xf32>, vector<128x128xf32>, vector<64x128xf32> -> vector<64x128xf32>
    %27 = arith.addf %21, %26 : vector<64x128xf32>
    %c3 = arith.constant 3 : index
    %c0_28 = arith.constant 0 : index
    %c0_29 = arith.constant 0 : index
    %28 = vector.load %arg1[%c3, %c0_28, %c0_29] : memref<5x64x128xf32, #tpu.memory_space<vmem>>, vector<1x64x128xf32>
    %29 = vector.shape_cast %28 : vector<1x64x128xf32> to vector<64x128xf32>
    %c3_30 = arith.constant 3 : index
    %c0_31 = arith.constant 0 : index
    %c0_32 = arith.constant 0 : index
    %30 = vector.load %arg5[%c3_30, %c0_31, %c0_32] : memref<5x128x128xf32, #tpu.memory_space<vmem>>, vector<1x128x128xf32>
    %31 = vector.shape_cast %30 : vector<1x128x128xf32> to vector<128x128xf32>
    %cst_33 = arith.constant dense<0.000000e+00> : vector<64x128xf32>
    %32 = tpu.matmul %29, %31, %cst_33 {dimension_numbers = #tpu.dot_dimension_numbers<[1], [0], [0], [1], [0, 0, 1, 1], [], []>} : vector<64x128xf32>, vector<128x128xf32>, vector<64x128xf32> -> vector<64x128xf32>
    %33 = arith.addf %27, %32 : vector<64x128xf32>
    %c4 = arith.constant 4 : index
    %c0_34 = arith.constant 0 : index
    %c0_35 = arith.constant 0 : index
    %34 = vector.load %arg1[%c4, %c0_34, %c0_35] : memref<5x64x128xf32, #tpu.memory_space<vmem>>, vector<1x64x128xf32>
    %35 = vector.shape_cast %34 : vector<1x64x128xf32> to vector<64x128xf32>
    %c4_36 = arith.constant 4 : index
    %c0_37 = arith.constant 0 : index
    %c0_38 = arith.constant 0 : index
    %36 = vector.load %arg5[%c4_36, %c0_37, %c0_38] : memref<5x128x128xf32, #tpu.memory_space<vmem>>, vector<1x128x128xf32>
    %37 = vector.shape_cast %36 : vector<1x128x128xf32> to vector<128x128xf32>
    %cst_39 = arith.constant dense<0.000000e+00> : vector<64x128xf32>
    %38 = tpu.matmul %35, %37, %cst_39 {dimension_numbers = #tpu.dot_dimension_numbers<[1], [0], [0], [1], [0, 0, 1, 1], [], []>} : vector<64x128xf32>, vector<128x128xf32>, vector<64x128xf32> -> vector<64x128xf32>
    %39 = arith.addf %33, %38 : vector<64x128xf32>
    %c0_40 = arith.constant 0 : index
    %c0_41 = arith.constant 0 : index
    %40 = vector.load %arg7[%c0_40, %c0_41] : memref<64x128xf32, #tpu.memory_space<vmem>>, vector<64x128xf32>
    tpu.vector_store %arg7[%c0_40, %c0_41], %39 {strides = array<i32>} : memref<64x128xf32, #tpu.memory_space<vmem>>, vector<64x128xf32>,
    return
  }
  func.func @transform_0(%arg0: i32) -> (i32, i32, i32) {
    %c0_i32 = arith.constant 0 : i32
    %c0_i32_0 = arith.constant 0 : i32
    %c0_i32_1 = arith.constant 0 : i32
    return %c0_i32, %arg0, %c0_i32_0 : i32, i32, i32
  }
  func.func @transform_1(%arg0: i32) -> (i32, i32) {
    %c0_i32 = arith.constant 0 : i32
    %c0_i32_0 = arith.constant 0 : i32
    return %arg0, %c0_i32 : i32, i32
  }
  func.func @transform_2(%arg0: i32) -> (i32, i32) {
    %c0_i32 = arith.constant 0 : i32
    %c0_i32_0 = arith.constant 0 : i32
    %c0_i32_1 = arith.constant 0 : i32
    return %c0_i32, %c0_i32_0 : i32, i32
  }
  func.func @transform_3(%arg0: i32) -> (i32, i32) {
    %c0_i32 = arith.constant 0 : i32
    %c0_i32_0 = arith.constant 0 : i32
    %c0_i32_1 = arith.constant 0 : i32
    return %c0_i32, %c0_i32_0 : i32, i32
  }
  func.func @transform_4(%arg0: i32) -> (i32, i32, i32) {
    %c0_i32 = arith.constant 0 : i32
    %c0_i32_0 = arith.constant 0 : i32
    %c0_i32_1 = arith.constant 0 : i32
    %c0_i32_2 = arith.constant 0 : i32
    return %c0_i32, %c0_i32_0, %c0_i32_1 : i32, i32, i32
  }
  func.func @transform_5(%arg0: i32) -> (i32, i32) {
    %c0_i32 = arith.constant 0 : i32
    %c0_i32_0 = arith.constant 0 : i32
    %c0_i32_1 = arith.constant 0 : i32
    return %c0_i32, %c0_i32_0 : i32, i32
  }
  func.func @transform_6(%arg0: i32) -> (i32, i32) {
    %c0_i32 = arith.constant 0 : i32
    %c0_i32_0 = arith.constant 0 : i32
    return %arg0, %c0_i32 : i32, i32
  }
}

module attributes {stable_mosaic.version = 11 : i64} {
  func.func @_gcn_side_kernel(%arg0: i32, %arg1: i32, %arg2: memref<64x64xf32, #tpu.memory_space<vmem>>, %arg3: memref<1x64x128xf32, #tpu.memory_space<vmem>>, %arg4: memref<1x48x64xf32, #tpu.memory_space<vmem>>, %arg5: memref<1x48x128xf32, #tpu.memory_space<vmem>>, %arg6: memref<64x128xf32, #tpu.memory_space<vmem>>) attributes {dimension_semantics = [#tpu.dimension_semantics<parallel>, #tpu.dimension_semantics<arbitrary>], iteration_bounds = array<i64: 5, 1>, scalar_prefetch = 0 : i64, scratch_operands = 1 : i64, tpu.core_type = #tpu.core_type<tc>, window_params = [{pipeline_mode = #tpu.pipeline_mode<synchronous>, transform_indices = @transform_0, window_bounds = array<i64: 64, 64>}, {transform_indices = @transform_1, window_bounds = array<i64: 1, 64, 128>}, {transform_indices = @transform_2, window_bounds = array<i64: 1, 48, 64>}, {transform_indices = @transform_3, window_bounds = array<i64: 1, 48, 128>}]} {
    %c0_i32 = arith.constant 0 : i32
    %0 = arith.cmpi eq, %arg1, %c0_i32 : i32
    %1 = arith.extui %0 : i1 to i32
    %c0_i32_0 = arith.constant 0 : i32
    %2 = arith.cmpi ne, %1, %c0_i32_0 : i32
    scf.if %2 {
      %c0_9 = arith.constant 0 : index
      %c0_10 = arith.constant 0 : index
      %12 = vector.load %arg2[%c0_9, %c0_10] : memref<64x64xf32, #tpu.memory_space<vmem>>, vector<64x64xf32>
      %c0_11 = arith.constant 0 : index
      %c0_12 = arith.constant 0 : index
      %c0_13 = arith.constant 0 : index
      %13 = vector.load %arg3[%c0_11, %c0_12, %c0_13] : memref<1x64x128xf32, #tpu.memory_space<vmem>>, vector<1x64x128xf32>
      %14 = vector.shape_cast %13 : vector<1x64x128xf32> to vector<64x128xf32>
      %cst_14 = arith.constant dense<0.000000e+00> : vector<64x128xf32>
      %15 = tpu.matmul %12, %14, %cst_14 {dimension_numbers = #tpu.dot_dimension_numbers<[1], [0], [0], [1], [0, 0, 1, 1], [], []>} : vector<64x64xf32>, vector<64x128xf32>, vector<64x128xf32> -> vector<64x128xf32>
      %c0_15 = arith.constant 0 : index
      %c0_16 = arith.constant 0 : index
      %16 = vector.load %arg6[%c0_15, %c0_16] : memref<64x128xf32, #tpu.memory_space<vmem>>, vector<64x128xf32>
      tpu.vector_store %arg6[%c0_15, %c0_16], %15 {strides = array<i32>} : memref<64x128xf32, #tpu.memory_space<vmem>>, vector<64x128xf32>,
    } else {
    }
    %c0 = arith.constant 0 : index
    %c0_1 = arith.constant 0 : index
    %c0_2 = arith.constant 0 : index
    %3 = vector.load %arg4[%c0, %c0_1, %c0_2] : memref<1x48x64xf32, #tpu.memory_space<vmem>>, vector<1x48x64xf32>
    %4 = vector.shape_cast %3 : vector<1x48x64xf32> to vector<48x64xf32>
    %c0_3 = arith.constant 0 : index
    %c0_4 = arith.constant 0 : index
    %5 = vector.load %arg6[%c0_3, %c0_4] : memref<64x128xf32, #tpu.memory_space<vmem>>, vector<64x128xf32>
    %cst = arith.constant dense<0.000000e+00> : vector<48x128xf32>
    %6 = tpu.matmul %4, %5, %cst {dimension_numbers = #tpu.dot_dimension_numbers<[1], [0], [0], [1], [0, 0, 1, 1], [], []>} : vector<48x64xf32>, vector<64x128xf32>, vector<48x128xf32> -> vector<48x128xf32>
    %cst_5 = arith.constant 0.000000e+00 : f32
    %7 = vector.broadcast %cst_5 : f32 to vector<48x128xf32>
    %8 = arith.maximumf %6, %7 : vector<48x128xf32>
    %c0_6 = arith.constant 0 : index
    %c0_7 = arith.constant 0 : index
    %c0_8 = arith.constant 0 : index
    %9 = vector.load %arg5[%c0_6, %c0_7, %c0_8] : memref<1x48x128xf32, #tpu.memory_space<vmem>>, vector<1x48x128xf32>
    %10 = vector.shape_cast %9 : vector<1x48x128xf32> to vector<48x128xf32>
    %11 = vector.shape_cast %8 : vector<48x128xf32> to vector<1x48x128xf32>
    tpu.vector_store %arg5[%c0_6, %c0_7, %c0_8], %11 {strides = array<i32>} : memref<1x48x128xf32, #tpu.memory_space<vmem>>, vector<1x48x128xf32>,
    return
  }
  func.func @transform_0(%arg0: i32, %arg1: i32) -> (i32, i32) {
    %c0_i32 = arith.constant 0 : i32
    %c0_i32_0 = arith.constant 0 : i32
    %c0_i32_1 = arith.constant 0 : i32
    return %c0_i32, %c0_i32_0 : i32, i32
  }
  func.func @transform_1(%arg0: i32, %arg1: i32) -> (i32, i32, i32) {
    %c0_i32 = arith.constant 0 : i32
    %c0_i32_0 = arith.constant 0 : i32
    %c0_i32_1 = arith.constant 0 : i32
    return %arg0, %c0_i32, %c0_i32_0 : i32, i32, i32
  }
  func.func @transform_2(%arg0: i32, %arg1: i32) -> (i32, i32, i32) {
    %c0_i32 = arith.constant 0 : i32
    %c0_i32_0 = arith.constant 0 : i32
    return %arg0, %arg1, %c0_i32 : i32, i32, i32
  }
  func.func @transform_3(%arg0: i32, %arg1: i32) -> (i32, i32, i32) {
    %c0_i32 = arith.constant 0 : i32
    %c0_i32_0 = arith.constant 0 : i32
    return %arg0, %arg1, %c0_i32 : i32, i32, i32
  }
}

module attributes {stable_mosaic.version = 11 : i64} {
  func.func @_fused_dense_kernel(%arg0: i32, %arg1: memref<5x48x128xf32, #tpu.memory_space<vmem>>, %arg2: memref<48x32xf32, #tpu.memory_space<vmem>>, %arg3: memref<32x64xf32, #tpu.memory_space<vmem>>, %arg4: memref<1x64xf32, #tpu.memory_space<vmem>>, %arg5: memref<5x128x128xf32, #tpu.memory_space<vmem>>, %arg6: memref<64x128xf32, #tpu.memory_space<vmem>>, %arg7: memref<48x128xf32, #tpu.memory_space<vmem>>) attributes {dimension_semantics = [#tpu.dimension_semantics<parallel>], iteration_bounds = array<i64: 1>, scalar_prefetch = 0 : i64, scratch_operands = 0 : i64, tpu.core_type = #tpu.core_type<tc>, window_params = [{transform_indices = @transform_0, window_bounds = array<i64: 5, 48, 128>}, {transform_indices = @transform_1, window_bounds = array<i64: 48, 32>}, {pipeline_mode = #tpu.pipeline_mode<synchronous>, transform_indices = @transform_2, window_bounds = array<i64: 32, 64>}, {pipeline_mode = #tpu.pipeline_mode<synchronous>, transform_indices = @transform_3, window_bounds = array<i64: 1, 64>}, {pipeline_mode = #tpu.pipeline_mode<synchronous>, transform_indices = @transform_4, window_bounds = array<i64: 5, 128, 128>}, {pipeline_mode = #tpu.pipeline_mode<synchronous>, transform_indices = @transform_5, window_bounds = array<i64: 64, 128>}, {transform_indices = @transform_6, window_bounds = array<i64: 48, 128>}]} {
    %c0 = arith.constant 0 : index
    %c0_0 = arith.constant 0 : index
    %0 = vector.load %arg2[%c0, %c0_0] : memref<48x32xf32, #tpu.memory_space<vmem>>, vector<48x32xf32>
    %c0_1 = arith.constant 0 : index
    %c0_2 = arith.constant 0 : index
    %1 = vector.load %arg3[%c0_1, %c0_2] : memref<32x64xf32, #tpu.memory_space<vmem>>, vector<32x64xf32>
    %cst = arith.constant dense<0.000000e+00> : vector<48x64xf32>
    %2 = tpu.matmul %0, %1, %cst {dimension_numbers = #tpu.dot_dimension_numbers<[1], [0], [0], [1], [0, 0, 1, 1], [], []>} : vector<48x32xf32>, vector<32x64xf32>, vector<48x64xf32> -> vector<48x64xf32>
    %c0_3 = arith.constant 0 : index
    %c0_4 = arith.constant 0 : index
    %3 = vector.load %arg4[%c0_3, %c0_4] : memref<1x64xf32, #tpu.memory_space<vmem>>, vector<1x64xf32>
    %4 = vector.broadcast %3 : vector<1x64xf32> to vector<48x64xf32>
    %5 = arith.addf %2, %4 : vector<48x64xf32>
    %cst_5 = arith.constant 0.000000e+00 : f32
    %6 = vector.broadcast %cst_5 : f32 to vector<48x64xf32>
    %7 = arith.maximumf %5, %6 : vector<48x64xf32>
    %c0_6 = arith.constant 0 : index
    %c0_7 = arith.constant 0 : index
    %8 = vector.load %arg6[%c0_6, %c0_7] : memref<64x128xf32, #tpu.memory_space<vmem>>, vector<64x128xf32>
    %cst_8 = arith.constant dense<0.000000e+00> : vector<48x128xf32>
    %9 = tpu.matmul %7, %8, %cst_8 {dimension_numbers = #tpu.dot_dimension_numbers<[1], [0], [0], [1], [0, 0, 1, 1], [], []>} : vector<48x64xf32>, vector<64x128xf32>, vector<48x128xf32> -> vector<48x128xf32>
    %c0_9 = arith.constant 0 : index
    %c0_10 = arith.constant 0 : index
    %c0_11 = arith.constant 0 : index
    %10 = vector.load %arg1[%c0_9, %c0_10, %c0_11] : memref<5x48x128xf32, #tpu.memory_space<vmem>>, vector<1x48x128xf32>
    %11 = vector.shape_cast %10 : vector<1x48x128xf32> to vector<48x128xf32>
    %c0_12 = arith.constant 0 : index
    %c0_13 = arith.constant 0 : index
    %c0_14 = arith.constant 0 : index
    %12 = vector.load %arg5[%c0_12, %c0_13, %c0_14] : memref<5x128x128xf32, #tpu.memory_space<vmem>>, vector<1x128x128xf32>
    %13 = vector.shape_cast %12 : vector<1x128x128xf32> to vector<128x128xf32>
    %cst_15 = arith.constant dense<0.000000e+00> : vector<48x128xf32>
    %14 = tpu.matmul %11, %13, %cst_15 {dimension_numbers = #tpu.dot_dimension_numbers<[1], [0], [0], [1], [0, 0, 1, 1], [], []>} : vector<48x128xf32>, vector<128x128xf32>, vector<48x128xf32> -> vector<48x128xf32>
    %15 = arith.addf %9, %14 : vector<48x128xf32>
    %c1 = arith.constant 1 : index
    %c0_16 = arith.constant 0 : index
    %c0_17 = arith.constant 0 : index
    %16 = vector.load %arg1[%c1, %c0_16, %c0_17] : memref<5x48x128xf32, #tpu.memory_space<vmem>>, vector<1x48x128xf32>
    %17 = vector.shape_cast %16 : vector<1x48x128xf32> to vector<48x128xf32>
    %c1_18 = arith.constant 1 : index
    %c0_19 = arith.constant 0 : index
    %c0_20 = arith.constant 0 : index
    %18 = vector.load %arg5[%c1_18, %c0_19, %c0_20] : memref<5x128x128xf32, #tpu.memory_space<vmem>>, vector<1x128x128xf32>
    %19 = vector.shape_cast %18 : vector<1x128x128xf32> to vector<128x128xf32>
    %cst_21 = arith.constant dense<0.000000e+00> : vector<48x128xf32>
    %20 = tpu.matmul %17, %19, %cst_21 {dimension_numbers = #tpu.dot_dimension_numbers<[1], [0], [0], [1], [0, 0, 1, 1], [], []>} : vector<48x128xf32>, vector<128x128xf32>, vector<48x128xf32> -> vector<48x128xf32>
    %21 = arith.addf %15, %20 : vector<48x128xf32>
    %c2 = arith.constant 2 : index
    %c0_22 = arith.constant 0 : index
    %c0_23 = arith.constant 0 : index
    %22 = vector.load %arg1[%c2, %c0_22, %c0_23] : memref<5x48x128xf32, #tpu.memory_space<vmem>>, vector<1x48x128xf32>
    %23 = vector.shape_cast %22 : vector<1x48x128xf32> to vector<48x128xf32>
    %c2_24 = arith.constant 2 : index
    %c0_25 = arith.constant 0 : index
    %c0_26 = arith.constant 0 : index
    %24 = vector.load %arg5[%c2_24, %c0_25, %c0_26] : memref<5x128x128xf32, #tpu.memory_space<vmem>>, vector<1x128x128xf32>
    %25 = vector.shape_cast %24 : vector<1x128x128xf32> to vector<128x128xf32>
    %cst_27 = arith.constant dense<0.000000e+00> : vector<48x128xf32>
    %26 = tpu.matmul %23, %25, %cst_27 {dimension_numbers = #tpu.dot_dimension_numbers<[1], [0], [0], [1], [0, 0, 1, 1], [], []>} : vector<48x128xf32>, vector<128x128xf32>, vector<48x128xf32> -> vector<48x128xf32>
    %27 = arith.addf %21, %26 : vector<48x128xf32>
    %c3 = arith.constant 3 : index
    %c0_28 = arith.constant 0 : index
    %c0_29 = arith.constant 0 : index
    %28 = vector.load %arg1[%c3, %c0_28, %c0_29] : memref<5x48x128xf32, #tpu.memory_space<vmem>>, vector<1x48x128xf32>
    %29 = vector.shape_cast %28 : vector<1x48x128xf32> to vector<48x128xf32>
    %c3_30 = arith.constant 3 : index
    %c0_31 = arith.constant 0 : index
    %c0_32 = arith.constant 0 : index
    %30 = vector.load %arg5[%c3_30, %c0_31, %c0_32] : memref<5x128x128xf32, #tpu.memory_space<vmem>>, vector<1x128x128xf32>
    %31 = vector.shape_cast %30 : vector<1x128x128xf32> to vector<128x128xf32>
    %cst_33 = arith.constant dense<0.000000e+00> : vector<48x128xf32>
    %32 = tpu.matmul %29, %31, %cst_33 {dimension_numbers = #tpu.dot_dimension_numbers<[1], [0], [0], [1], [0, 0, 1, 1], [], []>} : vector<48x128xf32>, vector<128x128xf32>, vector<48x128xf32> -> vector<48x128xf32>
    %33 = arith.addf %27, %32 : vector<48x128xf32>
    %c4 = arith.constant 4 : index
    %c0_34 = arith.constant 0 : index
    %c0_35 = arith.constant 0 : index
    %34 = vector.load %arg1[%c4, %c0_34, %c0_35] : memref<5x48x128xf32, #tpu.memory_space<vmem>>, vector<1x48x128xf32>
    %35 = vector.shape_cast %34 : vector<1x48x128xf32> to vector<48x128xf32>
    %c4_36 = arith.constant 4 : index
    %c0_37 = arith.constant 0 : index
    %c0_38 = arith.constant 0 : index
    %36 = vector.load %arg5[%c4_36, %c0_37, %c0_38] : memref<5x128x128xf32, #tpu.memory_space<vmem>>, vector<1x128x128xf32>
    %37 = vector.shape_cast %36 : vector<1x128x128xf32> to vector<128x128xf32>
    %cst_39 = arith.constant dense<0.000000e+00> : vector<48x128xf32>
    %38 = tpu.matmul %35, %37, %cst_39 {dimension_numbers = #tpu.dot_dimension_numbers<[1], [0], [0], [1], [0, 0, 1, 1], [], []>} : vector<48x128xf32>, vector<128x128xf32>, vector<48x128xf32> -> vector<48x128xf32>
    %39 = arith.addf %33, %38 : vector<48x128xf32>
    %c0_40 = arith.constant 0 : index
    %c0_41 = arith.constant 0 : index
    %40 = vector.load %arg7[%c0_40, %c0_41] : memref<48x128xf32, #tpu.memory_space<vmem>>, vector<48x128xf32>
    tpu.vector_store %arg7[%c0_40, %c0_41], %39 {strides = array<i32>} : memref<48x128xf32, #tpu.memory_space<vmem>>, vector<48x128xf32>,
    return
  }
  func.func @transform_0(%arg0: i32) -> (i32, i32, i32) {
    %c0_i32 = arith.constant 0 : i32
    %c0_i32_0 = arith.constant 0 : i32
    %c0_i32_1 = arith.constant 0 : i32
    return %c0_i32, %arg0, %c0_i32_0 : i32, i32, i32
  }
  func.func @transform_1(%arg0: i32) -> (i32, i32) {
    %c0_i32 = arith.constant 0 : i32
    %c0_i32_0 = arith.constant 0 : i32
    return %arg0, %c0_i32 : i32, i32
  }
  func.func @transform_2(%arg0: i32) -> (i32, i32) {
    %c0_i32 = arith.constant 0 : i32
    %c0_i32_0 = arith.constant 0 : i32
    %c0_i32_1 = arith.constant 0 : i32
    return %c0_i32, %c0_i32_0 : i32, i32
  }
  func.func @transform_3(%arg0: i32) -> (i32, i32) {
    %c0_i32 = arith.constant 0 : i32
    %c0_i32_0 = arith.constant 0 : i32
    %c0_i32_1 = arith.constant 0 : i32
    return %c0_i32, %c0_i32_0 : i32, i32
  }
  func.func @transform_4(%arg0: i32) -> (i32, i32, i32) {
    %c0_i32 = arith.constant 0 : i32
    %c0_i32_0 = arith.constant 0 : i32
    %c0_i32_1 = arith.constant 0 : i32
    %c0_i32_2 = arith.constant 0 : i32
    return %c0_i32, %c0_i32_0, %c0_i32_1 : i32, i32, i32
  }
  func.func @transform_5(%arg0: i32) -> (i32, i32) {
    %c0_i32 = arith.constant 0 : i32
    %c0_i32_0 = arith.constant 0 : i32
    %c0_i32_1 = arith.constant 0 : i32
    return %c0_i32, %c0_i32_0 : i32, i32
  }
  func.func @transform_6(%arg0: i32) -> (i32, i32) {
    %c0_i32 = arith.constant 0 : i32
    %c0_i32_0 = arith.constant 0 : i32
    return %arg0, %c0_i32 : i32, i32
  }
}

module attributes {stable_mosaic.version = 11 : i64} {
  func.func @_decoder_kernel(%arg0: i32, %arg1: memref<96x128xf32, #tpu.memory_space<vmem>>, %arg2: memref<96x128xf32, #tpu.memory_space<vmem>>, %arg3: memref<128x384xf32, #tpu.memory_space<vmem>>, %arg4: memref<3x5xf32, #tpu.memory_space<vmem>>, %arg5: memref<96x5xf32, #tpu.memory_space<vmem>>) attributes {dimension_semantics = [#tpu.dimension_semantics<parallel>], iteration_bounds = array<i64: 1>, scalar_prefetch = 0 : i64, scratch_operands = 0 : i64, tpu.core_type = #tpu.core_type<tc>, window_params = [{transform_indices = @transform_0, window_bounds = array<i64: 96, 128>}, {transform_indices = @transform_1, window_bounds = array<i64: 96, 128>}, {pipeline_mode = #tpu.pipeline_mode<synchronous>, transform_indices = @transform_2, window_bounds = array<i64: 128, 384>}, {pipeline_mode = #tpu.pipeline_mode<synchronous>, transform_indices = @transform_3, window_bounds = array<i64: 3, 5>}, {transform_indices = @transform_4, window_bounds = array<i64: 96, 5>}]} {
    %c0 = arith.constant 0 : index
    %c0_0 = arith.constant 0 : index
    %0 = vector.load %arg2[%c0, %c0_0] : memref<96x128xf32, #tpu.memory_space<vmem>>, vector<96x128xf32>
    %c0_1 = arith.constant 0 : index
    %c0_2 = arith.constant 0 : index
    %1 = vector.load %arg1[%c0_1, %c0_2] : memref<96x128xf32, #tpu.memory_space<vmem>>, vector<96x128xf32>
    %c0_3 = arith.constant 0 : index
    %c0_4 = arith.constant 0 : index
    %2 = vector.load %arg3[%c0_3, %c0_4] : memref<128x384xf32, #tpu.memory_space<vmem>>, vector<128x384xf32>
    %cst = arith.constant dense<0.000000e+00> : vector<96x384xf32>
    %3 = tpu.matmul %1, %2, %cst {dimension_numbers = #tpu.dot_dimension_numbers<[1], [0], [0], [1], [0, 0, 1, 1], [], []>} : vector<96x128xf32>, vector<128x384xf32>, vector<96x384xf32> -> vector<96x384xf32>
    %4 = vector.extract_strided_slice %3 {offsets = [0, 0], sizes = [96, 128], strides = [1, 1]} : vector<96x384xf32> to vector<96x128xf32>
    %5 = arith.mulf %4, %0 : vector<96x128xf32>
    %cst_5 = arith.constant dense<0.000000e+00> : vector<96xf32>
    %6 = vector.multi_reduction <add>, %5, %cst_5 [1] : vector<96x128xf32> to vector<96xf32>
    %7 = vector.shape_cast %6 : vector<96xf32> to vector<96x1xf32>
    %8 = vector.extract_strided_slice %3 {offsets = [0, 128], sizes = [96, 128], strides = [1, 1]} : vector<96x384xf32> to vector<96x128xf32>
    %9 = arith.mulf %8, %0 : vector<96x128xf32>
    %cst_6 = arith.constant dense<0.000000e+00> : vector<96xf32>
    %10 = vector.multi_reduction <add>, %9, %cst_6 [1] : vector<96x128xf32> to vector<96xf32>
    %11 = vector.shape_cast %10 : vector<96xf32> to vector<96x1xf32>
    %12 = vector.extract_strided_slice %3 {offsets = [0, 256], sizes = [96, 128], strides = [1, 1]} : vector<96x384xf32> to vector<96x128xf32>
    %13 = arith.mulf %12, %0 : vector<96x128xf32>
    %cst_7 = arith.constant dense<0.000000e+00> : vector<96xf32>
    %14 = vector.multi_reduction <add>, %13, %cst_7 [1] : vector<96x128xf32> to vector<96xf32>
    %15 = vector.shape_cast %14 : vector<96xf32> to vector<96x1xf32>
    %16 = tpu.concatenate %7, %11, %15 in 1 : vector<96x1xf32>, vector<96x1xf32>, vector<96x1xf32> -> vector<96x3xf32>
    %c0_8 = arith.constant 0 : index
    %c0_9 = arith.constant 0 : index
    %17 = vector.load %arg4[%c0_8, %c0_9] : memref<3x5xf32, #tpu.memory_space<vmem>>, vector<3x5xf32>
    %cst_10 = arith.constant dense<0.000000e+00> : vector<96x5xf32>
    %18 = tpu.matmul %16, %17, %cst_10 {dimension_numbers = #tpu.dot_dimension_numbers<[1], [0], [0], [1], [0, 0, 1, 1], [], []>} : vector<96x3xf32>, vector<3x5xf32>, vector<96x5xf32> -> vector<96x5xf32>
    %c0_11 = arith.constant 0 : index
    %c0_12 = arith.constant 0 : index
    %19 = vector.load %arg5[%c0_11, %c0_12] : memref<96x5xf32, #tpu.memory_space<vmem>>, vector<96x5xf32>
    tpu.vector_store %arg5[%c0_11, %c0_12], %18 {strides = array<i32>} : memref<96x5xf32, #tpu.memory_space<vmem>>, vector<96x5xf32>,
    return
  }
  func.func @transform_0(%arg0: i32) -> (i32, i32) {
    %c0_i32 = arith.constant 0 : i32
    %c0_i32_0 = arith.constant 0 : i32
    return %arg0, %c0_i32 : i32, i32
  }
  func.func @transform_1(%arg0: i32) -> (i32, i32) {
    %c0_i32 = arith.constant 0 : i32
    %c0_i32_0 = arith.constant 0 : i32
    return %arg0, %c0_i32 : i32, i32
  }
  func.func @transform_2(%arg0: i32) -> (i32, i32) {
    %c0_i32 = arith.constant 0 : i32
    %c0_i32_0 = arith.constant 0 : i32
    %c0_i32_1 = arith.constant 0 : i32
    return %c0_i32, %c0_i32_0 : i32, i32
  }
  func.func @transform_3(%arg0: i32) -> (i32, i32) {
    %c0_i32 = arith.constant 0 : i32
    %c0_i32_0 = arith.constant 0 : i32
    %c0_i32_1 = arith.constant 0 : i32
    return %c0_i32, %c0_i32_0 : i32, i32
  }
  func.func @transform_4(%arg0: i32) -> (i32, i32) {
    %c0_i32 = arith.constant 0 : i32
    %c0_i32_0 = arith.constant 0 : i32
    return %arg0, %c0_i32 : i32, i32
  }
}

</mosaic_0001>

<llo_original>
// kernel: graph_matrix_completion_forward.5
$region0: #{graph_matrix_completion_forward.5}
  #allocation0 [shape = 'u32[]', space=smem, size = 0x4, offset = 0x4, fixed_abs, tag = 'smem constant byte address 0x4 - core index']
  #allocation1 [shape = 'u32[72,128]{1,0:T(1,128)}', space=vmem, size = 0x9000, scoped, tag = 'internal scratch']
  #allocation2 [shape = 'f32[48,128]{1,0:T(8,128)}', space=vmem, size = 0x6000, scoped, tag = 'scratch operand']
  %s0 = inlined_call_operand.vmem [shape: f32[48,64], index: 0, kind: input, shape index: {}]
  %s1 = inlined_call_operand.vmem [shape: f32[5,64,128], index: 1, kind: input, shape index: {}]
  %s2 = inlined_call_operand.vmem [shape: f32[5,64,48], index: 2, kind: input, shape index: {}]
  %s3 = inlined_call_operand.vmem [shape: f32[5,64,128], index: 3, kind: output, shape index: {}]
  %s4 = sld [smem:[#allocation0]]
  $region49: #{graph_matrix_completion_forward.5} parent=0
    _
  %s6 = ssub.s32 1, %s4
  %s7 = scalar_select 0, %s6, %s4
  loop: start=0, step=1, limit=7
  $region2: #{graph_matrix_completion_forward.5} parent=0 // loop_pre_header
    _
  $region3: #{graph_matrix_completion_forward.5} parent=0 // loop_header
    %s9 = sphi 0, %s13
    %p10 = scmp.ge.s32.totalorder %s9, 7
    %s16 = sphi 0, %s28
    %s17 = sphi 0, %s24
    %s18 = sphi 0, %s16
    %s19 = sphi 0, %s17
    %s20 = sphi 0, %s18
    %s21 = sphi 0, %s19
    %s29 = sphi 0, %s29
    %s31 = sphi 0, %s29
    %s32 = sphi 0, %s31
    %s46 = sphi 0, %s32
    %s52 = sphi 0, %s54
    %s55 = sphi 0, %s52
    %s56 = sphi 0, %s55
    %s72 = sphi 0, %s56
    %s80 = sphi 0, %s82
    %s83 = sphi 0, %s80
    %s84 = sphi 0, %s83
    %s100 = sphi 0, %s84
    %s108 = sphi 0, %s110
    %s111 = sphi 0, %s108
    %s112 = sphi 0, %s111
    %s128 = sphi 0, %s112
  $region4: #{graph_matrix_completion_forward.5} parent=0 // loop_header_branch
    %12 = sbr.rel (%p10) target = $region8
  $region5: #{graph_matrix_completion_forward.5} parent=0 // loop_body
    %s14 = ssub.s32 %s9, 1
    %s15 = ssub.s32 %s9, 2
    %s22 = sadd.s32 1, %s17
    %p23 = scmp.ge.s32.totalorder %s22, 1
    %s24 = scalar_select %p23, 0, %s22
    %s25 = sadd.s32 1, %s16
    %s26 = scalar_select %p23, %s25, %s16
    %p27 = scmp.ge.s32.totalorder %s26, 5
    %s28 = scalar_select %p27, 0, %s26
    %s30 = sadd.s32 %s29, 1
    %p33 = scmp.eq.s32.totalorder %s9, 4
    %p34 = scmp.ne.s32.totalorder %s29, %s31
    %p35 = scmp.eq.s32.totalorder %s9, 0
    %p36 = por %p34, %p35
    %p37 = scmp.ne.s32.totalorder %s29, %s31
    %p38 = scmp.eq.s32.totalorder %s14, 4
    %p39 = por %p37, %p38
    %p40 = scmp.ne.s32.totalorder %s31, %s32
    %p41 = scmp.eq.s32.totalorder %s14, 0
    %p42 = por %p40, %p41
    %p43 = scmp.ne.s32.totalorder %s31, %s32
    %p44 = scmp.eq.s32.totalorder %s15, 4
    %p45 = por %p43, %p44
    %p47 = scmp.ne.s32.totalorder %s32, %s46
    %p48 = scmp.eq.s32.totalorder %s15, 0
    %p49 = por %p47, %p48
    %s50 = ssub.s32 %s16, %s28
    %p51 = scmp.eq.s32.totalorder %s50, 0
    %s53 = sadd.s32 %s52, 1
    %s54 = scalar_select %p51, %s52, %s53
    %p57 = pneg %p51
    %p58 = scmp.eq.s32.totalorder %s9, 4
    %p59 = por %p57, %p58
    %p60 = scmp.ne.s32.totalorder %s52, %s55
    %p61 = scmp.eq.s32.totalorder %s9, 0
    %p62 = por %p60, %p61
    %p63 = scmp.ne.s32.totalorder %s52, %s55
    %p64 = scmp.eq.s32.totalorder %s14, 4
    %p65 = por %p63, %p64
    %p66 = scmp.ne.s32.totalorder %s55, %s56
    %p67 = scmp.eq.s32.totalorder %s14, 0
    %p68 = por %p66, %p67
    %p69 = scmp.ne.s32.totalorder %s55, %s56
    %p70 = scmp.eq.s32.totalorder %s15, 4
    %p71 = por %p69, %p70
    %p73 = scmp.ne.s32.totalorder %s56, %s72
    %p74 = scmp.eq.s32.totalorder %s15, 0
    %p75 = por %p73, %p74
    %s76 = ssub.s32 %s16, %s28
    %s77 = ssub.s32 %s17, %s24
    %s78 = sor.u32 %s76, %s77
    %p79 = scmp.eq.s32.totalorder %s78, 0
    %s81 = sadd.s32 %s80, 1
    %s82 = scalar_select %p79, %s80, %s81
    %p85 = pneg %p79
    %p86 = scmp.eq.s32.totalorder %s9, 4
    %p87 = por %p85, %p86
    %p88 = scmp.ne.s32.totalorder %s80, %s83
    %p89 = scmp.eq.s32.totalorder %s9, 0
    %p90 = por %p88, %p89
    %p91 = scmp.ne.s32.totalorder %s80, %s83
    %p92 = scmp.eq.s32.totalorder %s14, 4
    %p93 = por %p91, %p92
    %p94 = scmp.ne.s32.totalorder %s83, %s84
    %p95 = scmp.eq.s32.totalorder %s14, 0
    %p96 = por %p94, %p95
    %p97 = scmp.ne.s32.totalorder %s83, %s84
    %p98 = scmp.eq.s32.totalorder %s15, 4
    %p99 = por %p97, %p98
    %p101 = scmp.ne.s32.totalorder %s84, %s100
    %p102 = scmp.eq.s32.totalorder %s15, 0
    %p103 = por %p101, %p102
    %s104 = ssub.s32 %s16, %s28
    %s105 = ssub.s32 %s17, %s24
    %s106 = sor.u32 %s104, %s105
    %p107 = scmp.eq.s32.totalorder %s106, 0
    %s109 = sadd.s32 %s108, 1
    %s110 = scalar_select %p107, %s108, %s109
    %p113 = pneg %p107
    %p114 = scmp.eq.s32.totalorder %s9, 4
    %p115 = por %p113, %p114
    %p116 = scmp.ne.s32.totalorder %s108, %s111
    %p117 = scmp.eq.s32.totalorder %s9, 0
    %p118 = por %p116, %p117
    %p119 = scmp.ne.s32.totalorder %s108, %s111
    %p120 = scmp.eq.s32.totalorder %s14, 4
    %p121 = por %p119, %p120
    %p122 = scmp.ne.s32.totalorder %s111, %s112
    %p123 = scmp.eq.s32.totalorder %s14, 0
    %p124 = por %p122, %p123
    %p125 = scmp.ne.s32.totalorder %s111, %s112
    %p126 = scmp.eq.s32.totalorder %s15, 4
    %p127 = por %p125, %p126
    %p129 = scmp.ne.s32.totalorder %s112, %s128
    %p130 = scmp.eq.s32.totalorder %s15, 0
    %p131 = por %p129, %p130
    %p132 = scmp.le.s32.totalorder 1, %s9
    %p133 = scmp.lt.s32.totalorder %s9, 6
    %p134 = pnand %p132, %p133
    %p135 = pneg %p134
    // Predicated region
    $region9: #{graph_matrix_completion_forward.5} parent=5 // pred_check
      _
    $region10: #{graph_matrix_completion_forward.5} parent=5 // pred_check_branch
      %137 = sbr.rel (%p134) target = $region12
    $region11: #{graph_matrix_completion_forward.5} parent=5 // pred_region
      %s138 = ssub.s32 %s9, 1
      // Predicated region
      $region13: #{graph_matrix_completion_forward.5} parent=11 // pred_check
        %p139 = pneg %p42
      $region14: #{graph_matrix_completion_forward.5} parent=11 // pred_check_branch
        %141 = sbr.rel (%p139) target = $region16
      $region15: #{graph_matrix_completion_forward.5} parent=11 // pred_region
        _
      $region16: #{graph_matrix_completion_forward.5} parent=11 // pred_fallthru
        _
    $region12: #{graph_matrix_completion_forward.5} parent=5 // pred_fallthru
      _
    %p142 = scmp.lt.s32.totalorder %s9, 5
    // Predicated region
    $region17: #{graph_matrix_completion_forward.5} parent=5 // pred_check
      %p143 = pneg %p142
    $region18: #{graph_matrix_completion_forward.5} parent=5 // pred_check_branch
      %145 = sbr.rel (%p143) target = $region20
    $region19: #{graph_matrix_completion_forward.5} parent=5 // pred_region
      // Predicated region
      $region21: #{graph_matrix_completion_forward.5} parent=19 // pred_check
        %p146 = pneg %p62
      $region22: #{graph_matrix_completion_forward.5} parent=19 // pred_check_branch
        %148 = sbr.rel (%p146) target = $region24
      $region23: #{graph_matrix_completion_forward.5} parent=19 // pred_region
        %p149 = scmp.lt.s32.totalorder %s16, 4
        %s150 = scalar_select %p149, %s16, 4
        %s151 = smul.addr %s150, 8
        %s152 = smul.addr %s151, 8
        %s153 = scalar_lea.vmem %s1, %s152
      $region24: #{graph_matrix_completion_forward.5} parent=19 // pred_fallthru
        _
      // Predicated region
      $region25: #{graph_matrix_completion_forward.5} parent=19 // pred_check
        %p154 = pneg %p90
      $region26: #{graph_matrix_completion_forward.5} parent=19 // pred_check_branch
        %156 = sbr.rel (%p154) target = $region28
      $region27: #{graph_matrix_completion_forward.5} parent=19 // pred_region
        %s157 = smul.u32 8, %s17
        %p158 = scmp.lt.s32.totalorder %s16, 4
        %s159 = scalar_select %p158, %s16, 4
        %p160 = scmp.lt.s32.totalorder %s157, 7
        %s161 = scalar_select %p160, %s157, 7
        %s162 = smul.addr %s159, 8
        %s163 = sadd.s32 %s161, %s162
        %s164 = smul.addr %s163, 8
        %s165 = scalar_lea.vmem %s2, %s164
        %s166 = smul.u32 8, %s17
      $region28: #{graph_matrix_completion_forward.5} parent=19 // pred_fallthru
        _
    $region20: #{graph_matrix_completion_forward.5} parent=5 // pred_fallthru
      _
    %p167 = scmp.le.s32.totalorder 1, %s9
    %p168 = scmp.lt.s32.totalorder %s9, 6
    %p169 = pnand %p167, %p168
    %p170 = pneg %p169
    // Predicated region
    $region29: #{graph_matrix_completion_forward.5} parent=5 // pred_check
      _
    $region30: #{graph_matrix_completion_forward.5} parent=5 // pred_check_branch
      %172 = sbr.rel (%p169) target = $region32
    $region31: #{graph_matrix_completion_forward.5} parent=5 // pred_region
      %s173 = ssub.s32 %s9, 1
      %p174 = pneg %p42
      %p175 = pneg %p39
      %p176 = scmp.lt.s32.totalorder %s18, 4
      %s177 = scalar_select %p176, %s18, 4
      %s178 = smul.addr %s177, 8
      %s179 = smul.addr %s178, 8
      %s180 = scalar_lea.vmem %s1, %s179
      %p181 = pneg %p68
      %p182 = pneg %p65
      %s183 = smul.u32 8, %s19
      %p184 = scmp.lt.s32.totalorder %s18, 4
      %s185 = scalar_select %p184, %s18, 4
      %p186 = scmp.lt.s32.totalorder %s183, 7
      %s187 = scalar_select %p186, %s183, 7
      %s188 = smul.addr %s185, 8
      %s189 = sadd.s32 %s187, %s188
      %s190 = smul.addr %s189, 8
      %s191 = scalar_lea.vmem %s2, %s190
      %p192 = pneg %p96
      %p193 = pneg %p93
      %p194 = pneg %p124
      %p195 = pneg %p121
      %s196 = smul.u32 8, %s19
      %p197 = scmp.lt.s32.totalorder %s18, 4
      %s198 = scalar_select %p197, %s18, 4
      %p199 = scmp.lt.s32.totalorder %s196, 7
      %s200 = scalar_select %p199, %s196, 7
      %s201 = smul.addr %s198, 8
      %s202 = sadd.s32 %s200, %s201
      %s203 = smul.addr %s202, 8
      %s204 = scalar_lea.vmem %s3, %s203
      %p205 = scmp.lt.s32.totalorder %s18, 4
      %s206 = scalar_select %p205, %s18, 4
      %s207 = smul.addr %s206, 8
      %s208 = smul.addr %s207, 8
      %s209 = scalar_lea.vmem %s1, %s208
      %s210 = smul.u32 8, %s19
      %p211 = scmp.lt.s32.totalorder %s18, 4
      %s212 = scalar_select %p211, %s18, 4
      %p213 = scmp.lt.s32.totalorder %s210, 7
      %s214 = scalar_select %p213, %s210, 7
      %s215 = smul.addr %s212, 8
      %s216 = sadd.s32 %s214, %s215
      %s217 = smul.addr %s216, 8
      %s218 = scalar_lea.vmem %s2, %s217
      %s219 = smul.u32 8, %s19
      %s220 = smul.u32 8, %s19
      %p221 = scmp.lt.s32.totalorder %s18, 4
      %s222 = scalar_select %p221, %s18, 4
      %p223 = scmp.lt.s32.totalorder %s220, 7
      %s224 = scalar_select %p223, %s220, 7
      %s225 = smul.addr %s222, 8
      %s226 = sadd.s32 %s224, %s225
      %s227 = smul.addr %s226, 8
      %s228 = scalar_lea.vmem %s3, %s227
      %s229 = smul.u32 8, %s19
      %p230 = scmp.eq.s32.totalorder %s19, 0
      // Predicated region
      $region33: #{graph_matrix_completion_forward.5} parent=31 // pred_check
        %p231 = pneg %p230
      $region34: #{graph_matrix_completion_forward.5} parent=31 // pred_check_branch
        %233 = sbr.rel (%p231) target = $region36
      $region35: #{graph_matrix_completion_forward.5} parent=31 // pred_region
        %v234 = vld [vmem:[%s0] sm:$0xff]
        %v235 = vld [vmem:[%s0 + $0x8] sm:$0xff]
        %v236 = vld [vmem:[%s0 + $0x10] sm:$0xff]
        %v237 = vld [vmem:[%s0 + $0x18] sm:$0xff]
        %v238 = vld [vmem:[%s0 + $0x20] sm:$0xff]
        %v239 = vld [vmem:[%s0 + $0x28] sm:$0xff]
        %v240 = vld [vmem:[%s209] sm:$0xff]
        %v241 = vld [vmem:[%s209 + $0x8] sm:$0xff]
        %v242 = vld [vmem:[%s209 + $0x10] sm:$0xff]
        %v243 = vld [vmem:[%s209 + $0x18] sm:$0xff]
        %v244 = vld [vmem:[%s209 + $0x20] sm:$0xff]
        %v245 = vld [vmem:[%s209 + $0x28] sm:$0xff]
        %v246 = vld [vmem:[%s209 + $0x30] sm:$0xff]
        %v247 = vld [vmem:[%s209 + $0x38] sm:$0xff]
        %vm248 = vcmask 523264
        %v250 = vsel %vm248, %v234, 0
        %v253 = vsel %vm248, %v235, 0
        %v256 = vsel %vm248, %v236, 0
        %v259 = vsel %vm248, %v237, 0
        %v262 = vsel %vm248, %v238, 0
        %v265 = vsel %vm248, %v239, 0
        %267 = vmatpush.msra.mxu0 0.0
        %268 = vmatpush.msra.mxu0 0.0
        %269 = vmatpush.msra.mxu0 0.0
        %270 = vmatpush.msra.mxu0 0.0
        %271 = vmatpush.msra.mxu0 0.0
        %272 = vmatpush.msra.mxu0 0.0
        %273 = vmatpush.msra.mxu0 0.0
        %274 = vmatpush.msra.mxu0 0.0
        %275 = vmatpush.msra.mxu0 %v247
        %276 = vmatpush.msra.mxu0 %v246
        %277 = vmatpush.msra.mxu0 %v245
        %278 = vmatpush.msra.mxu0 %v244
        %279 = vmatpush.msra.mxu0 %v243
        %280 = vmatpush.msra.mxu0 %v242
        %281 = vmatpush.msra.mxu0 %v241
        %282 = vmatpush.msra.mxu0 %v240
        %283 = vmatmul.f32.gmra.mxu0 %v250
        %v284 = vpop.f32.mrf.mxu0
        %v285 = vadd.f32 0.0, %v284
        %286 = vmatmul.f32.gmra.mxu0 %v253
        %v287 = vpop.f32.mrf.mxu0
        %v288 = vadd.f32 0.0, %v287
        %289 = vmatmul.f32.gmra.mxu0 %v256
        %v290 = vpop.f32.mrf.mxu0
        %v291 = vadd.f32 0.0, %v290
        %292 = vmatmul.f32.gmra.mxu0 %v259
        %v293 = vpop.f32.mrf.mxu0
        %v294 = vadd.f32 0.0, %v293
        %295 = vmatmul.f32.gmra.mxu0 %v262
        %v296 = vpop.f32.mrf.mxu0
        %v297 = vadd.f32 0.0, %v296
        %298 = vmatmul.f32.gmra.mxu0 %v265
        %v299 = vpop.f32.mrf.mxu0
        %v300 = vadd.f32 0.0, %v299
        %301 = vdwg.mxu0
        %302 = vst [vmem:[#allocation2] sm:$0xff] %v285
        %303 = vst [vmem:[#allocation2 + $0x8] sm:$0xff] %v288
        %304 = vst [vmem:[#allocation2 + $0x10] sm:$0xff] %v291
        %305 = vst [vmem:[#allocation2 + $0x18] sm:$0xff] %v294
        %306 = vst [vmem:[#allocation2 + $0x20] sm:$0xff] %v297
        %307 = vst [vmem:[#allocation2 + $0x28] sm:$0xff] %v300
      $region36: #{graph_matrix_completion_forward.5} parent=31 // pred_fallthru
        _
      %v308 = vld [vmem:[%s218] sm:$0xff]
      %v309 = vld [vmem:[%s218 + $0x8] sm:$0xff]
      %v310 = vld [vmem:[%s218 + $0x10] sm:$0xff]
      %v311 = vld [vmem:[%s218 + $0x18] sm:$0xff]
      %v312 = vld [vmem:[%s218 + $0x20] sm:$0xff]
      %v313 = vld [vmem:[%s218 + $0x28] sm:$0xff]
      %v314 = vld [vmem:[%s218 + $0x30] sm:$0xff]
      %v315 = vld [vmem:[%s218 + $0x38] sm:$0xff]
      %v316 = vld [vmem:[#allocation2] sm:$0xff]
      %v317 = vld [vmem:[#allocation2 + $0x8] sm:$0xff]
      %v318 = vld [vmem:[#allocation2 + $0x10] sm:$0xff]
      %v319 = vld [vmem:[#allocation2 + $0x18] sm:$0xff]
      %v320 = vld [vmem:[#allocation2 + $0x20] sm:$0xff]
      %v321 = vld [vmem:[#allocation2 + $0x28] sm:$0xff]
      %vm322 = vcmask 392192
      %v324 = vsel %vm322, %v308, 0
      %v327 = vsel %vm322, %v309, 0
      %v330 = vsel %vm322, %v310, 0
      %v333 = vsel %vm322, %v311, 0
      %v336 = vsel %vm322, %v312, 0
      %v339 = vsel %vm322, %v313, 0
      %v342 = vsel %vm322, %v314, 0
      %v345 = vsel %vm322, %v315, 0
      %347 = vmatpush.msra.mxu0 0.0
      %348 = vmatpush.msra.mxu0 0.0
      %349 = vmatpush.msra.mxu0 0.0
      %350 = vmatpush.msra.mxu0 0.0
      %351 = vmatpush.msra.mxu0 0.0
      %352 = vmatpush.msra.mxu0 0.0
      %353 = vmatpush.msra.mxu0 0.0
      %354 = vmatpush.msra.mxu0 0.0
      %355 = vmatpush.msra.mxu0 0.0
      %356 = vmatpush.msra.mxu0 0.0
      %357 = vmatpush.msra.mxu0 %v321
      %358 = vmatpush.msra.mxu0 %v320
      %359 = vmatpush.msra.mxu0 %v319
      %360 = vmatpush.msra.mxu0 %v318
      %361 = vmatpush.msra.mxu0 %v317
      %362 = vmatpush.msra.mxu0 %v316
      %363 = vmatmul.f32.gmra.mxu0 %v324
      %v364 = vpop.f32.mrf.mxu0
      %v365 = vadd.f32 0.0, %v364
      %366 = vmatmul.f32.gmra.mxu0 %v327
      %v367 = vpop.f32.mrf.mxu0
      %v368 = vadd.f32 0.0, %v367
      %369 = vmatmul.f32.gmra.mxu0 %v330
      %v370 = vpop.f32.mrf.mxu0
      %v371 = vadd.f32 0.0, %v370
      %372 = vmatmul.f32.gmra.mxu0 %v333
      %v373 = vpop.f32.mrf.mxu0
      %v374 = vadd.f32 0.0, %v373
      %375 = vmatmul.f32.gmra.mxu0 %v336
      %v376 = vpop.f32.mrf.mxu0
      %v377 = vadd.f32 0.0, %v376
      %378 = vmatmul.f32.gmra.mxu0 %v339
      %v379 = vpop.f32.mrf.mxu0
      %v380 = vadd.f32 0.0, %v379
      %381 = vmatmul.f32.gmra.mxu0 %v342
      %v382 = vpop.f32.mrf.mxu0
      %v383 = vadd.f32 0.0, %v382
      %384 = vmatmul.f32.gmra.mxu0 %v345
      %v385 = vpop.f32.mrf.mxu0
      %v386 = vadd.f32 0.0, %v385
      %387 = vdwg.mxu0
      %v388 = vmax.f32 %v365, 0.0
      %v389 = vmax.f32 %v368, 0.0
      %v390 = vmax.f32 %v371, 0.0
      %v391 = vmax.f32 %v374, 0.0
      %v392 = vmax.f32 %v377, 0.0
      %v393 = vmax.f32 %v380, 0.0
      %v394 = vmax.f32 %v383, 0.0
      %v395 = vmax.f32 %v386, 0.0
      %396 = vst [vmem:[%s228] sm:$0xff] %v388
      %397 = vst [vmem:[%s228 + $0x8] sm:$0xff] %v389
      %398 = vst [vmem:[%s228 + $0x10] sm:$0xff] %v390
      %399 = vst [vmem:[%s228 + $0x18] sm:$0xff] %v391
      %400 = vst [vmem:[%s228 + $0x20] sm:$0xff] %v392
      %401 = vst [vmem:[%s228 + $0x28] sm:$0xff] %v393
      %402 = vst [vmem:[%s228 + $0x30] sm:$0xff] %v394
      %403 = vst [vmem:[%s228 + $0x38] sm:$0xff] %v395
      %s404 = smul.u32 8, %s19
      %p405 = scmp.lt.s32.totalorder %s18, 4
      %s406 = scalar_select %p405, %s18, 4
      %p407 = scmp.lt.s32.totalorder %s404, 7
      %s408 = scalar_select %p407, %s404, 7
      %s409 = smul.addr %s406, 8
      %s410 = sadd.s32 %s408, %s409
      %s411 = smul.addr %s410, 8
      %s412 = scalar_lea.vmem %s3, %s411
      // Predicated region
      $region37: #{graph_matrix_completion_forward.5} parent=31 // pred_check
        %p413 = pneg %p121
      $region38: #{graph_matrix_completion_forward.5} parent=31 // pred_check_branch
        %415 = sbr.rel (%p413) target = $region40
      $region39: #{graph_matrix_completion_forward.5} parent=31 // pred_region
        %s416 = smul.u32 8, %s19
      $region40: #{graph_matrix_completion_forward.5} parent=31 // pred_fallthru
        _
    $region32: #{graph_matrix_completion_forward.5} parent=5 // pred_fallthru
      _
    %p417 = scmp.le.s32.totalorder 2, %s9
    // Predicated region
    $region41: #{graph_matrix_completion_forward.5} parent=5 // pred_check
      %p418 = pneg %p417
    $region42: #{graph_matrix_completion_forward.5} parent=5 // pred_check_branch
      %420 = sbr.rel (%p418) target = $region44
    $region43: #{graph_matrix_completion_forward.5} parent=5 // pred_region
      %s421 = ssub.s32 %s9, 2
      // Predicated region
      $region45: #{graph_matrix_completion_forward.5} parent=43 // pred_check
        %p422 = pneg %p127
      $region46: #{graph_matrix_completion_forward.5} parent=43 // pred_check_branch
        %424 = sbr.rel (%p422) target = $region48
      $region47: #{graph_matrix_completion_forward.5} parent=43 // pred_region
        %s425 = smul.u32 8, %s21
        %p426 = scmp.lt.s32.totalorder %s20, 4
        %s427 = scalar_select %p426, %s20, 4
        %p428 = scmp.lt.s32.totalorder %s425, 7
        %s429 = scalar_select %p428, %s425, 7
        %s430 = smul.addr %s427, 8
        %s431 = sadd.s32 %s429, %s430
        %s432 = smul.addr %s431, 8
        %s433 = scalar_lea.vmem %s3, %s432
      $region48: #{graph_matrix_completion_forward.5} parent=43 // pred_fallthru
        _
    $region44: #{graph_matrix_completion_forward.5} parent=5 // pred_fallthru
      _
  $region6: #{graph_matrix_completion_forward.5} parent=0 // loop_footer
    %s13 = sadd.s32 1, %s9
  $region7: #{graph_matrix_completion_forward.5} parent=0 // loop_footer_branch
    %8 = sbr.rel target = $region3
  $region8: #{graph_matrix_completion_forward.5} parent=0 // loop_exit
    _

// kernel: graph_matrix_completion_forward.7
$region0: #{graph_matrix_completion_forward.7}
  #allocation0 [shape = 'u32[]', space=smem, size = 0x4, offset = 0x4, fixed_abs, tag = 'smem constant byte address 0x4 - core index']
  #allocation1 [shape = 'u32[72,128]{1,0:T(1,128)}', space=vmem, size = 0x9000, scoped, tag = 'internal scratch']
  %s0 = inlined_call_operand.vmem [shape: f32[5,64,128], index: 0, kind: input, shape index: {}]
  %s1 = inlined_call_operand.vmem [shape: f32[64,32], index: 1, kind: input, shape index: {}]
  %s2 = inlined_call_operand.vmem [shape: f32[32,64], index: 2, kind: input, shape index: {}]
  %s3 = inlined_call_operand.vmem [shape: f32[1,64], index: 3, kind: input, shape index: {}]
  %s4 = inlined_call_operand.vmem [shape: f32[5,128,128], index: 4, kind: input, shape index: {}]
  %s5 = inlined_call_operand.vmem [shape: f32[64,128], index: 5, kind: input, shape index: {}]
  %s6 = inlined_call_operand.vmem [shape: f32[64,128], index: 6, kind: output, shape index: {}]
  %s7 = sld [smem:[#allocation0]]
  $region34: #{graph_matrix_completion_forward.7} parent=0
    _
  %s9 = ssub.s32 1, %s7
  %s10 = scalar_select 0, %s9, %s7
  // Predicated region
  $region2: #{graph_matrix_completion_forward.7} parent=0 // pred_check
    _
  $region3: #{graph_matrix_completion_forward.7} parent=0 // pred_check_branch
    %12 = sbr.rel (0) target = $region5
  $region4: #{graph_matrix_completion_forward.7} parent=0 // pred_region
    _
  $region5: #{graph_matrix_completion_forward.7} parent=0 // pred_fallthru
    _
  // Predicated region
  $region6: #{graph_matrix_completion_forward.7} parent=0 // pred_check
    _
  $region7: #{graph_matrix_completion_forward.7} parent=0 // pred_check_branch
    %14 = sbr.rel (0) target = $region9
  $region8: #{graph_matrix_completion_forward.7} parent=0 // pred_region
    _
  $region9: #{graph_matrix_completion_forward.7} parent=0 // pred_fallthru
    _
  // Predicated region
  $region10: #{graph_matrix_completion_forward.7} parent=0 // pred_check
    _
  $region11: #{graph_matrix_completion_forward.7} parent=0 // pred_check_branch
    %16 = sbr.rel (0) target = $region13
  $region12: #{graph_matrix_completion_forward.7} parent=0 // pred_region
    _
  $region13: #{graph_matrix_completion_forward.7} parent=0 // pred_fallthru
    _
  // Predicated region
  $region14: #{graph_matrix_completion_forward.7} parent=0 // pred_check
    _
  $region15: #{graph_matrix_completion_forward.7} parent=0 // pred_check_branch
    %18 = sbr.rel (0) target = $region17
  $region16: #{graph_matrix_completion_forward.7} parent=0 // pred_region
    _
  $region17: #{graph_matrix_completion_forward.7} parent=0 // pred_fallthru
    _
  // Predicated region
  $region18: #{graph_matrix_completion_forward.7} parent=0 // pred_check
    _
  $region19: #{graph_matrix_completion_forward.7} parent=0 // pred_check_branch
    %20 = sbr.rel (0) target = $region21
  $region20: #{graph_matrix_completion_forward.7} parent=0 // pred_region
    _
  $region21: #{graph_matrix_completion_forward.7} parent=0 // pred_fallthru
    _
  // Predicated region
  $region22: #{graph_matrix_completion_forward.7} parent=0 // pred_check
    _
  $region23: #{graph_matrix_completion_forward.7} parent=0 // pred_check_branch
    %22 = sbr.rel (0) target = $region25
  $region24: #{graph_matrix_completion_forward.7} parent=0 // pred_region
    _
  $region25: #{graph_matrix_completion_forward.7} parent=0 // pred_fallthru
    _
  %v23 = vld [vmem:[%s1] sm:$0xff]
  %v24 = vld [vmem:[%s1 + $0x8] sm:$0xff]
  %v25 = vld [vmem:[%s1 + $0x10] sm:$0xff]
  %v26 = vld [vmem:[%s1 + $0x18] sm:$0xff]
  %v27 = vld [vmem:[%s1 + $0x20] sm:$0xff]
  %v28 = vld [vmem:[%s1 + $0x28] sm:$0xff]
  %v29 = vld [vmem:[%s1 + $0x30] sm:$0xff]
  %v30 = vld [vmem:[%s1 + $0x38] sm:$0xff]
  %v31 = vld [vmem:[%s2] sm:$0xff]
  %v32 = vld [vmem:[%s2 + $0x8] sm:$0xff]
  %v33 = vld [vmem:[%s2 + $0x10] sm:$0xff]
  %v34 = vld [vmem:[%s2 + $0x18] sm:$0xff]
  %v35 = vld [vmem:[%s3] sm:$0x1]
  %v37 = vperm.slane %v35, 0
  %vm39 = vcmask 261120
  %v41 = vsel %vm39, %v23, 0
  %v44 = vsel %vm39, %v24, 0
  %v47 = vsel %vm39, %v25, 0
  %v50 = vsel %vm39, %v26, 0
  %v53 = vsel %vm39, %v27, 0
  %v56 = vsel %vm39, %v28, 0
  %v59 = vsel %vm39, %v29, 0
  %v62 = vsel %vm39, %v30, 0
  %64 = vmatpush.msra.mxu0 0.0
  %65 = vmatpush.msra.mxu0 0.0
  %66 = vmatpush.msra.mxu0 0.0
  %67 = vmatpush.msra.mxu0 0.0
  %68 = vmatpush.msra.mxu0 0.0
  %69 = vmatpush.msra.mxu0 0.0
  %70 = vmatpush.msra.mxu0 0.0
  %71 = vmatpush.msra.mxu0 0.0
  %72 = vmatpush.msra.mxu0 0.0
  %73 = vmatpush.msra.mxu0 0.0
  %74 = vmatpush.msra.mxu0 0.0
  %75 = vmatpush.msra.mxu0 0.0
  %76 = vmatpush.msra.mxu0 %v34
  %77 = vmatpush.msra.mxu0 %v33
  %78 = vmatpush.msra.mxu0 %v32
  %79 = vmatpush.msra.mxu0 %v31
  %80 = vmatmul.f32.gmra.mxu0 %v41
  %v81 = vpop.f32.mrf.mxu0
  %v82 = vadd.f32 %v37, %v81
  %83 = vmatmul.f32.gmra.mxu0 %v44
  %v84 = vpop.f32.mrf.mxu0
  %v85 = vadd.f32 %v37, %v84
  %86 = vmatmul.f32.gmra.mxu0 %v47
  %v87 = vpop.f32.mrf.mxu0
  %v88 = vadd.f32 %v37, %v87
  %89 = vmatmul.f32.gmra.mxu0 %v50
  %v90 = vpop.f32.mrf.mxu0
  %v91 = vadd.f32 %v37, %v90
  %92 = vmatmul.f32.gmra.mxu0 %v53
  %v93 = vpop.f32.mrf.mxu0
  %v94 = vadd.f32 %v37, %v93
  %95 = vmatmul.f32.gmra.mxu0 %v56
  %v96 = vpop.f32.mrf.mxu0
  %v97 = vadd.f32 %v37, %v96
  %98 = vmatmul.f32.gmra.mxu0 %v59
  %v99 = vpop.f32.mrf.mxu0
  %v100 = vadd.f32 %v37, %v99
  %101 = vmatmul.f32.gmra.mxu0 %v62
  %v102 = vpop.f32.mrf.mxu0
  %v103 = vadd.f32 %v37, %v102
  %104 = vdwg.mxu0
  %v105 = vmax.f32 %v82, 0.0
  %v106 = vmax.f32 %v85, 0.0
  %v107 = vmax.f32 %v88, 0.0
  %v108 = vmax.f32 %v91, 0.0
  %v109 = vmax.f32 %v94, 0.0
  %v110 = vmax.f32 %v97, 0.0
  %v111 = vmax.f32 %v100, 0.0
  %v112 = vmax.f32 %v103, 0.0
  %v113 = vld [vmem:[%s5] sm:$0xff]
  %v114 = vld [vmem:[%s5 + $0x8] sm:$0xff]
  %v115 = vld [vmem:[%s5 + $0x10] sm:$0xff]
  %v116 = vld [vmem:[%s5 + $0x18] sm:$0xff]
  %v117 = vld [vmem:[%s5 + $0x20] sm:$0xff]
  %v118 = vld [vmem:[%s5 + $0x28] sm:$0xff]
  %v119 = vld [vmem:[%s5 + $0x30] sm:$0xff]
  %v120 = vld [vmem:[%s5 + $0x38] sm:$0xff]
  %v121 = vld [vmem:[%s0] sm:$0xff]
  %v122 = vld [vmem:[%s0 + $0x8] sm:$0xff]
  %v123 = vld [vmem:[%s0 + $0x10] sm:$0xff]
  %v124 = vld [vmem:[%s0 + $0x18] sm:$0xff]
  %v125 = vld [vmem:[%s0 + $0x20] sm:$0xff]
  %v126 = vld [vmem:[%s0 + $0x28] sm:$0xff]
  %v127 = vld [vmem:[%s0 + $0x30] sm:$0xff]
  %v128 = vld [vmem:[%s0 + $0x38] sm:$0xff]
  %v129 = vld [vmem:[%s4] sm:$0xff]
  %v130 = vld [vmem:[%s4 + $0x8] sm:$0xff]
  %v131 = vld [vmem:[%s4 + $0x10] sm:$0xff]
  %v132 = vld [vmem:[%s4 + $0x18] sm:$0xff]
  %v133 = vld [vmem:[%s4 + $0x20] sm:$0xff]
  %v134 = vld [vmem:[%s4 + $0x28] sm:$0xff]
  %v135 = vld [vmem:[%s4 + $0x30] sm:$0xff]
  %v136 = vld [vmem:[%s4 + $0x38] sm:$0xff]
  %v137 = vld [vmem:[%s4 + $0x40] sm:$0xff]
  %v138 = vld [vmem:[%s4 + $0x48] sm:$0xff]
  %v139 = vld [vmem:[%s4 + $0x50] sm:$0xff]
  %v140 = vld [vmem:[%s4 + $0x58] sm:$0xff]
  %v141 = vld [vmem:[%s4 + $0x60] sm:$0xff]
  %v142 = vld [vmem:[%s4 + $0x68] sm:$0xff]
  %v143 = vld [vmem:[%s4 + $0x70] sm:$0xff]
  %v144 = vld [vmem:[%s4 + $0x78] sm:$0xff]
  %145 = vmatpush.msra.mxu0 %v144
  %146 = vmatpush.msra.mxu0 %v143
  %147 = vmatpush.msra.mxu0 %v142
  %148 = vmatpush.msra.mxu0 %v141
  %149 = vmatpush.msra.mxu0 %v140
  %150 = vmatpush.msra.mxu0 %v139
  %151 = vmatpush.msra.mxu0 %v138
  %152 = vmatpush.msra.mxu0 %v137
  %153 = vmatpush.msra.mxu0 %v136
  %154 = vmatpush.msra.mxu0 %v135
  %155 = vmatpush.msra.mxu0 %v134
  %156 = vmatpush.msra.mxu0 %v133
  %157 = vmatpush.msra.mxu0 %v132
  %158 = vmatpush.msra.mxu0 %v131
  %159 = vmatpush.msra.mxu0 %v130
  %160 = vmatpush.msra.mxu0 %v129
  %161 = vmatmul.f32.gmra.mxu0 %v121
  %v162 = vpop.f32.mrf.mxu0
  %v163 = vadd.f32 0.0, %v162
  %164 = vmatmul.f32.gmra.mxu0 %v122
  %v165 = vpop.f32.mrf.mxu0
  %v166 = vadd.f32 0.0, %v165
  %167 = vmatmul.f32.gmra.mxu0 %v123
  %v168 = vpop.f32.mrf.mxu0
  %v169 = vadd.f32 0.0, %v168
  %170 = vmatmul.f32.gmra.mxu0 %v124
  %v171 = vpop.f32.mrf.mxu0
  %v172 = vadd.f32 0.0, %v171
  %173 = vmatmul.f32.gmra.mxu0 %v125
  %v174 = vpop.f32.mrf.mxu0
  %v175 = vadd.f32 0.0, %v174
  %176 = vmatmul.f32.gmra.mxu0 %v126
  %v177 = vpop.f32.mrf.mxu0
  %v178 = vadd.f32 0.0, %v177
  %179 = vmatmul.f32.gmra.mxu0 %v127
  %v180 = vpop.f32.mrf.mxu0
  %v181 = vadd.f32 0.0, %v180
  %182 = vmatmul.f32.gmra.mxu0 %v128
  %v183 = vpop.f32.mrf.mxu0
  %v184 = vadd.f32 0.0, %v183
  %185 = vdwg.mxu0
  %vm186 = vcmask 523264
  %v188 = vsel %vm186, %v105, 0
  %v191 = vsel %vm186, %v106, 0
  %v194 = vsel %vm186, %v107, 0
  %v197 = vsel %vm186, %v108, 0
  %v200 = vsel %vm186, %v109, 0
  %v203 = vsel %vm186, %v110, 0
  %v206 = vsel %vm186, %v111, 0
  %v209 = vsel %vm186, %v112, 0
  %211 = vmatpush.msra.mxu0 0.0
  %212 = vmatpush.msra.mxu0 0.0
  %213 = vmatpush.msra.mxu0 0.0
  %214 = vmatpush.msra.mxu0 0.0
  %215 = vmatpush.msra.mxu0 0.0
  %216 = vmatpush.msra.mxu0 0.0
  %217 = vmatpush.msra.mxu0 0.0
  %218 = vmatpush.msra.mxu0 0.0
  %219 = vmatpush.msra.mxu0 %v120
  %220 = vmatpush.msra.mxu0 %v119
  %221 = vmatpush.msra.mxu0 %v118
  %222 = vmatpush.msra.mxu0 %v117
  %223 = vmatpush.msra.mxu0 %v116
  %224 = vmatpush.msra.mxu0 %v115
  %225 = vmatpush.msra.mxu0 %v114
  %226 = vmatpush.msra.mxu0 %v113
  %227 = vmatmul.f32.gmra.mxu0 %v188
  %v228 = vpop.f32.mrf.mxu0
  %v229 = vadd.f32 %v163, %v228
  %230 = vmatmul.f32.gmra.mxu0 %v191
  %v231 = vpop.f32.mrf.mxu0
  %v232 = vadd.f32 %v166, %v231
  %233 = vmatmul.f32.gmra.mxu0 %v194
  %v234 = vpop.f32.mrf.mxu0
  %v235 = vadd.f32 %v169, %v234
  %236 = vmatmul.f32.gmra.mxu0 %v197
  %v237 = vpop.f32.mrf.mxu0
  %v238 = vadd.f32 %v172, %v237
  %239 = vmatmul.f32.gmra.mxu0 %v200
  %v240 = vpop.f32.mrf.mxu0
  %v241 = vadd.f32 %v175, %v240
  %242 = vmatmul.f32.gmra.mxu0 %v203
  %v243 = vpop.f32.mrf.mxu0
  %v244 = vadd.f32 %v178, %v243
  %245 = vmatmul.f32.gmra.mxu0 %v206
  %v246 = vpop.f32.mrf.mxu0
  %v247 = vadd.f32 %v181, %v246
  %248 = vmatmul.f32.gmra.mxu0 %v209
  %v249 = vpop.f32.mrf.mxu0
  %v250 = vadd.f32 %v184, %v249
  %251 = vdwg.mxu0
  %s252 = scalar_lea.vmem %s0, 64
  %v253 = vld [vmem:[%s252] sm:$0xff]
  %v254 = vld [vmem:[%s252 + $0x8] sm:$0xff]
  %v255 = vld [vmem:[%s252 + $0x10] sm:$0xff]
  %v256 = vld [vmem:[%s252 + $0x18] sm:$0xff]
  %v257 = vld [vmem:[%s252 + $0x20] sm:$0xff]
  %v258 = vld [vmem:[%s252 + $0x28] sm:$0xff]
  %v259 = vld [vmem:[%s252 + $0x30] sm:$0xff]
  %v260 = vld [vmem:[%s252 + $0x38] sm:$0xff]
  %s261 = scalar_lea.vmem %s4, 128
  %v262 = vld [vmem:[%s261] sm:$0xff]
  %v263 = vld [vmem:[%s261 + $0x8] sm:$0xff]
  %v264 = vld [vmem:[%s261 + $0x10] sm:$0xff]
  %v265 = vld [vmem:[%s261 + $0x18] sm:$0xff]
  %v266 = vld [vmem:[%s261 + $0x20] sm:$0xff]
  %v267 = vld [vmem:[%s261 + $0x28] sm:$0xff]
  %v268 = vld [vmem:[%s261 + $0x30] sm:$0xff]
  %v269 = vld [vmem:[%s261 + $0x38] sm:$0xff]
  %v270 = vld [vmem:[%s261 + $0x40] sm:$0xff]
  %v271 = vld [vmem:[%s261 + $0x48] sm:$0xff]
  %v272 = vld [vmem:[%s261 + $0x50] sm:$0xff]
  %v273 = vld [vmem:[%s261 + $0x58] sm:$0xff]
  %v274 = vld [vmem:[%s261 + $0x60] sm:$0xff]
  %v275 = vld [vmem:[%s261 + $0x68] sm:$0xff]
  %v276 = vld [vmem:[%s261 + $0x70] sm:$0xff]
  %v277 = vld [vmem:[%s261 + $0x78] sm:$0xff]
  %278 = vmatpush.msra.mxu0 %v277
  %279 = vmatpush.msra.mxu0 %v276
  %280 = vmatpush.msra.mxu0 %v275
  %281 = vmatpush.msra.mxu0 %v274
  %282 = vmatpush.msra.mxu0 %v273
  %283 = vmatpush.msra.mxu0 %v272
  %284 = vmatpush.msra.mxu0 %v271
  %285 = vmatpush.msra.mxu0 %v270
  %286 = vmatpush.msra.mxu0 %v269
  %287 = vmatpush.msra.mxu0 %v268
  %288 = vmatpush.msra.mxu0 %v267
  %289 = vmatpush.msra.mxu0 %v266
  %290 = vmatpush.msra.mxu0 %v265
  %291 = vmatpush.msra.mxu0 %v264
  %292 = vmatpush.msra.mxu0 %v263
  %293 = vmatpush.msra.mxu0 %v262
  %294 = vmatmul.f32.gmra.mxu0 %v253
  %v295 = vpop.f32.mrf.mxu0
  %v296 = vadd.f32 0.0, %v295
  %297 = vmatmul.f32.gmra.mxu0 %v254
  %v298 = vpop.f32.mrf.mxu0
  %v299 = vadd.f32 0.0, %v298
  %300 = vmatmul.f32.gmra.mxu0 %v255
  %v301 = vpop.f32.mrf.mxu0
  %v302 = vadd.f32 0.0, %v301
  %303 = vmatmul.f32.gmra.mxu0 %v256
  %v304 = vpop.f32.mrf.mxu0
  %v305 = vadd.f32 0.0, %v304
  %306 = vmatmul.f32.gmra.mxu0 %v257
  %v307 = vpop.f32.mrf.mxu0
  %v308 = vadd.f32 0.0, %v307
  %309 = vmatmul.f32.gmra.mxu0 %v258
  %v310 = vpop.f32.mrf.mxu0
  %v311 = vadd.f32 0.0, %v310
  %312 = vmatmul.f32.gmra.mxu0 %v259
  %v313 = vpop.f32.mrf.mxu0
  %v314 = vadd.f32 0.0, %v313
  %315 = vmatmul.f32.gmra.mxu0 %v260
  %v316 = vpop.f32.mrf.mxu0
  %v317 = vadd.f32 0.0, %v316
  %318 = vdwg.mxu0
  %v319 = vadd.f32 %v229, %v296
  %v320 = vadd.f32 %v232, %v299
  %v321 = vadd.f32 %v235, %v302
  %v322 = vadd.f32 %v238, %v305
  %v323 = vadd.f32 %v241, %v308
  %v324 = vadd.f32 %v244, %v311
  %v325 = vadd.f32 %v247, %v314
  %v326 = vadd.f32 %v250, %v317
  %s327 = scalar_lea.vmem %s0, 128
  %v328 = vld [vmem:[%s327] sm:$0xff]
  %v329 = vld [vmem:[%s327 + $0x8] sm:$0xff]
  %v330 = vld [vmem:[%s327 + $0x10] sm:$0xff]
  %v331 = vld [vmem:[%s327 + $0x18] sm:$0xff]
  %v332 = vld [vmem:[%s327 + $0x20] sm:$0xff]
  %v333 = vld [vmem:[%s327 + $0x28] sm:$0xff]
  %v334 = vld [vmem:[%s327 + $0x30] sm:$0xff]
  %v335 = vld [vmem:[%s327 + $0x38] sm:$0xff]
  %s336 = scalar_lea.vmem %s4, 256
  %v337 = vld [vmem:[%s336] sm:$0xff]
  %v338 = vld [vmem:[%s336 + $0x8] sm:$0xff]
  %v339 = vld [vmem:[%s336 + $0x10] sm:$0xff]
  %v340 = vld [vmem:[%s336 + $0x18] sm:$0xff]
  %v341 = vld [vmem:[%s336 + $0x20] sm:$0xff]
  %v342 = vld [vmem:[%s336 + $0x28] sm:$0xff]
  %v343 = vld [vmem:[%s336 + $0x30] sm:$0xff]
  %v344 = vld [vmem:[%s336 + $0x38] sm:$0xff]
  %v345 = vld [vmem:[%s336 + $0x40] sm:$0xff]
  %v346 = vld [vmem:[%s336 + $0x48] sm:$0xff]
  %v347 = vld [vmem:[%s336 + $0x50] sm:$0xff]
  %v348 = vld [vmem:[%s336 + $0x58] sm:$0xff]
  %v349 = vld [vmem:[%s336 + $0x60] sm:$0xff]
  %v350 = vld [vmem:[%s336 + $0x68] sm:$0xff]
  %v351 = vld [vmem:[%s336 + $0x70] sm:$0xff]
  %v352 = vld [vmem:[%s336 + $0x78] sm:$0xff]
  %353 = vmatpush.msra.mxu0 %v352
  %354 = vmatpush.msra.mxu0 %v351
  %355 = vmatpush.msra.mxu0 %v350
  %356 = vmatpush.msra.mxu0 %v349
  %357 = vmatpush.msra.mxu0 %v348
  %358 = vmatpush.msra.mxu0 %v347
  %359 = vmatpush.msra.mxu0 %v346
  %360 = vmatpush.msra.mxu0 %v345
  %361 = vmatpush.msra.mxu0 %v344
  %362 = vmatpush.msra.mxu0 %v343
  %363 = vmatpush.msra.mxu0 %v342
  %364 = vmatpush.msra.mxu0 %v341
  %365 = vmatpush.msra.mxu0 %v340
  %366 = vmatpush.msra.mxu0 %v339
  %367 = vmatpush.msra.mxu0 %v338
  %368 = vmatpush.msra.mxu0 %v337
  %369 = vmatmul.f32.gmra.mxu0 %v328
  %v370 = vpop.f32.mrf.mxu0
  %v371 = vadd.f32 0.0, %v370
  %372 = vmatmul.f32.gmra.mxu0 %v329
  %v373 = vpop.f32.mrf.mxu0
  %v374 = vadd.f32 0.0, %v373
  %375 = vmatmul.f32.gmra.mxu0 %v330
  %v376 = vpop.f32.mrf.mxu0
  %v377 = vadd.f32 0.0, %v376
  %378 = vmatmul.f32.gmra.mxu0 %v331
  %v379 = vpop.f32.mrf.mxu0
  %v380 = vadd.f32 0.0, %v379
  %381 = vmatmul.f32.gmra.mxu0 %v332
  %v382 = vpop.f32.mrf.mxu0
  %v383 = vadd.f32 0.0, %v382
  %384 = vmatmul.f32.gmra.mxu0 %v333
  %v385 = vpop.f32.mrf.mxu0
  %v386 = vadd.f32 0.0, %v385
  %387 = vmatmul.f32.gmra.mxu0 %v334
  %v388 = vpop.f32.mrf.mxu0
  %v389 = vadd.f32 0.0, %v388
  %390 = vmatmul.f32.gmra.mxu0 %v335
  %v391 = vpop.f32.mrf.mxu0
  %v392 = vadd.f32 0.0, %v391
  %393 = vdwg.mxu0
  %v394 = vadd.f32 %v319, %v371
  %v395 = vadd.f32 %v320, %v374
  %v396 = vadd.f32 %v321, %v377
  %v397 = vadd.f32 %v322, %v380
  %v398 = vadd.f32 %v323, %v383
  %v399 = vadd.f32 %v324, %v386
  %v400 = vadd.f32 %v325, %v389
  %v401 = vadd.f32 %v326, %v392
  %s402 = scalar_lea.vmem %s0, 192
  %v403 = vld [vmem:[%s402] sm:$0xff]
  %v404 = vld [vmem:[%s402 + $0x8] sm:$0xff]
  %v405 = vld [vmem:[%s402 + $0x10] sm:$0xff]
  %v406 = vld [vmem:[%s402 + $0x18] sm:$0xff]
  %v407 = vld [vmem:[%s402 + $0x20] sm:$0xff]
  %v408 = vld [vmem:[%s402 + $0x28] sm:$0xff]
  %v409 = vld [vmem:[%s402 + $0x30] sm:$0xff]
  %v410 = vld [vmem:[%s402 + $0x38] sm:$0xff]
  %s411 = scalar_lea.vmem %s4, 384
  %v412 = vld [vmem:[%s411] sm:$0xff]
  %v413 = vld [vmem:[%s411 + $0x8] sm:$0xff]
  %v414 = vld [vmem:[%s411 + $0x10] sm:$0xff]
  %v415 = vld [vmem:[%s411 + $0x18] sm:$0xff]
  %v416 = vld [vmem:[%s411 + $0x20] sm:$0xff]
  %v417 = vld [vmem:[%s411 + $0x28] sm:$0xff]
  %v418 = vld [vmem:[%s411 + $0x30] sm:$0xff]
  %v419 = vld [vmem:[%s411 + $0x38] sm:$0xff]
  %v420 = vld [vmem:[%s411 + $0x40] sm:$0xff]
  %v421 = vld [vmem:[%s411 + $0x48] sm:$0xff]
  %v422 = vld [vmem:[%s411 + $0x50] sm:$0xff]
  %v423 = vld [vmem:[%s411 + $0x58] sm:$0xff]
  %v424 = vld [vmem:[%s411 + $0x60] sm:$0xff]
  %v425 = vld [vmem:[%s411 + $0x68] sm:$0xff]
  %v426 = vld [vmem:[%s411 + $0x70] sm:$0xff]
  %v427 = vld [vmem:[%s411 + $0x78] sm:$0xff]
  %428 = vmatpush.msra.mxu0 %v427
  %429 = vmatpush.msra.mxu0 %v426
  %430 = vmatpush.msra.mxu0 %v425
  %431 = vmatpush.msra.mxu0 %v424
  %432 = vmatpush.msra.mxu0 %v423
  %433 = vmatpush.msra.mxu0 %v422
  %434 = vmatpush.msra.mxu0 %v421
  %435 = vmatpush.msra.mxu0 %v420
  %436 = vmatpush.msra.mxu0 %v419
  %437 = vmatpush.msra.mxu0 %v418
  %438 = vmatpush.msra.mxu0 %v417
  %439 = vmatpush.msra.mxu0 %v416
  %440 = vmatpush.msra.mxu0 %v415
  %441 = vmatpush.msra.mxu0 %v414
  %442 = vmatpush.msra.mxu0 %v413
  %443 = vmatpush.msra.mxu0 %v412
  %444 = vmatmul.f32.gmra.mxu0 %v403
  %v445 = vpop.f32.mrf.mxu0
  %v446 = vadd.f32 0.0, %v445
  %447 = vmatmul.f32.gmra.mxu0 %v404
  %v448 = vpop.f32.mrf.mxu0
  %v449 = vadd.f32 0.0, %v448
  %450 = vmatmul.f32.gmra.mxu0 %v405
  %v451 = vpop.f32.mrf.mxu0
  %v452 = vadd.f32 0.0, %v451
  %453 = vmatmul.f32.gmra.mxu0 %v406
  %v454 = vpop.f32.mrf.mxu0
  %v455 = vadd.f32 0.0, %v454
  %456 = vmatmul.f32.gmra.mxu0 %v407
  %v457 = vpop.f32.mrf.mxu0
  %v458 = vadd.f32 0.0, %v457
  %459 = vmatmul.f32.gmra.mxu0 %v408
  %v460 = vpop.f32.mrf.mxu0
  %v461 = vadd.f32 0.0, %v460
  %462 = vmatmul.f32.gmra.mxu0 %v409
  %v463 = vpop.f32.mrf.mxu0
  %v464 = vadd.f32 0.0, %v463
  %465 = vmatmul.f32.gmra.mxu0 %v410
  %v466 = vpop.f32.mrf.mxu0
  %v467 = vadd.f32 0.0, %v466
  %468 = vdwg.mxu0
  %v469 = vadd.f32 %v394, %v446
  %v470 = vadd.f32 %v395, %v449
  %v471 = vadd.f32 %v396, %v452
  %v472 = vadd.f32 %v397, %v455
  %v473 = vadd.f32 %v398, %v458
  %v474 = vadd.f32 %v399, %v461
  %v475 = vadd.f32 %v400, %v464
  %v476 = vadd.f32 %v401, %v467
  %s477 = scalar_lea.vmem %s0, 256
  %v478 = vld [vmem:[%s477] sm:$0xff]
  %v479 = vld [vmem:[%s477 + $0x8] sm:$0xff]
  %v480 = vld [vmem:[%s477 + $0x10] sm:$0xff]
  %v481 = vld [vmem:[%s477 + $0x18] sm:$0xff]
  %v482 = vld [vmem:[%s477 + $0x20] sm:$0xff]
  %v483 = vld [vmem:[%s477 + $0x28] sm:$0xff]
  %v484 = vld [vmem:[%s477 + $0x30] sm:$0xff]
  %v485 = vld [vmem:[%s477 + $0x38] sm:$0xff]
  %s486 = scalar_lea.vmem %s4, 512
  %v487 = vld [vmem:[%s486] sm:$0xff]
  %v488 = vld [vmem:[%s486 + $0x8] sm:$0xff]
  %v489 = vld [vmem:[%s486 + $0x10] sm:$0xff]
  %v490 = vld [vmem:[%s486 + $0x18] sm:$0xff]
  %v491 = vld [vmem:[%s486 + $0x20] sm:$0xff]
  %v492 = vld [vmem:[%s486 + $0x28] sm:$0xff]
  %v493 = vld [vmem:[%s486 + $0x30] sm:$0xff]
  %v494 = vld [vmem:[%s486 + $0x38] sm:$0xff]
  %v495 = vld [vmem:[%s486 + $0x40] sm:$0xff]
  %v496 = vld [vmem:[%s486 + $0x48] sm:$0xff]
  %v497 = vld [vmem:[%s486 + $0x50] sm:$0xff]
  %v498 = vld [vmem:[%s486 + $0x58] sm:$0xff]
  %v499 = vld [vmem:[%s486 + $0x60] sm:$0xff]
  %v500 = vld [vmem:[%s486 + $0x68] sm:$0xff]
  %v501 = vld [vmem:[%s486 + $0x70] sm:$0xff]
  %v502 = vld [vmem:[%s486 + $0x78] sm:$0xff]
  %503 = vmatpush.msra.mxu0 %v502
  %504 = vmatpush.msra.mxu0 %v501
  %505 = vmatpush.msra.mxu0 %v500
  %506 = vmatpush.msra.mxu0 %v499
  %507 = vmatpush.msra.mxu0 %v498
  %508 = vmatpush.msra.mxu0 %v497
  %509 = vmatpush.msra.mxu0 %v496
  %510 = vmatpush.msra.mxu0 %v495
  %511 = vmatpush.msra.mxu0 %v494
  %512 = vmatpush.msra.mxu0 %v493
  %513 = vmatpush.msra.mxu0 %v492
  %514 = vmatpush.msra.mxu0 %v491
  %515 = vmatpush.msra.mxu0 %v490
  %516 = vmatpush.msra.mxu0 %v489
  %517 = vmatpush.msra.mxu0 %v488
  %518 = vmatpush.msra.mxu0 %v487
  %519 = vmatmul.f32.gmra.mxu0 %v478
  %v520 = vpop.f32.mrf.mxu0
  %v521 = vadd.f32 0.0, %v520
  %522 = vmatmul.f32.gmra.mxu0 %v479
  %v523 = vpop.f32.mrf.mxu0
  %v524 = vadd.f32 0.0, %v523
  %525 = vmatmul.f32.gmra.mxu0 %v480
  %v526 = vpop.f32.mrf.mxu0
  %v527 = vadd.f32 0.0, %v526
  %528 = vmatmul.f32.gmra.mxu0 %v481
  %v529 = vpop.f32.mrf.mxu0
  %v530 = vadd.f32 0.0, %v529
  %531 = vmatmul.f32.gmra.mxu0 %v482
  %v532 = vpop.f32.mrf.mxu0
  %v533 = vadd.f32 0.0, %v532
  %534 = vmatmul.f32.gmra.mxu0 %v483
  %v535 = vpop.f32.mrf.mxu0
  %v536 = vadd.f32 0.0, %v535
  %537 = vmatmul.f32.gmra.mxu0 %v484
  %v538 = vpop.f32.mrf.mxu0
  %v539 = vadd.f32 0.0, %v538
  %540 = vmatmul.f32.gmra.mxu0 %v485
  %v541 = vpop.f32.mrf.mxu0
  %v542 = vadd.f32 0.0, %v541
  %543 = vdwg.mxu0
  %v544 = vadd.f32 %v469, %v521
  %v545 = vadd.f32 %v470, %v524
  %v546 = vadd.f32 %v471, %v527
  %v547 = vadd.f32 %v472, %v530
  %v548 = vadd.f32 %v473, %v533
  %v549 = vadd.f32 %v474, %v536
  %v550 = vadd.f32 %v475, %v539
  %v551 = vadd.f32 %v476, %v542
  %552 = vst [vmem:[%s6] sm:$0xff] %v544
  %553 = vst [vmem:[%s6 + $0x8] sm:$0xff] %v545
  %554 = vst [vmem:[%s6 + $0x10] sm:$0xff] %v546
  %555 = vst [vmem:[%s6 + $0x18] sm:$0xff] %v547
  %556 = vst [vmem:[%s6 + $0x20] sm:$0xff] %v548
  %557 = vst [vmem:[%s6 + $0x28] sm:$0xff] %v549
  %558 = vst [vmem:[%s6 + $0x30] sm:$0xff] %v550
  %559 = vst [vmem:[%s6 + $0x38] sm:$0xff] %v551
  // Predicated region
  $region26: #{graph_matrix_completion_forward.7} parent=0 // pred_check
    _
  $region27: #{graph_matrix_completion_forward.7} parent=0 // pred_check_branch
    %561 = sbr.rel (0) target = $region29
  $region28: #{graph_matrix_completion_forward.7} parent=0 // pred_region
    _
  $region29: #{graph_matrix_completion_forward.7} parent=0 // pred_fallthru
    _
  // Predicated region
  $region30: #{graph_matrix_completion_forward.7} parent=0 // pred_check
    _
  $region31: #{graph_matrix_completion_forward.7} parent=0 // pred_check_branch
    %563 = sbr.rel (0) target = $region33
  $region32: #{graph_matrix_completion_forward.7} parent=0 // pred_region
    _
  $region33: #{graph_matrix_completion_forward.7} parent=0 // pred_fallthru
    _

// kernel: graph_matrix_completion_forward.6
$region0: #{graph_matrix_completion_forward.6}
  #allocation0 [shape = 'u32[]', space=smem, size = 0x4, offset = 0x4, fixed_abs, tag = 'smem constant byte address 0x4 - core index']
  #allocation1 [shape = 'u32[72,128]{1,0:T(1,128)}', space=vmem, size = 0x9000, scoped, tag = 'internal scratch']
  #allocation2 [shape = 'f32[64,128]{1,0:T(8,128)}', space=vmem, size = 0x8000, scoped, tag = 'scratch operand']
  %s0 = inlined_call_operand.vmem [shape: f32[64,64], index: 0, kind: input, shape index: {}]
  %s1 = inlined_call_operand.vmem [shape: f32[5,64,128], index: 1, kind: input, shape index: {}]
  %s2 = inlined_call_operand.vmem [shape: f32[5,48,64], index: 2, kind: input, shape index: {}]
  %s3 = inlined_call_operand.vmem [shape: f32[5,48,128], index: 3, kind: output, shape index: {}]
  %s4 = sld [smem:[#allocation0]]
  $region49: #{graph_matrix_completion_forward.6} parent=0
    _
  %s6 = ssub.s32 1, %s4
  %s7 = scalar_select 0, %s6, %s4
  loop: start=0, step=1, limit=7
  $region2: #{graph_matrix_completion_forward.6} parent=0 // loop_pre_header
    _
  $region3: #{graph_matrix_completion_forward.6} parent=0 // loop_header
    %s9 = sphi 0, %s13
    %p10 = scmp.ge.s32.totalorder %s9, 7
    %s16 = sphi 0, %s28
    %s17 = sphi 0, %s24
    %s18 = sphi 0, %s16
    %s19 = sphi 0, %s17
    %s20 = sphi 0, %s18
    %s21 = sphi 0, %s19
    %s29 = sphi 0, %s29
    %s31 = sphi 0, %s29
    %s32 = sphi 0, %s31
    %s46 = sphi 0, %s32
    %s52 = sphi 0, %s54
    %s55 = sphi 0, %s52
    %s56 = sphi 0, %s55
    %s72 = sphi 0, %s56
    %s80 = sphi 0, %s82
    %s83 = sphi 0, %s80
    %s84 = sphi 0, %s83
    %s100 = sphi 0, %s84
    %s108 = sphi 0, %s110
    %s111 = sphi 0, %s108
    %s112 = sphi 0, %s111
    %s128 = sphi 0, %s112
  $region4: #{graph_matrix_completion_forward.6} parent=0 // loop_header_branch
    %12 = sbr.rel (%p10) target = $region8
  $region5: #{graph_matrix_completion_forward.6} parent=0 // loop_body
    %s14 = ssub.s32 %s9, 1
    %s15 = ssub.s32 %s9, 2
    %s22 = sadd.s32 1, %s17
    %p23 = scmp.ge.s32.totalorder %s22, 1
    %s24 = scalar_select %p23, 0, %s22
    %s25 = sadd.s32 1, %s16
    %s26 = scalar_select %p23, %s25, %s16
    %p27 = scmp.ge.s32.totalorder %s26, 5
    %s28 = scalar_select %p27, 0, %s26
    %s30 = sadd.s32 %s29, 1
    %p33 = scmp.eq.s32.totalorder %s9, 4
    %p34 = scmp.ne.s32.totalorder %s29, %s31
    %p35 = scmp.eq.s32.totalorder %s9, 0
    %p36 = por %p34, %p35
    %p37 = scmp.ne.s32.totalorder %s29, %s31
    %p38 = scmp.eq.s32.totalorder %s14, 4
    %p39 = por %p37, %p38
    %p40 = scmp.ne.s32.totalorder %s31, %s32
    %p41 = scmp.eq.s32.totalorder %s14, 0
    %p42 = por %p40, %p41
    %p43 = scmp.ne.s32.totalorder %s31, %s32
    %p44 = scmp.eq.s32.totalorder %s15, 4
    %p45 = por %p43, %p44
    %p47 = scmp.ne.s32.totalorder %s32, %s46
    %p48 = scmp.eq.s32.totalorder %s15, 0
    %p49 = por %p47, %p48
    %s50 = ssub.s32 %s16, %s28
    %p51 = scmp.eq.s32.totalorder %s50, 0
    %s53 = sadd.s32 %s52, 1
    %s54 = scalar_select %p51, %s52, %s53
    %p57 = pneg %p51
    %p58 = scmp.eq.s32.totalorder %s9, 4
    %p59 = por %p57, %p58
    %p60 = scmp.ne.s32.totalorder %s52, %s55
    %p61 = scmp.eq.s32.totalorder %s9, 0
    %p62 = por %p60, %p61
    %p63 = scmp.ne.s32.totalorder %s52, %s55
    %p64 = scmp.eq.s32.totalorder %s14, 4
    %p65 = por %p63, %p64
    %p66 = scmp.ne.s32.totalorder %s55, %s56
    %p67 = scmp.eq.s32.totalorder %s14, 0
    %p68 = por %p66, %p67
    %p69 = scmp.ne.s32.totalorder %s55, %s56
    %p70 = scmp.eq.s32.totalorder %s15, 4
    %p71 = por %p69, %p70
    %p73 = scmp.ne.s32.totalorder %s56, %s72
    %p74 = scmp.eq.s32.totalorder %s15, 0
    %p75 = por %p73, %p74
    %s76 = ssub.s32 %s16, %s28
    %s77 = ssub.s32 %s17, %s24
    %s78 = sor.u32 %s76, %s77
    %p79 = scmp.eq.s32.totalorder %s78, 0
    %s81 = sadd.s32 %s80, 1
    %s82 = scalar_select %p79, %s80, %s81
    %p85 = pneg %p79
    %p86 = scmp.eq.s32.totalorder %s9, 4
    %p87 = por %p85, %p86
    %p88 = scmp.ne.s32.totalorder %s80, %s83
    %p89 = scmp.eq.s32.totalorder %s9, 0
    %p90 = por %p88, %p89
    %p91 = scmp.ne.s32.totalorder %s80, %s83
    %p92 = scmp.eq.s32.totalorder %s14, 4
    %p93 = por %p91, %p92
    %p94 = scmp.ne.s32.totalorder %s83, %s84
    %p95 = scmp.eq.s32.totalorder %s14, 0
    %p96 = por %p94, %p95
    %p97 = scmp.ne.s32.totalorder %s83, %s84
    %p98 = scmp.eq.s32.totalorder %s15, 4
    %p99 = por %p97, %p98
    %p101 = scmp.ne.s32.totalorder %s84, %s100
    %p102 = scmp.eq.s32.totalorder %s15, 0
    %p103 = por %p101, %p102
    %s104 = ssub.s32 %s16, %s28
    %s105 = ssub.s32 %s17, %s24
    %s106 = sor.u32 %s104, %s105
    %p107 = scmp.eq.s32.totalorder %s106, 0
    %s109 = sadd.s32 %s108, 1
    %s110 = scalar_select %p107, %s108, %s109
    %p113 = pneg %p107
    %p114 = scmp.eq.s32.totalorder %s9, 4
    %p115 = por %p113, %p114
    %p116 = scmp.ne.s32.totalorder %s108, %s111
    %p117 = scmp.eq.s32.totalorder %s9, 0
    %p118 = por %p116, %p117
    %p119 = scmp.ne.s32.totalorder %s108, %s111
    %p120 = scmp.eq.s32.totalorder %s14, 4
    %p121 = por %p119, %p120
    %p122 = scmp.ne.s32.totalorder %s111, %s112
    %p123 = scmp.eq.s32.totalorder %s14, 0
    %p124 = por %p122, %p123
    %p125 = scmp.ne.s32.totalorder %s111, %s112
    %p126 = scmp.eq.s32.totalorder %s15, 4
    %p127 = por %p125, %p126
    %p129 = scmp.ne.s32.totalorder %s112, %s128
    %p130 = scmp.eq.s32.totalorder %s15, 0
    %p131 = por %p129, %p130
    %p132 = scmp.le.s32.totalorder 1, %s9
    %p133 = scmp.lt.s32.totalorder %s9, 6
    %p134 = pnand %p132, %p133
    %p135 = pneg %p134
    // Predicated region
    $region9: #{graph_matrix_completion_forward.6} parent=5 // pred_check
      _
    $region10: #{graph_matrix_completion_forward.6} parent=5 // pred_check_branch
      %137 = sbr.rel (%p134) target = $region12
    $region11: #{graph_matrix_completion_forward.6} parent=5 // pred_region
      %s138 = ssub.s32 %s9, 1
      // Predicated region
      $region13: #{graph_matrix_completion_forward.6} parent=11 // pred_check
        %p139 = pneg %p42
      $region14: #{graph_matrix_completion_forward.6} parent=11 // pred_check_branch
        %141 = sbr.rel (%p139) target = $region16
      $region15: #{graph_matrix_completion_forward.6} parent=11 // pred_region
        _
      $region16: #{graph_matrix_completion_forward.6} parent=11 // pred_fallthru
        _
    $region12: #{graph_matrix_completion_forward.6} parent=5 // pred_fallthru
      _
    %p142 = scmp.lt.s32.totalorder %s9, 5
    // Predicated region
    $region17: #{graph_matrix_completion_forward.6} parent=5 // pred_check
      %p143 = pneg %p142
    $region18: #{graph_matrix_completion_forward.6} parent=5 // pred_check_branch
      %145 = sbr.rel (%p143) target = $region20
    $region19: #{graph_matrix_completion_forward.6} parent=5 // pred_region
      // Predicated region
      $region21: #{graph_matrix_completion_forward.6} parent=19 // pred_check
        %p146 = pneg %p62
      $region22: #{graph_matrix_completion_forward.6} parent=19 // pred_check_branch
        %148 = sbr.rel (%p146) target = $region24
      $region23: #{graph_matrix_completion_forward.6} parent=19 // pred_region
        %p149 = scmp.lt.s32.totalorder %s16, 4
        %s150 = scalar_select %p149, %s16, 4
        %s151 = smul.addr %s150, 8
        %s152 = smul.addr %s151, 8
        %s153 = scalar_lea.vmem %s1, %s152
      $region24: #{graph_matrix_completion_forward.6} parent=19 // pred_fallthru
        _
      // Predicated region
      $region25: #{graph_matrix_completion_forward.6} parent=19 // pred_check
        %p154 = pneg %p90
      $region26: #{graph_matrix_completion_forward.6} parent=19 // pred_check_branch
        %156 = sbr.rel (%p154) target = $region28
      $region27: #{graph_matrix_completion_forward.6} parent=19 // pred_region
        %s157 = smul.u32 6, %s17
        %p158 = scmp.lt.s32.totalorder %s16, 4
        %s159 = scalar_select %p158, %s16, 4
        %p160 = scmp.lt.s32.totalorder %s157, 5
        %s161 = scalar_select %p160, %s157, 5
        %s162 = smul.addr %s159, 6
        %s163 = sadd.s32 %s161, %s162
        %s164 = smul.addr %s163, 8
        %s165 = scalar_lea.vmem %s2, %s164
        %s166 = smul.u32 6, %s17
      $region28: #{graph_matrix_completion_forward.6} parent=19 // pred_fallthru
        _
    $region20: #{graph_matrix_completion_forward.6} parent=5 // pred_fallthru
      _
    %p167 = scmp.le.s32.totalorder 1, %s9
    %p168 = scmp.lt.s32.totalorder %s9, 6
    %p169 = pnand %p167, %p168
    %p170 = pneg %p169
    // Predicated region
    $region29: #{graph_matrix_completion_forward.6} parent=5 // pred_check
      _
    $region30: #{graph_matrix_completion_forward.6} parent=5 // pred_check_branch
      %172 = sbr.rel (%p169) target = $region32
    $region31: #{graph_matrix_completion_forward.6} parent=5 // pred_region
      %s173 = ssub.s32 %s9, 1
      %p174 = pneg %p42
      %p175 = pneg %p39
      %p176 = scmp.lt.s32.totalorder %s18, 4
      %s177 = scalar_select %p176, %s18, 4
      %s178 = smul.addr %s177, 8
      %s179 = smul.addr %s178, 8
      %s180 = scalar_lea.vmem %s1, %s179
      %p181 = pneg %p68
      %p182 = pneg %p65
      %s183 = smul.u32 6, %s19
      %p184 = scmp.lt.s32.totalorder %s18, 4
      %s185 = scalar_select %p184, %s18, 4
      %p186 = scmp.lt.s32.totalorder %s183, 5
      %s187 = scalar_select %p186, %s183, 5
      %s188 = smul.addr %s185, 6
      %s189 = sadd.s32 %s187, %s188
      %s190 = smul.addr %s189, 8
      %s191 = scalar_lea.vmem %s2, %s190
      %p192 = pneg %p96
      %p193 = pneg %p93
      %p194 = pneg %p124
      %p195 = pneg %p121
      %s196 = smul.u32 6, %s19
      %p197 = scmp.lt.s32.totalorder %s18, 4
      %s198 = scalar_select %p197, %s18, 4
      %p199 = scmp.lt.s32.totalorder %s196, 5
      %s200 = scalar_select %p199, %s196, 5
      %s201 = smul.addr %s198, 6
      %s202 = sadd.s32 %s200, %s201
      %s203 = smul.addr %s202, 8
      %s204 = scalar_lea.vmem %s3, %s203
      %p205 = scmp.lt.s32.totalorder %s18, 4
      %s206 = scalar_select %p205, %s18, 4
      %s207 = smul.addr %s206, 8
      %s208 = smul.addr %s207, 8
      %s209 = scalar_lea.vmem %s1, %s208
      %s210 = smul.u32 6, %s19
      %p211 = scmp.lt.s32.totalorder %s18, 4
      %s212 = scalar_select %p211, %s18, 4
      %p213 = scmp.lt.s32.totalorder %s210, 5
      %s214 = scalar_select %p213, %s210, 5
      %s215 = smul.addr %s212, 6
      %s216 = sadd.s32 %s214, %s215
      %s217 = smul.addr %s216, 8
      %s218 = scalar_lea.vmem %s2, %s217
      %s219 = smul.u32 6, %s19
      %s220 = smul.u32 6, %s19
      %p221 = scmp.lt.s32.totalorder %s18, 4
      %s222 = scalar_select %p221, %s18, 4
      %p223 = scmp.lt.s32.totalorder %s220, 5
      %s224 = scalar_select %p223, %s220, 5
      %s225 = smul.addr %s222, 6
      %s226 = sadd.s32 %s224, %s225
      %s227 = smul.addr %s226, 8
      %s228 = scalar_lea.vmem %s3, %s227
      %s229 = smul.u32 6, %s19
      %p230 = scmp.eq.s32.totalorder %s19, 0
      // Predicated region
      $region33: #{graph_matrix_completion_forward.6} parent=31 // pred_check
        %p231 = pneg %p230
      $region34: #{graph_matrix_completion_forward.6} parent=31 // pred_check_branch
        %233 = sbr.rel (%p231) target = $region36
      $region35: #{graph_matrix_completion_forward.6} parent=31 // pred_region
        %v234 = vld [vmem:[%s0] sm:$0xff]
        %v235 = vld [vmem:[%s0 + $0x8] sm:$0xff]
        %v236 = vld [vmem:[%s0 + $0x10] sm:$0xff]
        %v237 = vld [vmem:[%s0 + $0x18] sm:$0xff]
        %v238 = vld [vmem:[%s0 + $0x20] sm:$0xff]
        %v239 = vld [vmem:[%s0 + $0x28] sm:$0xff]
        %v240 = vld [vmem:[%s0 + $0x30] sm:$0xff]
        %v241 = vld [vmem:[%s0 + $0x38] sm:$0xff]
        %v242 = vld [vmem:[%s209] sm:$0xff]
        %v243 = vld [vmem:[%s209 + $0x8] sm:$0xff]
        %v244 = vld [vmem:[%s209 + $0x10] sm:$0xff]
        %v245 = vld [vmem:[%s209 + $0x18] sm:$0xff]
        %v246 = vld [vmem:[%s209 + $0x20] sm:$0xff]
        %v247 = vld [vmem:[%s209 + $0x28] sm:$0xff]
        %v248 = vld [vmem:[%s209 + $0x30] sm:$0xff]
        %v249 = vld [vmem:[%s209 + $0x38] sm:$0xff]
        %vm250 = vcmask 523264
        %v252 = vsel %vm250, %v234, 0
        %v255 = vsel %vm250, %v235, 0
        %v258 = vsel %vm250, %v236, 0
        %v261 = vsel %vm250, %v237, 0
        %v264 = vsel %vm250, %v238, 0
        %v267 = vsel %vm250, %v239, 0
        %v270 = vsel %vm250, %v240, 0
        %v273 = vsel %vm250, %v241, 0
        %275 = vmatpush.msra.mxu0 0.0
        %276 = vmatpush.msra.mxu0 0.0
        %277 = vmatpush.msra.mxu0 0.0
        %278 = vmatpush.msra.mxu0 0.0
        %279 = vmatpush.msra.mxu0 0.0
        %280 = vmatpush.msra.mxu0 0.0
        %281 = vmatpush.msra.mxu0 0.0
        %282 = vmatpush.msra.mxu0 0.0
        %283 = vmatpush.msra.mxu0 %v249
        %284 = vmatpush.msra.mxu0 %v248
        %285 = vmatpush.msra.mxu0 %v247
        %286 = vmatpush.msra.mxu0 %v246
        %287 = vmatpush.msra.mxu0 %v245
        %288 = vmatpush.msra.mxu0 %v244
        %289 = vmatpush.msra.mxu0 %v243
        %290 = vmatpush.msra.mxu0 %v242
        %291 = vmatmul.f32.gmra.mxu0 %v252
        %v292 = vpop.f32.mrf.mxu0
        %v293 = vadd.f32 0.0, %v292
        %294 = vmatmul.f32.gmra.mxu0 %v255
        %v295 = vpop.f32.mrf.mxu0
        %v296 = vadd.f32 0.0, %v295
        %297 = vmatmul.f32.gmra.mxu0 %v258
        %v298 = vpop.f32.mrf.mxu0
        %v299 = vadd.f32 0.0, %v298
        %300 = vmatmul.f32.gmra.mxu0 %v261
        %v301 = vpop.f32.mrf.mxu0
        %v302 = vadd.f32 0.0, %v301
        %303 = vmatmul.f32.gmra.mxu0 %v264
        %v304 = vpop.f32.mrf.mxu0
        %v305 = vadd.f32 0.0, %v304
        %306 = vmatmul.f32.gmra.mxu0 %v267
        %v307 = vpop.f32.mrf.mxu0
        %v308 = vadd.f32 0.0, %v307
        %309 = vmatmul.f32.gmra.mxu0 %v270
        %v310 = vpop.f32.mrf.mxu0
        %v311 = vadd.f32 0.0, %v310
        %312 = vmatmul.f32.gmra.mxu0 %v273
        %v313 = vpop.f32.mrf.mxu0
        %v314 = vadd.f32 0.0, %v313
        %315 = vdwg.mxu0
        %316 = vst [vmem:[#allocation2] sm:$0xff] %v293
        %317 = vst [vmem:[#allocation2 + $0x8] sm:$0xff] %v296
        %318 = vst [vmem:[#allocation2 + $0x10] sm:$0xff] %v299
        %319 = vst [vmem:[#allocation2 + $0x18] sm:$0xff] %v302
        %320 = vst [vmem:[#allocation2 + $0x20] sm:$0xff] %v305
        %321 = vst [vmem:[#allocation2 + $0x28] sm:$0xff] %v308
        %322 = vst [vmem:[#allocation2 + $0x30] sm:$0xff] %v311
        %323 = vst [vmem:[#allocation2 + $0x38] sm:$0xff] %v314
      $region36: #{graph_matrix_completion_forward.6} parent=31 // pred_fallthru
        _
      %v324 = vld [vmem:[%s218] sm:$0xff]
      %v325 = vld [vmem:[%s218 + $0x8] sm:$0xff]
      %v326 = vld [vmem:[%s218 + $0x10] sm:$0xff]
      %v327 = vld [vmem:[%s218 + $0x18] sm:$0xff]
      %v328 = vld [vmem:[%s218 + $0x20] sm:$0xff]
      %v329 = vld [vmem:[%s218 + $0x28] sm:$0xff]
      %v330 = vld [vmem:[#allocation2] sm:$0xff]
      %v331 = vld [vmem:[#allocation2 + $0x8] sm:$0xff]
      %v332 = vld [vmem:[#allocation2 + $0x10] sm:$0xff]
      %v333 = vld [vmem:[#allocation2 + $0x18] sm:$0xff]
      %v334 = vld [vmem:[#allocation2 + $0x20] sm:$0xff]
      %v335 = vld [vmem:[#allocation2 + $0x28] sm:$0xff]
      %v336 = vld [vmem:[#allocation2 + $0x30] sm:$0xff]
      %v337 = vld [vmem:[#allocation2 + $0x38] sm:$0xff]
      %vm338 = vcmask 523264
      %v340 = vsel %vm338, %v324, 0
      %v343 = vsel %vm338, %v325, 0
      %v346 = vsel %vm338, %v326, 0
      %v349 = vsel %vm338, %v327, 0
      %v352 = vsel %vm338, %v328, 0
      %v355 = vsel %vm338, %v329, 0
      %357 = vmatpush.msra.mxu0 0.0
      %358 = vmatpush.msra.mxu0 0.0
      %359 = vmatpush.msra.mxu0 0.0
      %360 = vmatpush.msra.mxu0 0.0
      %361 = vmatpush.msra.mxu0 0.0
      %362 = vmatpush.msra.mxu0 0.0
      %363 = vmatpush.msra.mxu0 0.0
      %364 = vmatpush.msra.mxu0 0.0
      %365 = vmatpush.msra.mxu0 %v337
      %366 = vmatpush.msra.mxu0 %v336
      %367 = vmatpush.msra.mxu0 %v335
      %368 = vmatpush.msra.mxu0 %v334
      %369 = vmatpush.msra.mxu0 %v333
      %370 = vmatpush.msra.mxu0 %v332
      %371 = vmatpush.msra.mxu0 %v331
      %372 = vmatpush.msra.mxu0 %v330
      %373 = vmatmul.f32.gmra.mxu0 %v340
      %v374 = vpop.f32.mrf.mxu0
      %v375 = vadd.f32 0.0, %v374
      %376 = vmatmul.f32.gmra.mxu0 %v343
      %v377 = vpop.f32.mrf.mxu0
      %v378 = vadd.f32 0.0, %v377
      %379 = vmatmul.f32.gmra.mxu0 %v346
      %v380 = vpop.f32.mrf.mxu0
      %v381 = vadd.f32 0.0, %v380
      %382 = vmatmul.f32.gmra.mxu0 %v349
      %v383 = vpop.f32.mrf.mxu0
      %v384 = vadd.f32 0.0, %v383
      %385 = vmatmul.f32.gmra.mxu0 %v352
      %v386 = vpop.f32.mrf.mxu0
      %v387 = vadd.f32 0.0, %v386
      %388 = vmatmul.f32.gmra.mxu0 %v355
      %v389 = vpop.f32.mrf.mxu0
      %v390 = vadd.f32 0.0, %v389
      %391 = vdwg.mxu0
      %v392 = vmax.f32 %v375, 0.0
      %v393 = vmax.f32 %v378, 0.0
      %v394 = vmax.f32 %v381, 0.0
      %v395 = vmax.f32 %v384, 0.0
      %v396 = vmax.f32 %v387, 0.0
      %v397 = vmax.f32 %v390, 0.0
      %398 = vst [vmem:[%s228] sm:$0xff] %v392
      %399 = vst [vmem:[%s228 + $0x8] sm:$0xff] %v393
      %400 = vst [vmem:[%s228 + $0x10] sm:$0xff] %v394
      %401 = vst [vmem:[%s228 + $0x18] sm:$0xff] %v395
      %402 = vst [vmem:[%s228 + $0x20] sm:$0xff] %v396
      %403 = vst [vmem:[%s228 + $0x28] sm:$0xff] %v397
      %s404 = smul.u32 6, %s19
      %p405 = scmp.lt.s32.totalorder %s18, 4
      %s406 = scalar_select %p405, %s18, 4
      %p407 = scmp.lt.s32.totalorder %s404, 5
      %s408 = scalar_select %p407, %s404, 5
      %s409 = smul.addr %s406, 6
      %s410 = sadd.s32 %s408, %s409
      %s411 = smul.addr %s410, 8
      %s412 = scalar_lea.vmem %s3, %s411
      // Predicated region
      $region37: #{graph_matrix_completion_forward.6} parent=31 // pred_check
        %p413 = pneg %p121
      $region38: #{graph_matrix_completion_forward.6} parent=31 // pred_check_branch
        %415 = sbr.rel (%p413) target = $region40
      $region39: #{graph_matrix_completion_forward.6} parent=31 // pred_region
        %s416 = smul.u32 6, %s19
      $region40: #{graph_matrix_completion_forward.6} parent=31 // pred_fallthru
        _
    $region32: #{graph_matrix_completion_forward.6} parent=5 // pred_fallthru
      _
    %p417 = scmp.le.s32.totalorder 2, %s9
    // Predicated region
    $region41: #{graph_matrix_completion_forward.6} parent=5 // pred_check
      %p418 = pneg %p417
    $region42: #{graph_matrix_completion_forward.6} parent=5 // pred_check_branch
      %420 = sbr.rel (%p418) target = $region44
    $region43: #{graph_matrix_completion_forward.6} parent=5 // pred_region
      %s421 = ssub.s32 %s9, 2
      // Predicated region
      $region45: #{graph_matrix_completion_forward.6} parent=43 // pred_check
        %p422 = pneg %p127
      $region46: #{graph_matrix_completion_forward.6} parent=43 // pred_check_branch
        %424 = sbr.rel (%p422) target = $region48
      $region47: #{graph_matrix_completion_forward.6} parent=43 // pred_region
        %s425 = smul.u32 6, %s21
        %p426 = scmp.lt.s32.totalorder %s20, 4
        %s427 = scalar_select %p426, %s20, 4
        %p428 = scmp.lt.s32.totalorder %s425, 5
        %s429 = scalar_select %p428, %s425, 5
        %s430 = smul.addr %s427, 6
        %s431 = sadd.s32 %s429, %s430
        %s432 = smul.addr %s431, 8
        %s433 = scalar_lea.vmem %s3, %s432
      $region48: #{graph_matrix_completion_forward.6} parent=43 // pred_fallthru
        _
    $region44: #{graph_matrix_completion_forward.6} parent=5 // pred_fallthru
      _
  $region6: #{graph_matrix_completion_forward.6} parent=0 // loop_footer
    %s13 = sadd.s32 1, %s9
  $region7: #{graph_matrix_completion_forward.6} parent=0 // loop_footer_branch
    %8 = sbr.rel target = $region3
  $region8: #{graph_matrix_completion_forward.6} parent=0 // loop_exit
    _

// kernel: graph_matrix_completion_forward.8
$region0: #{graph_matrix_completion_forward.8}
  #allocation0 [shape = 'u32[]', space=smem, size = 0x4, offset = 0x4, fixed_abs, tag = 'smem constant byte address 0x4 - core index']
  #allocation1 [shape = 'u32[72,128]{1,0:T(1,128)}', space=vmem, size = 0x9000, scoped, tag = 'internal scratch']
  %s0 = inlined_call_operand.vmem [shape: f32[5,48,128], index: 0, kind: input, shape index: {}]
  %s1 = inlined_call_operand.vmem [shape: f32[48,32], index: 1, kind: input, shape index: {}]
  %s2 = inlined_call_operand.vmem [shape: f32[32,64], index: 2, kind: input, shape index: {}]
  %s3 = inlined_call_operand.vmem [shape: f32[1,64], index: 3, kind: input, shape index: {}]
  %s4 = inlined_call_operand.vmem [shape: f32[5,128,128], index: 4, kind: input, shape index: {}]
  %s5 = inlined_call_operand.vmem [shape: f32[64,128], index: 5, kind: input, shape index: {}]
  %s6 = inlined_call_operand.vmem [shape: f32[48,128], index: 6, kind: output, shape index: {}]
  %s7 = sld [smem:[#allocation0]]
  $region34: #{graph_matrix_completion_forward.8} parent=0
    _
  %s9 = ssub.s32 1, %s7
  %s10 = scalar_select 0, %s9, %s7
  // Predicated region
  $region2: #{graph_matrix_completion_forward.8} parent=0 // pred_check
    _
  $region3: #{graph_matrix_completion_forward.8} parent=0 // pred_check_branch
    %12 = sbr.rel (0) target = $region5
  $region4: #{graph_matrix_completion_forward.8} parent=0 // pred_region
    _
  $region5: #{graph_matrix_completion_forward.8} parent=0 // pred_fallthru
    _
  // Predicated region
  $region6: #{graph_matrix_completion_forward.8} parent=0 // pred_check
    _
  $region7: #{graph_matrix_completion_forward.8} parent=0 // pred_check_branch
    %14 = sbr.rel (0) target = $region9
  $region8: #{graph_matrix_completion_forward.8} parent=0 // pred_region
    _
  $region9: #{graph_matrix_completion_forward.8} parent=0 // pred_fallthru
    _
  // Predicated region
  $region10: #{graph_matrix_completion_forward.8} parent=0 // pred_check
    _
  $region11: #{graph_matrix_completion_forward.8} parent=0 // pred_check_branch
    %16 = sbr.rel (0) target = $region13
  $region12: #{graph_matrix_completion_forward.8} parent=0 // pred_region
    _
  $region13: #{graph_matrix_completion_forward.8} parent=0 // pred_fallthru
    _
  // Predicated region
  $region14: #{graph_matrix_completion_forward.8} parent=0 // pred_check
    _
  $region15: #{graph_matrix_completion_forward.8} parent=0 // pred_check_branch
    %18 = sbr.rel (0) target = $region17
  $region16: #{graph_matrix_completion_forward.8} parent=0 // pred_region
    _
  $region17: #{graph_matrix_completion_forward.8} parent=0 // pred_fallthru
    _
  // Predicated region
  $region18: #{graph_matrix_completion_forward.8} parent=0 // pred_check
    _
  $region19: #{graph_matrix_completion_forward.8} parent=0 // pred_check_branch
    %20 = sbr.rel (0) target = $region21
  $region20: #{graph_matrix_completion_forward.8} parent=0 // pred_region
    _
  $region21: #{graph_matrix_completion_forward.8} parent=0 // pred_fallthru
    _
  // Predicated region
  $region22: #{graph_matrix_completion_forward.8} parent=0 // pred_check
    _
  $region23: #{graph_matrix_completion_forward.8} parent=0 // pred_check_branch
    %22 = sbr.rel (0) target = $region25
  $region24: #{graph_matrix_completion_forward.8} parent=0 // pred_region
    _
  $region25: #{graph_matrix_completion_forward.8} parent=0 // pred_fallthru
    _
  %v23 = vld [vmem:[%s1] sm:$0xff]
  %v24 = vld [vmem:[%s1 + $0x8] sm:$0xff]
  %v25 = vld [vmem:[%s1 + $0x10] sm:$0xff]
  %v26 = vld [vmem:[%s1 + $0x18] sm:$0xff]
  %v27 = vld [vmem:[%s1 + $0x20] sm:$0xff]
  %v28 = vld [vmem:[%s1 + $0x28] sm:$0xff]
  %v29 = vld [vmem:[%s2] sm:$0xff]
  %v30 = vld [vmem:[%s2 + $0x8] sm:$0xff]
  %v31 = vld [vmem:[%s2 + $0x10] sm:$0xff]
  %v32 = vld [vmem:[%s2 + $0x18] sm:$0xff]
  %v33 = vld [vmem:[%s3] sm:$0x1]
  %v35 = vperm.slane %v33, 0
  %vm37 = vcmask 261120
  %v39 = vsel %vm37, %v23, 0
  %v42 = vsel %vm37, %v24, 0
  %v45 = vsel %vm37, %v25, 0
  %v48 = vsel %vm37, %v26, 0
  %v51 = vsel %vm37, %v27, 0
  %v54 = vsel %vm37, %v28, 0
  %56 = vmatpush.msra.mxu0 0.0
  %57 = vmatpush.msra.mxu0 0.0
  %58 = vmatpush.msra.mxu0 0.0
  %59 = vmatpush.msra.mxu0 0.0
  %60 = vmatpush.msra.mxu0 0.0
  %61 = vmatpush.msra.mxu0 0.0
  %62 = vmatpush.msra.mxu0 0.0
  %63 = vmatpush.msra.mxu0 0.0
  %64 = vmatpush.msra.mxu0 0.0
  %65 = vmatpush.msra.mxu0 0.0
  %66 = vmatpush.msra.mxu0 0.0
  %67 = vmatpush.msra.mxu0 0.0
  %68 = vmatpush.msra.mxu0 %v32
  %69 = vmatpush.msra.mxu0 %v31
  %70 = vmatpush.msra.mxu0 %v30
  %71 = vmatpush.msra.mxu0 %v29
  %72 = vmatmul.f32.gmra.mxu0 %v39
  %v73 = vpop.f32.mrf.mxu0
  %v74 = vadd.f32 %v35, %v73
  %75 = vmatmul.f32.gmra.mxu0 %v42
  %v76 = vpop.f32.mrf.mxu0
  %v77 = vadd.f32 %v35, %v76
  %78 = vmatmul.f32.gmra.mxu0 %v45
  %v79 = vpop.f32.mrf.mxu0
  %v80 = vadd.f32 %v35, %v79
  %81 = vmatmul.f32.gmra.mxu0 %v48
  %v82 = vpop.f32.mrf.mxu0
  %v83 = vadd.f32 %v35, %v82
  %84 = vmatmul.f32.gmra.mxu0 %v51
  %v85 = vpop.f32.mrf.mxu0
  %v86 = vadd.f32 %v35, %v85
  %87 = vmatmul.f32.gmra.mxu0 %v54
  %v88 = vpop.f32.mrf.mxu0
  %v89 = vadd.f32 %v35, %v88
  %90 = vdwg.mxu0
  %v91 = vmax.f32 %v74, 0.0
  %v92 = vmax.f32 %v77, 0.0
  %v93 = vmax.f32 %v80, 0.0
  %v94 = vmax.f32 %v83, 0.0
  %v95 = vmax.f32 %v86, 0.0
  %v96 = vmax.f32 %v89, 0.0
  %v97 = vld [vmem:[%s5] sm:$0xff]
  %v98 = vld [vmem:[%s5 + $0x8] sm:$0xff]
  %v99 = vld [vmem:[%s5 + $0x10] sm:$0xff]
  %v100 = vld [vmem:[%s5 + $0x18] sm:$0xff]
  %v101 = vld [vmem:[%s5 + $0x20] sm:$0xff]
  %v102 = vld [vmem:[%s5 + $0x28] sm:$0xff]
  %v103 = vld [vmem:[%s5 + $0x30] sm:$0xff]
  %v104 = vld [vmem:[%s5 + $0x38] sm:$0xff]
  %v105 = vld [vmem:[%s0] sm:$0xff]
  %v106 = vld [vmem:[%s0 + $0x8] sm:$0xff]
  %v107 = vld [vmem:[%s0 + $0x10] sm:$0xff]
  %v108 = vld [vmem:[%s0 + $0x18] sm:$0xff]
  %v109 = vld [vmem:[%s0 + $0x20] sm:$0xff]
  %v110 = vld [vmem:[%s0 + $0x28] sm:$0xff]
  %v111 = vld [vmem:[%s4] sm:$0xff]
  %v112 = vld [vmem:[%s4 + $0x8] sm:$0xff]
  %v113 = vld [vmem:[%s4 + $0x10] sm:$0xff]
  %v114 = vld [vmem:[%s4 + $0x18] sm:$0xff]
  %v115 = vld [vmem:[%s4 + $0x20] sm:$0xff]
  %v116 = vld [vmem:[%s4 + $0x28] sm:$0xff]
  %v117 = vld [vmem:[%s4 + $0x30] sm:$0xff]
  %v118 = vld [vmem:[%s4 + $0x38] sm:$0xff]
  %v119 = vld [vmem:[%s4 + $0x40] sm:$0xff]
  %v120 = vld [vmem:[%s4 + $0x48] sm:$0xff]
  %v121 = vld [vmem:[%s4 + $0x50] sm:$0xff]
  %v122 = vld [vmem:[%s4 + $0x58] sm:$0xff]
  %v123 = vld [vmem:[%s4 + $0x60] sm:$0xff]
  %v124 = vld [vmem:[%s4 + $0x68] sm:$0xff]
  %v125 = vld [vmem:[%s4 + $0x70] sm:$0xff]
  %v126 = vld [vmem:[%s4 + $0x78] sm:$0xff]
  %127 = vmatpush.msra.mxu0 %v126
  %128 = vmatpush.msra.mxu0 %v125
  %129 = vmatpush.msra.mxu0 %v124
  %130 = vmatpush.msra.mxu0 %v123
  %131 = vmatpush.msra.mxu0 %v122
  %132 = vmatpush.msra.mxu0 %v121
  %133 = vmatpush.msra.mxu0 %v120
  %134 = vmatpush.msra.mxu0 %v119
  %135 = vmatpush.msra.mxu0 %v118
  %136 = vmatpush.msra.mxu0 %v117
  %137 = vmatpush.msra.mxu0 %v116
  %138 = vmatpush.msra.mxu0 %v115
  %139 = vmatpush.msra.mxu0 %v114
  %140 = vmatpush.msra.mxu0 %v113
  %141 = vmatpush.msra.mxu0 %v112
  %142 = vmatpush.msra.mxu0 %v111
  %143 = vmatmul.f32.gmra.mxu0 %v105
  %v144 = vpop.f32.mrf.mxu0
  %v145 = vadd.f32 0.0, %v144
  %146 = vmatmul.f32.gmra.mxu0 %v106
  %v147 = vpop.f32.mrf.mxu0
  %v148 = vadd.f32 0.0, %v147
  %149 = vmatmul.f32.gmra.mxu0 %v107
  %v150 = vpop.f32.mrf.mxu0
  %v151 = vadd.f32 0.0, %v150
  %152 = vmatmul.f32.gmra.mxu0 %v108
  %v153 = vpop.f32.mrf.mxu0
  %v154 = vadd.f32 0.0, %v153
  %155 = vmatmul.f32.gmra.mxu0 %v109
  %v156 = vpop.f32.mrf.mxu0
  %v157 = vadd.f32 0.0, %v156
  %158 = vmatmul.f32.gmra.mxu0 %v110
  %v159 = vpop.f32.mrf.mxu0
  %v160 = vadd.f32 0.0, %v159
  %161 = vdwg.mxu0
  %vm162 = vcmask 523264
  %v164 = vsel %vm162, %v91, 0
  %v167 = vsel %vm162, %v92, 0
  %v170 = vsel %vm162, %v93, 0
  %v173 = vsel %vm162, %v94, 0
  %v176 = vsel %vm162, %v95, 0
  %v179 = vsel %vm162, %v96, 0
  %181 = vmatpush.msra.mxu0 0.0
  %182 = vmatpush.msra.mxu0 0.0
  %183 = vmatpush.msra.mxu0 0.0
  %184 = vmatpush.msra.mxu0 0.0
  %185 = vmatpush.msra.mxu0 0.0
  %186 = vmatpush.msra.mxu0 0.0
  %187 = vmatpush.msra.mxu0 0.0
  %188 = vmatpush.msra.mxu0 0.0
  %189 = vmatpush.msra.mxu0 %v104
  %190 = vmatpush.msra.mxu0 %v103
  %191 = vmatpush.msra.mxu0 %v102
  %192 = vmatpush.msra.mxu0 %v101
  %193 = vmatpush.msra.mxu0 %v100
  %194 = vmatpush.msra.mxu0 %v99
  %195 = vmatpush.msra.mxu0 %v98
  %196 = vmatpush.msra.mxu0 %v97
  %197 = vmatmul.f32.gmra.mxu0 %v164
  %v198 = vpop.f32.mrf.mxu0
  %v199 = vadd.f32 %v145, %v198
  %200 = vmatmul.f32.gmra.mxu0 %v167
  %v201 = vpop.f32.mrf.mxu0
  %v202 = vadd.f32 %v148, %v201
  %203 = vmatmul.f32.gmra.mxu0 %v170
  %v204 = vpop.f32.mrf.mxu0
  %v205 = vadd.f32 %v151, %v204
  %206 = vmatmul.f32.gmra.mxu0 %v173
  %v207 = vpop.f32.mrf.mxu0
  %v208 = vadd.f32 %v154, %v207
  %209 = vmatmul.f32.gmra.mxu0 %v176
  %v210 = vpop.f32.mrf.mxu0
  %v211 = vadd.f32 %v157, %v210
  %212 = vmatmul.f32.gmra.mxu0 %v179
  %v213 = vpop.f32.mrf.mxu0
  %v214 = vadd.f32 %v160, %v213
  %215 = vdwg.mxu0
  %s216 = scalar_lea.vmem %s0, 48
  %v217 = vld [vmem:[%s216] sm:$0xff]
  %v218 = vld [vmem:[%s216 + $0x8] sm:$0xff]
  %v219 = vld [vmem:[%s216 + $0x10] sm:$0xff]
  %v220 = vld [vmem:[%s216 + $0x18] sm:$0xff]
  %v221 = vld [vmem:[%s216 + $0x20] sm:$0xff]
  %v222 = vld [vmem:[%s216 + $0x28] sm:$0xff]
  %s223 = scalar_lea.vmem %s4, 128
  %v224 = vld [vmem:[%s223] sm:$0xff]
  %v225 = vld [vmem:[%s223 + $0x8] sm:$0xff]
  %v226 = vld [vmem:[%s223 + $0x10] sm:$0xff]
  %v227 = vld [vmem:[%s223 + $0x18] sm:$0xff]
  %v228 = vld [vmem:[%s223 + $0x20] sm:$0xff]
  %v229 = vld [vmem:[%s223 + $0x28] sm:$0xff]
  %v230 = vld [vmem:[%s223 + $0x30] sm:$0xff]
  %v231 = vld [vmem:[%s223 + $0x38] sm:$0xff]
  %v232 = vld [vmem:[%s223 + $0x40] sm:$0xff]
  %v233 = vld [vmem:[%s223 + $0x48] sm:$0xff]
  %v234 = vld [vmem:[%s223 + $0x50] sm:$0xff]
  %v235 = vld [vmem:[%s223 + $0x58] sm:$0xff]
  %v236 = vld [vmem:[%s223 + $0x60] sm:$0xff]
  %v237 = vld [vmem:[%s223 + $0x68] sm:$0xff]
  %v238 = vld [vmem:[%s223 + $0x70] sm:$0xff]
  %v239 = vld [vmem:[%s223 + $0x78] sm:$0xff]
  %240 = vmatpush.msra.mxu0 %v239
  %241 = vmatpush.msra.mxu0 %v238
  %242 = vmatpush.msra.mxu0 %v237
  %243 = vmatpush.msra.mxu0 %v236
  %244 = vmatpush.msra.mxu0 %v235
  %245 = vmatpush.msra.mxu0 %v234
  %246 = vmatpush.msra.mxu0 %v233
  %247 = vmatpush.msra.mxu0 %v232
  %248 = vmatpush.msra.mxu0 %v231
  %249 = vmatpush.msra.mxu0 %v230
  %250 = vmatpush.msra.mxu0 %v229
  %251 = vmatpush.msra.mxu0 %v228
  %252 = vmatpush.msra.mxu0 %v227
  %253 = vmatpush.msra.mxu0 %v226
  %254 = vmatpush.msra.mxu0 %v225
  %255 = vmatpush.msra.mxu0 %v224
  %256 = vmatmul.f32.gmra.mxu0 %v217
  %v257 = vpop.f32.mrf.mxu0
  %v258 = vadd.f32 0.0, %v257
  %259 = vmatmul.f32.gmra.mxu0 %v218
  %v260 = vpop.f32.mrf.mxu0
  %v261 = vadd.f32 0.0, %v260
  %262 = vmatmul.f32.gmra.mxu0 %v219
  %v263 = vpop.f32.mrf.mxu0
  %v264 = vadd.f32 0.0, %v263
  %265 = vmatmul.f32.gmra.mxu0 %v220
  %v266 = vpop.f32.mrf.mxu0
  %v267 = vadd.f32 0.0, %v266
  %268 = vmatmul.f32.gmra.mxu0 %v221
  %v269 = vpop.f32.mrf.mxu0
  %v270 = vadd.f32 0.0, %v269
  %271 = vmatmul.f32.gmra.mxu0 %v222
  %v272 = vpop.f32.mrf.mxu0
  %v273 = vadd.f32 0.0, %v272
  %274 = vdwg.mxu0
  %v275 = vadd.f32 %v199, %v258
  %v276 = vadd.f32 %v202, %v261
  %v277 = vadd.f32 %v205, %v264
  %v278 = vadd.f32 %v208, %v267
  %v279 = vadd.f32 %v211, %v270
  %v280 = vadd.f32 %v214, %v273
  %s281 = scalar_lea.vmem %s0, 96
  %v282 = vld [vmem:[%s281] sm:$0xff]
  %v283 = vld [vmem:[%s281 + $0x8] sm:$0xff]
  %v284 = vld [vmem:[%s281 + $0x10] sm:$0xff]
  %v285 = vld [vmem:[%s281 + $0x18] sm:$0xff]
  %v286 = vld [vmem:[%s281 + $0x20] sm:$0xff]
  %v287 = vld [vmem:[%s281 + $0x28] sm:$0xff]
  %s288 = scalar_lea.vmem %s4, 256
  %v289 = vld [vmem:[%s288] sm:$0xff]
  %v290 = vld [vmem:[%s288 + $0x8] sm:$0xff]
  %v291 = vld [vmem:[%s288 + $0x10] sm:$0xff]
  %v292 = vld [vmem:[%s288 + $0x18] sm:$0xff]
  %v293 = vld [vmem:[%s288 + $0x20] sm:$0xff]
  %v294 = vld [vmem:[%s288 + $0x28] sm:$0xff]
  %v295 = vld [vmem:[%s288 + $0x30] sm:$0xff]
  %v296 = vld [vmem:[%s288 + $0x38] sm:$0xff]
  %v297 = vld [vmem:[%s288 + $0x40] sm:$0xff]
  %v298 = vld [vmem:[%s288 + $0x48] sm:$0xff]
  %v299 = vld [vmem:[%s288 + $0x50] sm:$0xff]
  %v300 = vld [vmem:[%s288 + $0x58] sm:$0xff]
  %v301 = vld [vmem:[%s288 + $0x60] sm:$0xff]
  %v302 = vld [vmem:[%s288 + $0x68] sm:$0xff]
  %v303 = vld [vmem:[%s288 + $0x70] sm:$0xff]
  %v304 = vld [vmem:[%s288 + $0x78] sm:$0xff]
  %305 = vmatpush.msra.mxu0 %v304
  %306 = vmatpush.msra.mxu0 %v303
  %307 = vmatpush.msra.mxu0 %v302
  %308 = vmatpush.msra.mxu0 %v301
  %309 = vmatpush.msra.mxu0 %v300
  %310 = vmatpush.msra.mxu0 %v299
  %311 = vmatpush.msra.mxu0 %v298
  %312 = vmatpush.msra.mxu0 %v297
  %313 = vmatpush.msra.mxu0 %v296
  %314 = vmatpush.msra.mxu0 %v295
  %315 = vmatpush.msra.mxu0 %v294
  %316 = vmatpush.msra.mxu0 %v293
  %317 = vmatpush.msra.mxu0 %v292
  %318 = vmatpush.msra.mxu0 %v291
  %319 = vmatpush.msra.mxu0 %v290
  %320 = vmatpush.msra.mxu0 %v289
  %321 = vmatmul.f32.gmra.mxu0 %v282
  %v322 = vpop.f32.mrf.mxu0
  %v323 = vadd.f32 0.0, %v322
  %324 = vmatmul.f32.gmra.mxu0 %v283
  %v325 = vpop.f32.mrf.mxu0
  %v326 = vadd.f32 0.0, %v325
  %327 = vmatmul.f32.gmra.mxu0 %v284
  %v328 = vpop.f32.mrf.mxu0
  %v329 = vadd.f32 0.0, %v328
  %330 = vmatmul.f32.gmra.mxu0 %v285
  %v331 = vpop.f32.mrf.mxu0
  %v332 = vadd.f32 0.0, %v331
  %333 = vmatmul.f32.gmra.mxu0 %v286
  %v334 = vpop.f32.mrf.mxu0
  %v335 = vadd.f32 0.0, %v334
  %336 = vmatmul.f32.gmra.mxu0 %v287
  %v337 = vpop.f32.mrf.mxu0
  %v338 = vadd.f32 0.0, %v337
  %339 = vdwg.mxu0
  %v340 = vadd.f32 %v275, %v323
  %v341 = vadd.f32 %v276, %v326
  %v342 = vadd.f32 %v277, %v329
  %v343 = vadd.f32 %v278, %v332
  %v344 = vadd.f32 %v279, %v335
  %v345 = vadd.f32 %v280, %v338
  %s346 = scalar_lea.vmem %s0, 144
  %v347 = vld [vmem:[%s346] sm:$0xff]
  %v348 = vld [vmem:[%s346 + $0x8] sm:$0xff]
  %v349 = vld [vmem:[%s346 + $0x10] sm:$0xff]
  %v350 = vld [vmem:[%s346 + $0x18] sm:$0xff]
  %v351 = vld [vmem:[%s346 + $0x20] sm:$0xff]
  %v352 = vld [vmem:[%s346 + $0x28] sm:$0xff]
  %s353 = scalar_lea.vmem %s4, 384
  %v354 = vld [vmem:[%s353] sm:$0xff]
  %v355 = vld [vmem:[%s353 + $0x8] sm:$0xff]
  %v356 = vld [vmem:[%s353 + $0x10] sm:$0xff]
  %v357 = vld [vmem:[%s353 + $0x18] sm:$0xff]
  %v358 = vld [vmem:[%s353 + $0x20] sm:$0xff]
  %v359 = vld [vmem:[%s353 + $0x28] sm:$0xff]
  %v360 = vld [vmem:[%s353 + $0x30] sm:$0xff]
  %v361 = vld [vmem:[%s353 + $0x38] sm:$0xff]
  %v362 = vld [vmem:[%s353 + $0x40] sm:$0xff]
  %v363 = vld [vmem:[%s353 + $0x48] sm:$0xff]
  %v364 = vld [vmem:[%s353 + $0x50] sm:$0xff]
  %v365 = vld [vmem:[%s353 + $0x58] sm:$0xff]
  %v366 = vld [vmem:[%s353 + $0x60] sm:$0xff]
  %v367 = vld [vmem:[%s353 + $0x68] sm:$0xff]
  %v368 = vld [vmem:[%s353 + $0x70] sm:$0xff]
  %v369 = vld [vmem:[%s353 + $0x78] sm:$0xff]
  %370 = vmatpush.msra.mxu0 %v369
  %371 = vmatpush.msra.mxu0 %v368
  %372 = vmatpush.msra.mxu0 %v367
  %373 = vmatpush.msra.mxu0 %v366
  %374 = vmatpush.msra.mxu0 %v365
  %375 = vmatpush.msra.mxu0 %v364
  %376 = vmatpush.msra.mxu0 %v363
  %377 = vmatpush.msra.mxu0 %v362
  %378 = vmatpush.msra.mxu0 %v361
  %379 = vmatpush.msra.mxu0 %v360
  %380 = vmatpush.msra.mxu0 %v359
  %381 = vmatpush.msra.mxu0 %v358
  %382 = vmatpush.msra.mxu0 %v357
  %383 = vmatpush.msra.mxu0 %v356
  %384 = vmatpush.msra.mxu0 %v355
  %385 = vmatpush.msra.mxu0 %v354
  %386 = vmatmul.f32.gmra.mxu0 %v347
  %v387 = vpop.f32.mrf.mxu0
  %v388 = vadd.f32 0.0, %v387
  %389 = vmatmul.f32.gmra.mxu0 %v348
  %v390 = vpop.f32.mrf.mxu0
  %v391 = vadd.f32 0.0, %v390
  %392 = vmatmul.f32.gmra.mxu0 %v349
  %v393 = vpop.f32.mrf.mxu0
  %v394 = vadd.f32 0.0, %v393
  %395 = vmatmul.f32.gmra.mxu0 %v350
  %v396 = vpop.f32.mrf.mxu0
  %v397 = vadd.f32 0.0, %v396
  %398 = vmatmul.f32.gmra.mxu0 %v351
  %v399 = vpop.f32.mrf.mxu0
  %v400 = vadd.f32 0.0, %v399
  %401 = vmatmul.f32.gmra.mxu0 %v352
  %v402 = vpop.f32.mrf.mxu0
  %v403 = vadd.f32 0.0, %v402
  %404 = vdwg.mxu0
  %v405 = vadd.f32 %v340, %v388
  %v406 = vadd.f32 %v341, %v391
  %v407 = vadd.f32 %v342, %v394
  %v408 = vadd.f32 %v343, %v397
  %v409 = vadd.f32 %v344, %v400
  %v410 = vadd.f32 %v345, %v403
  %s411 = scalar_lea.vmem %s0, 192
  %v412 = vld [vmem:[%s411] sm:$0xff]
  %v413 = vld [vmem:[%s411 + $0x8] sm:$0xff]
  %v414 = vld [vmem:[%s411 + $0x10] sm:$0xff]
  %v415 = vld [vmem:[%s411 + $0x18] sm:$0xff]
  %v416 = vld [vmem:[%s411 + $0x20] sm:$0xff]
  %v417 = vld [vmem:[%s411 + $0x28] sm:$0xff]
  %s418 = scalar_lea.vmem %s4, 512
  %v419 = vld [vmem:[%s418] sm:$0xff]
  %v420 = vld [vmem:[%s418 + $0x8] sm:$0xff]
  %v421 = vld [vmem:[%s418 + $0x10] sm:$0xff]
  %v422 = vld [vmem:[%s418 + $0x18] sm:$0xff]
  %v423 = vld [vmem:[%s418 + $0x20] sm:$0xff]
  %v424 = vld [vmem:[%s418 + $0x28] sm:$0xff]
  %v425 = vld [vmem:[%s418 + $0x30] sm:$0xff]
  %v426 = vld [vmem:[%s418 + $0x38] sm:$0xff]
  %v427 = vld [vmem:[%s418 + $0x40] sm:$0xff]
  %v428 = vld [vmem:[%s418 + $0x48] sm:$0xff]
  %v429 = vld [vmem:[%s418 + $0x50] sm:$0xff]
  %v430 = vld [vmem:[%s418 + $0x58] sm:$0xff]
  %v431 = vld [vmem:[%s418 + $0x60] sm:$0xff]
  %v432 = vld [vmem:[%s418 + $0x68] sm:$0xff]
  %v433 = vld [vmem:[%s418 + $0x70] sm:$0xff]
  %v434 = vld [vmem:[%s418 + $0x78] sm:$0xff]
  %435 = vmatpush.msra.mxu0 %v434
  %436 = vmatpush.msra.mxu0 %v433
  %437 = vmatpush.msra.mxu0 %v432
  %438 = vmatpush.msra.mxu0 %v431
  %439 = vmatpush.msra.mxu0 %v430
  %440 = vmatpush.msra.mxu0 %v429
  %441 = vmatpush.msra.mxu0 %v428
  %442 = vmatpush.msra.mxu0 %v427
  %443 = vmatpush.msra.mxu0 %v426
  %444 = vmatpush.msra.mxu0 %v425
  %445 = vmatpush.msra.mxu0 %v424
  %446 = vmatpush.msra.mxu0 %v423
  %447 = vmatpush.msra.mxu0 %v422
  %448 = vmatpush.msra.mxu0 %v421
  %449 = vmatpush.msra.mxu0 %v420
  %450 = vmatpush.msra.mxu0 %v419
  %451 = vmatmul.f32.gmra.mxu0 %v412
  %v452 = vpop.f32.mrf.mxu0
  %v453 = vadd.f32 0.0, %v452
  %454 = vmatmul.f32.gmra.mxu0 %v413
  %v455 = vpop.f32.mrf.mxu0
  %v456 = vadd.f32 0.0, %v455
  %457 = vmatmul.f32.gmra.mxu0 %v414
  %v458 = vpop.f32.mrf.mxu0
  %v459 = vadd.f32 0.0, %v458
  %460 = vmatmul.f32.gmra.mxu0 %v415
  %v461 = vpop.f32.mrf.mxu0
  %v462 = vadd.f32 0.0, %v461
  %463 = vmatmul.f32.gmra.mxu0 %v416
  %v464 = vpop.f32.mrf.mxu0
  %v465 = vadd.f32 0.0, %v464
  %466 = vmatmul.f32.gmra.mxu0 %v417
  %v467 = vpop.f32.mrf.mxu0
  %v468 = vadd.f32 0.0, %v467
  %469 = vdwg.mxu0
  %v470 = vadd.f32 %v405, %v453
  %v471 = vadd.f32 %v406, %v456
  %v472 = vadd.f32 %v407, %v459
  %v473 = vadd.f32 %v408, %v462
  %v474 = vadd.f32 %v409, %v465
  %v475 = vadd.f32 %v410, %v468
  %476 = vst [vmem:[%s6] sm:$0xff] %v470
  %477 = vst [vmem:[%s6 + $0x8] sm:$0xff] %v471
  %478 = vst [vmem:[%s6 + $0x10] sm:$0xff] %v472
  %479 = vst [vmem:[%s6 + $0x18] sm:$0xff] %v473
  %480 = vst [vmem:[%s6 + $0x20] sm:$0xff] %v474
  %481 = vst [vmem:[%s6 + $0x28] sm:$0xff] %v475
  // Predicated region
  $region26: #{graph_matrix_completion_forward.8} parent=0 // pred_check
    _
  $region27: #{graph_matrix_completion_forward.8} parent=0 // pred_check_branch
    %483 = sbr.rel (0) target = $region29
  $region28: #{graph_matrix_completion_forward.8} parent=0 // pred_region
    _
  $region29: #{graph_matrix_completion_forward.8} parent=0 // pred_fallthru
    _
  // Predicated region
  $region30: #{graph_matrix_completion_forward.8} parent=0 // pred_check
    _
  $region31: #{graph_matrix_completion_forward.8} parent=0 // pred_check_branch
    %485 = sbr.rel (0) target = $region33
  $region32: #{graph_matrix_completion_forward.8} parent=0 // pred_region
    _
  $region33: #{graph_matrix_completion_forward.8} parent=0 // pred_fallthru
    _

// kernel: graph_matrix_completion_forward.9
$region0: #{graph_matrix_completion_forward.9}
  #allocation0 [shape = 'u32[]', space=smem, size = 0x4, offset = 0x4, fixed_abs, tag = 'smem constant byte address 0x4 - core index']
  #allocation1 [shape = 'u32[72,128]{1,0:T(1,128)}', space=vmem, size = 0x9000, scoped, tag = 'internal scratch']
  %s0 = inlined_call_operand.vmem [shape: f32[96,128], index: 0, kind: input, shape index: {}]
  %s1 = inlined_call_operand.vmem [shape: f32[96,128], index: 1, kind: input, shape index: {}]
  %s2 = inlined_call_operand.vmem [shape: f32[128,384], index: 2, kind: input, shape index: {}]
  %s3 = inlined_call_operand.vmem [shape: f32[3,5], index: 3, kind: input, shape index: {}]
  %s4 = inlined_call_operand.vmem [shape: f32[96,5], index: 4, kind: output, shape index: {}]
  %s5 = sld [smem:[#allocation0]]
  $region26: #{graph_matrix_completion_forward.9} parent=0
    _
  %s7 = ssub.s32 1, %s5
  %s8 = scalar_select 0, %s7, %s5
  // Predicated region
  $region2: #{graph_matrix_completion_forward.9} parent=0 // pred_check
    _
  $region3: #{graph_matrix_completion_forward.9} parent=0 // pred_check_branch
    %10 = sbr.rel (0) target = $region5
  $region4: #{graph_matrix_completion_forward.9} parent=0 // pred_region
    _
  $region5: #{graph_matrix_completion_forward.9} parent=0 // pred_fallthru
    _
  // Predicated region
  $region6: #{graph_matrix_completion_forward.9} parent=0 // pred_check
    _
  $region7: #{graph_matrix_completion_forward.9} parent=0 // pred_check_branch
    %12 = sbr.rel (0) target = $region9
  $region8: #{graph_matrix_completion_forward.9} parent=0 // pred_region
    _
  $region9: #{graph_matrix_completion_forward.9} parent=0 // pred_fallthru
    _
  // Predicated region
  $region10: #{graph_matrix_completion_forward.9} parent=0 // pred_check
    _
  $region11: #{graph_matrix_completion_forward.9} parent=0 // pred_check_branch
    %14 = sbr.rel (0) target = $region13
  $region12: #{graph_matrix_completion_forward.9} parent=0 // pred_region
    _
  $region13: #{graph_matrix_completion_forward.9} parent=0 // pred_fallthru
    _
  // Predicated region
  $region14: #{graph_matrix_completion_forward.9} parent=0 // pred_check
    _
  $region15: #{graph_matrix_completion_forward.9} parent=0 // pred_check_branch
    %16 = sbr.rel (0) target = $region17
  $region16: #{graph_matrix_completion_forward.9} parent=0 // pred_region
    _
  $region17: #{graph_matrix_completion_forward.9} parent=0 // pred_fallthru
    _
  %v17 = vld [vmem:[%s1] sm:$0xff]
  %v18 = vld [vmem:[%s1 + $0x8] sm:$0xff]
  %v19 = vld [vmem:[%s1 + $0x10] sm:$0xff]
  %v20 = vld [vmem:[%s1 + $0x18] sm:$0xff]
  %v21 = vld [vmem:[%s1 + $0x20] sm:$0xff]
  %v22 = vld [vmem:[%s1 + $0x28] sm:$0xff]
  %v23 = vld [vmem:[%s1 + $0x30] sm:$0xff]
  %v24 = vld [vmem:[%s1 + $0x38] sm:$0xff]
  %v25 = vld [vmem:[%s1 + $0x40] sm:$0xff]
  %v26 = vld [vmem:[%s1 + $0x48] sm:$0xff]
  %v27 = vld [vmem:[%s1 + $0x50] sm:$0xff]
  %v28 = vld [vmem:[%s1 + $0x58] sm:$0xff]
  %v29 = vld [vmem:[%s0] sm:$0xff]
  %v30 = vld [vmem:[%s0 + $0x8] sm:$0xff]
  %v31 = vld [vmem:[%s0 + $0x10] sm:$0xff]
  %v32 = vld [vmem:[%s0 + $0x18] sm:$0xff]
  %v33 = vld [vmem:[%s0 + $0x20] sm:$0xff]
  %v34 = vld [vmem:[%s0 + $0x28] sm:$0xff]
  %v35 = vld [vmem:[%s0 + $0x30] sm:$0xff]
  %v36 = vld [vmem:[%s0 + $0x38] sm:$0xff]
  %v37 = vld [vmem:[%s0 + $0x40] sm:$0xff]
  %v38 = vld [vmem:[%s0 + $0x48] sm:$0xff]
  %v39 = vld [vmem:[%s0 + $0x50] sm:$0xff]
  %v40 = vld [vmem:[%s0 + $0x58] sm:$0xff]
  %v41 = vld [vmem:[%s2] sm:$0xff]
  %v42 = vld [vmem:[%s2 + $0x8] sm:$0xff]
  %v43 = vld [vmem:[%s2 + $0x10] sm:$0xff]
  %v44 = vld [vmem:[%s2 + $0x18] sm:$0xff]
  %v45 = vld [vmem:[%s2 + $0x20] sm:$0xff]
  %v46 = vld [vmem:[%s2 + $0x28] sm:$0xff]
  %v47 = vld [vmem:[%s2 + $0x30] sm:$0xff]
  %v48 = vld [vmem:[%s2 + $0x38] sm:$0xff]
  %v49 = vld [vmem:[%s2 + $0x40] sm:$0xff]
  %v50 = vld [vmem:[%s2 + $0x48] sm:$0xff]
  %v51 = vld [vmem:[%s2 + $0x50] sm:$0xff]
  %v52 = vld [vmem:[%s2 + $0x58] sm:$0xff]
  %v53 = vld [vmem:[%s2 + $0x60] sm:$0xff]
  %v54 = vld [vmem:[%s2 + $0x68] sm:$0xff]
  %v55 = vld [vmem:[%s2 + $0x70] sm:$0xff]
  %v56 = vld [vmem:[%s2 + $0x78] sm:$0xff]
  %v57 = vld [vmem:[%s2 + $0x80] sm:$0xff]
  %v58 = vld [vmem:[%s2 + $0x88] sm:$0xff]
  %v59 = vld [vmem:[%s2 + $0x90] sm:$0xff]
  %v60 = vld [vmem:[%s2 + $0x98] sm:$0xff]
  %v61 = vld [vmem:[%s2 + $0xa0] sm:$0xff]
  %v62 = vld [vmem:[%s2 + $0xa8] sm:$0xff]
  %v63 = vld [vmem:[%s2 + $0xb0] sm:$0xff]
  %v64 = vld [vmem:[%s2 + $0xb8] sm:$0xff]
  %v65 = vld [vmem:[%s2 + $0xc0] sm:$0xff]
  %v66 = vld [vmem:[%s2 + $0xc8] sm:$0xff]
  %v67 = vld [vmem:[%s2 + $0xd0] sm:$0xff]
  %v68 = vld [vmem:[%s2 + $0xd8] sm:$0xff]
  %v69 = vld [vmem:[%s2 + $0xe0] sm:$0xff]
  %v70 = vld [vmem:[%s2 + $0xe8] sm:$0xff]
  %v71 = vld [vmem:[%s2 + $0xf0] sm:$0xff]
  %v72 = vld [vmem:[%s2 + $0xf8] sm:$0xff]
  %v73 = vld [vmem:[%s2 + $0x100] sm:$0xff]
  %v74 = vld [vmem:[%s2 + $0x108] sm:$0xff]
  %v75 = vld [vmem:[%s2 + $0x110] sm:$0xff]
  %v76 = vld [vmem:[%s2 + $0x118] sm:$0xff]
  %v77 = vld [vmem:[%s2 + $0x120] sm:$0xff]
  %v78 = vld [vmem:[%s2 + $0x128] sm:$0xff]
  %v79 = vld [vmem:[%s2 + $0x130] sm:$0xff]
  %v80 = vld [vmem:[%s2 + $0x138] sm:$0xff]
  %v81 = vld [vmem:[%s2 + $0x140] sm:$0xff]
  %v82 = vld [vmem:[%s2 + $0x148] sm:$0xff]
  %v83 = vld [vmem:[%s2 + $0x150] sm:$0xff]
  %v84 = vld [vmem:[%s2 + $0x158] sm:$0xff]
  %v85 = vld [vmem:[%s2 + $0x160] sm:$0xff]
  %v86 = vld [vmem:[%s2 + $0x168] sm:$0xff]
  %v87 = vld [vmem:[%s2 + $0x170] sm:$0xff]
  %v88 = vld [vmem:[%s2 + $0x178] sm:$0xff]
  %89 = vmatpush.msra.mxu0 %v86
  %90 = vmatpush.msra.mxu0 %v83
  %91 = vmatpush.msra.mxu0 %v80
  %92 = vmatpush.msra.mxu0 %v77
  %93 = vmatpush.msra.mxu0 %v74
  %94 = vmatpush.msra.mxu0 %v71
  %95 = vmatpush.msra.mxu0 %v68
  %96 = vmatpush.msra.mxu0 %v65
  %97 = vmatpush.msra.mxu0 %v62
  %98 = vmatpush.msra.mxu0 %v59
  %99 = vmatpush.msra.mxu0 %v56
  %100 = vmatpush.msra.mxu0 %v53
  %101 = vmatpush.msra.mxu0 %v50
  %102 = vmatpush.msra.mxu0 %v47
  %103 = vmatpush.msra.mxu0 %v44
  %104 = vmatpush.msra.mxu0 %v41
  %105 = vmatmul.f32.gmra.mxu0 %v29
  %v106 = vpop.f32.mrf.mxu0
  %v107 = vadd.f32 0.0, %v106
  %108 = vmatmul.f32.gmra.mxu0 %v30
  %v109 = vpop.f32.mrf.mxu0
  %v110 = vadd.f32 0.0, %v109
  %111 = vmatmul.f32.gmra.mxu0 %v31
  %v112 = vpop.f32.mrf.mxu0
  %v113 = vadd.f32 0.0, %v112
  %114 = vmatmul.f32.gmra.mxu0 %v32
  %v115 = vpop.f32.mrf.mxu0
  %v116 = vadd.f32 0.0, %v115
  %117 = vmatmul.f32.gmra.mxu0 %v33
  %v118 = vpop.f32.mrf.mxu0
  %v119 = vadd.f32 0.0, %v118
  %120 = vmatmul.f32.gmra.mxu0 %v34
  %v121 = vpop.f32.mrf.mxu0
  %v122 = vadd.f32 0.0, %v121
  %123 = vmatmul.f32.gmra.mxu0 %v35
  %v124 = vpop.f32.mrf.mxu0
  %v125 = vadd.f32 0.0, %v124
  %126 = vmatmul.f32.gmra.mxu0 %v36
  %v127 = vpop.f32.mrf.mxu0
  %v128 = vadd.f32 0.0, %v127
  %129 = vmatmul.f32.gmra.mxu0 %v37
  %v130 = vpop.f32.mrf.mxu0
  %v131 = vadd.f32 0.0, %v130
  %132 = vmatmul.f32.gmra.mxu0 %v38
  %v133 = vpop.f32.mrf.mxu0
  %v134 = vadd.f32 0.0, %v133
  %135 = vmatmul.f32.gmra.mxu0 %v39
  %v136 = vpop.f32.mrf.mxu0
  %v137 = vadd.f32 0.0, %v136
  %138 = vmatmul.f32.gmra.mxu0 %v40
  %v139 = vpop.f32.mrf.mxu0
  %v140 = vadd.f32 0.0, %v139
  %141 = vdwg.mxu0
  %142 = vmatpush.msra.mxu0 %v87
  %143 = vmatpush.msra.mxu0 %v84
  %144 = vmatpush.msra.mxu0 %v81
  %145 = vmatpush.msra.mxu0 %v78
  %146 = vmatpush.msra.mxu0 %v75
  %147 = vmatpush.msra.mxu0 %v72
  %148 = vmatpush.msra.mxu0 %v69
  %149 = vmatpush.msra.mxu0 %v66
  %150 = vmatpush.msra.mxu0 %v63
  %151 = vmatpush.msra.mxu0 %v60
  %152 = vmatpush.msra.mxu0 %v57
  %153 = vmatpush.msra.mxu0 %v54
  %154 = vmatpush.msra.mxu0 %v51
  %155 = vmatpush.msra.mxu0 %v48
  %156 = vmatpush.msra.mxu0 %v45
  %157 = vmatpush.msra.mxu0 %v42
  %158 = vmatmul.f32.gmra.mxu0 %v29
  %v159 = vpop.f32.mrf.mxu0
  %v160 = vadd.f32 0.0, %v159
  %161 = vmatmul.f32.gmra.mxu0 %v30
  %v162 = vpop.f32.mrf.mxu0
  %v163 = vadd.f32 0.0, %v162
  %164 = vmatmul.f32.gmra.mxu0 %v31
  %v165 = vpop.f32.mrf.mxu0
  %v166 = vadd.f32 0.0, %v165
  %167 = vmatmul.f32.gmra.mxu0 %v32
  %v168 = vpop.f32.mrf.mxu0
  %v169 = vadd.f32 0.0, %v168
  %170 = vmatmul.f32.gmra.mxu0 %v33
  %v171 = vpop.f32.mrf.mxu0
  %v172 = vadd.f32 0.0, %v171
  %173 = vmatmul.f32.gmra.mxu0 %v34
  %v174 = vpop.f32.mrf.mxu0
  %v175 = vadd.f32 0.0, %v174
  %176 = vmatmul.f32.gmra.mxu0 %v35
  %v177 = vpop.f32.mrf.mxu0
  %v178 = vadd.f32 0.0, %v177
  %179 = vmatmul.f32.gmra.mxu0 %v36
  %v180 = vpop.f32.mrf.mxu0
  %v181 = vadd.f32 0.0, %v180
  %182 = vmatmul.f32.gmra.mxu0 %v37
  %v183 = vpop.f32.mrf.mxu0
  %v184 = vadd.f32 0.0, %v183
  %185 = vmatmul.f32.gmra.mxu0 %v38
  %v186 = vpop.f32.mrf.mxu0
  %v187 = vadd.f32 0.0, %v186
  %188 = vmatmul.f32.gmra.mxu0 %v39
  %v189 = vpop.f32.mrf.mxu0
  %v190 = vadd.f32 0.0, %v189
  %191 = vmatmul.f32.gmra.mxu0 %v40
  %v192 = vpop.f32.mrf.mxu0
  %v193 = vadd.f32 0.0, %v192
  %194 = vdwg.mxu0
  %195 = vmatpush.msra.mxu0 %v88
  %196 = vmatpush.msra.mxu0 %v85
  %197 = vmatpush.msra.mxu0 %v82
  %198 = vmatpush.msra.mxu0 %v79
  %199 = vmatpush.msra.mxu0 %v76
  %200 = vmatpush.msra.mxu0 %v73
  %201 = vmatpush.msra.mxu0 %v70
  %202 = vmatpush.msra.mxu0 %v67
  %203 = vmatpush.msra.mxu0 %v64
  %204 = vmatpush.msra.mxu0 %v61
  %205 = vmatpush.msra.mxu0 %v58
  %206 = vmatpush.msra.mxu0 %v55
  %207 = vmatpush.msra.mxu0 %v52
  %208 = vmatpush.msra.mxu0 %v49
  %209 = vmatpush.msra.mxu0 %v46
  %210 = vmatpush.msra.mxu0 %v43
  %211 = vmatmul.f32.gmra.mxu0 %v29
  %v212 = vpop.f32.mrf.mxu0
  %v213 = vadd.f32 0.0, %v212
  %214 = vmatmul.f32.gmra.mxu0 %v30
  %v215 = vpop.f32.mrf.mxu0
  %v216 = vadd.f32 0.0, %v215
  %217 = vmatmul.f32.gmra.mxu0 %v31
  %v218 = vpop.f32.mrf.mxu0
  %v219 = vadd.f32 0.0, %v218
  %220 = vmatmul.f32.gmra.mxu0 %v32
  %v221 = vpop.f32.mrf.mxu0
  %v222 = vadd.f32 0.0, %v221
  %223 = vmatmul.f32.gmra.mxu0 %v33
  %v224 = vpop.f32.mrf.mxu0
  %v225 = vadd.f32 0.0, %v224
  %226 = vmatmul.f32.gmra.mxu0 %v34
  %v227 = vpop.f32.mrf.mxu0
  %v228 = vadd.f32 0.0, %v227
  %229 = vmatmul.f32.gmra.mxu0 %v35
  %v230 = vpop.f32.mrf.mxu0
  %v231 = vadd.f32 0.0, %v230
  %232 = vmatmul.f32.gmra.mxu0 %v36
  %v233 = vpop.f32.mrf.mxu0
  %v234 = vadd.f32 0.0, %v233
  %235 = vmatmul.f32.gmra.mxu0 %v37
  %v236 = vpop.f32.mrf.mxu0
  %v237 = vadd.f32 0.0, %v236
  %238 = vmatmul.f32.gmra.mxu0 %v38
  %v239 = vpop.f32.mrf.mxu0
  %v240 = vadd.f32 0.0, %v239
  %241 = vmatmul.f32.gmra.mxu0 %v39
  %v242 = vpop.f32.mrf.mxu0
  %v243 = vadd.f32 0.0, %v242
  %244 = vmatmul.f32.gmra.mxu0 %v40
  %v245 = vpop.f32.mrf.mxu0
  %v246 = vadd.f32 0.0, %v245
  %247 = vdwg.mxu0
  %v248 = vmul.f32 %v107, %v17
  %v249 = vmul.f32 %v110, %v18
  %v250 = vmul.f32 %v113, %v19
  %v251 = vmul.f32 %v116, %v20
  %v252 = vmul.f32 %v119, %v21
  %v253 = vmul.f32 %v122, %v22
  %v254 = vmul.f32 %v125, %v23
  %v255 = vmul.f32 %v128, %v24
  %v256 = vmul.f32 %v131, %v25
  %v257 = vmul.f32 %v134, %v26
  %v258 = vmul.f32 %v137, %v27
  %v259 = vmul.f32 %v140, %v28
  %260 = vadd.xlane.f32.xlu0 %v248
  %v261 = vpop.xlane.xlu0 %260
  %262 = vadd.xlane.f32.xlu0 %v249
  %v263 = vpop.xlane.xlu0 %262
  %264 = vadd.xlane.f32.xlu0 %v250
  %v265 = vpop.xlane.xlu0 %264
  %266 = vadd.xlane.f32.xlu0 %v251
  %v267 = vpop.xlane.xlu0 %266
  %268 = vadd.xlane.f32.xlu0 %v252
  %v269 = vpop.xlane.xlu0 %268
  %270 = vadd.xlane.f32.xlu0 %v253
  %v271 = vpop.xlane.xlu0 %270
  %272 = vadd.xlane.f32.xlu0 %v254
  %v273 = vpop.xlane.xlu0 %272
  %274 = vadd.xlane.f32.xlu0 %v255
  %v275 = vpop.xlane.xlu0 %274
  %276 = vadd.xlane.f32.xlu0 %v256
  %v277 = vpop.xlane.xlu0 %276
  %278 = vadd.xlane.f32.xlu0 %v257
  %v279 = vpop.xlane.xlu0 %278
  %280 = vadd.xlane.f32.xlu0 %v258
  %v281 = vpop.xlane.xlu0 %280
  %282 = vadd.xlane.f32.xlu0 %v259
  %v283 = vpop.xlane.xlu0 %282
  %v284 = vmul.f32 %v160, %v17
  %v285 = vmul.f32 %v163, %v18
  %v286 = vmul.f32 %v166, %v19
  %v287 = vmul.f32 %v169, %v20
  %v288 = vmul.f32 %v172, %v21
  %v289 = vmul.f32 %v175, %v22
  %v290 = vmul.f32 %v178, %v23
  %v291 = vmul.f32 %v181, %v24
  %v292 = vmul.f32 %v184, %v25
  %v293 = vmul.f32 %v187, %v26
  %v294 = vmul.f32 %v190, %v27
  %v295 = vmul.f32 %v193, %v28
  %296 = vadd.xlane.f32.xlu0 %v284
  %v297 = vpop.xlane.xlu0 %296
  %298 = vadd.xlane.f32.xlu0 %v285
  %v299 = vpop.xlane.xlu0 %298
  %300 = vadd.xlane.f32.xlu0 %v286
  %v301 = vpop.xlane.xlu0 %300
  %302 = vadd.xlane.f32.xlu0 %v287
  %v303 = vpop.xlane.xlu0 %302
  %304 = vadd.xlane.f32.xlu0 %v288
  %v305 = vpop.xlane.xlu0 %304
  %306 = vadd.xlane.f32.xlu0 %v289
  %v307 = vpop.xlane.xlu0 %306
  %308 = vadd.xlane.f32.xlu0 %v290
  %v309 = vpop.xlane.xlu0 %308
  %310 = vadd.xlane.f32.xlu0 %v291
  %v311 = vpop.xlane.xlu0 %310
  %312 = vadd.xlane.f32.xlu0 %v292
  %v313 = vpop.xlane.xlu0 %312
  %314 = vadd.xlane.f32.xlu0 %v293
  %v315 = vpop.xlane.xlu0 %314
  %316 = vadd.xlane.f32.xlu0 %v294
  %v317 = vpop.xlane.xlu0 %316
  %318 = vadd.xlane.f32.xlu0 %v295
  %v319 = vpop.xlane.xlu0 %318
  %v320 = vmul.f32 %v213, %v17
  %v321 = vmul.f32 %v216, %v18
  %v322 = vmul.f32 %v219, %v19
  %v323 = vmul.f32 %v222, %v20
  %v324 = vmul.f32 %v225, %v21
  %v325 = vmul.f32 %v228, %v22
  %v326 = vmul.f32 %v231, %v23
  %v327 = vmul.f32 %v234, %v24
  %v328 = vmul.f32 %v237, %v25
  %v329 = vmul.f32 %v240, %v26
  %v330 = vmul.f32 %v243, %v27
  %v331 = vmul.f32 %v246, %v28
  %332 = vadd.xlane.f32.xlu0 %v320
  %v333 = vpop.xlane.xlu0 %332
  %334 = vadd.xlane.f32.xlu0 %v321
  %v335 = vpop.xlane.xlu0 %334
  %336 = vadd.xlane.f32.xlu0 %v322
  %v337 = vpop.xlane.xlu0 %336
  %338 = vadd.xlane.f32.xlu0 %v323
  %v339 = vpop.xlane.xlu0 %338
  %340 = vadd.xlane.f32.xlu0 %v324
  %v341 = vpop.xlane.xlu0 %340
  %342 = vadd.xlane.f32.xlu0 %v325
  %v343 = vpop.xlane.xlu0 %342
  %344 = vadd.xlane.f32.xlu0 %v326
  %v345 = vpop.xlane.xlu0 %344
  %346 = vadd.xlane.f32.xlu0 %v327
  %v347 = vpop.xlane.xlu0 %346
  %348 = vadd.xlane.f32.xlu0 %v328
  %v349 = vpop.xlane.xlu0 %348
  %350 = vadd.xlane.f32.xlu0 %v329
  %v351 = vpop.xlane.xlu0 %350
  %352 = vadd.xlane.f32.xlu0 %v330
  %v353 = vpop.xlane.xlu0 %352
  %354 = vadd.xlane.f32.xlu0 %v331
  %v355 = vpop.xlane.xlu0 %354
  %vm356 = vcmask 7168
  %v357 = vsel %vm356, %v261, %v297
  %v358 = vsel %vm356, %v263, %v299
  %v359 = vsel %vm356, %v265, %v301
  %v360 = vsel %vm356, %v267, %v303
  %v361 = vsel %vm356, %v269, %v305
  %v362 = vsel %vm356, %v271, %v307
  %v363 = vsel %vm356, %v273, %v309
  %v364 = vsel %vm356, %v275, %v311
  %v365 = vsel %vm356, %v277, %v313
  %v366 = vsel %vm356, %v279, %v315
  %v367 = vsel %vm356, %v281, %v317
  %v368 = vsel %vm356, %v283, %v319
  %vm369 = vcmask 15360
  %v370 = vsel %vm369, %v357, %v333
  %v371 = vsel %vm369, %v358, %v335
  %v372 = vsel %vm369, %v359, %v337
  %v373 = vsel %vm369, %v360, %v339
  %v374 = vsel %vm369, %v361, %v341
  %v375 = vsel %vm369, %v362, %v343
  %v376 = vsel %vm369, %v363, %v345
  %v377 = vsel %vm369, %v364, %v347
  %v378 = vsel %vm369, %v365, %v349
  %v379 = vsel %vm369, %v366, %v351
  %v380 = vsel %vm369, %v367, %v353
  %v381 = vsel %vm369, %v368, %v355
  %v382 = vld [vmem:[%s3] sm:$0x7]
  %vm383 = vcmask 23552
  %v385 = vsel %vm383, %v370, 0
  %v388 = vsel %vm383, %v371, 0
  %v391 = vsel %vm383, %v372, 0
  %v394 = vsel %vm383, %v373, 0
  %v397 = vsel %vm383, %v374, 0
  %v400 = vsel %vm383, %v375, 0
  %v403 = vsel %vm383, %v376, 0
  %v406 = vsel %vm383, %v377, 0
  %v409 = vsel %vm383, %v378, 0
  %v412 = vsel %vm383, %v379, 0
  %v415 = vsel %vm383, %v380, 0
  %v418 = vsel %vm383, %v381, 0
  %vm420 = vcmask 1042432
  %v422 = vsel %vm420, %v382, 0
  %424 = vmatpush.msra.mxu0 0.0
  %425 = vmatpush.msra.mxu0 0.0
  %426 = vmatpush.msra.mxu0 0.0
  %427 = vmatpush.msra.mxu0 0.0
  %428 = vmatpush.msra.mxu0 0.0
  %429 = vmatpush.msra.mxu0 0.0
  %430 = vmatpush.msra.mxu0 0.0
  %431 = vmatpush.msra.mxu0 0.0
  %432 = vmatpush.msra.mxu0 0.0
  %433 = vmatpush.msra.mxu0 0.0
  %434 = vmatpush.msra.mxu0 0.0
  %435 = vmatpush.msra.mxu0 0.0
  %436 = vmatpush.msra.mxu0 0.0
  %437 = vmatpush.msra.mxu0 0.0
  %438 = vmatpush.msra.mxu0 0.0
  %439 = vmatpush.msra.mxu0 %v422
  %440 = vmatmul.f32.gmra.mxu0 %v385
  %v441 = vpop.f32.mrf.mxu0
  %v442 = vadd.f32 0.0, %v441
  %443 = vmatmul.f32.gmra.mxu0 %v388
  %v444 = vpop.f32.mrf.mxu0
  %v445 = vadd.f32 0.0, %v444
  %446 = vmatmul.f32.gmra.mxu0 %v391
  %v447 = vpop.f32.mrf.mxu0
  %v448 = vadd.f32 0.0, %v447
  %449 = vmatmul.f32.gmra.mxu0 %v394
  %v450 = vpop.f32.mrf.mxu0
  %v451 = vadd.f32 0.0, %v450
  %452 = vmatmul.f32.gmra.mxu0 %v397
  %v453 = vpop.f32.mrf.mxu0
  %v454 = vadd.f32 0.0, %v453
  %455 = vmatmul.f32.gmra.mxu0 %v400
  %v456 = vpop.f32.mrf.mxu0
  %v457 = vadd.f32 0.0, %v456
  %458 = vmatmul.f32.gmra.mxu0 %v403
  %v459 = vpop.f32.mrf.mxu0
  %v460 = vadd.f32 0.0, %v459
  %461 = vmatmul.f32.gmra.mxu0 %v406
  %v462 = vpop.f32.mrf.mxu0
  %v463 = vadd.f32 0.0, %v462
  %464 = vmatmul.f32.gmra.mxu0 %v409
  %v465 = vpop.f32.mrf.mxu0
  %v466 = vadd.f32 0.0, %v465
  %467 = vmatmul.f32.gmra.mxu0 %v412
  %v468 = vpop.f32.mrf.mxu0
  %v469 = vadd.f32 0.0, %v468
  %470 = vmatmul.f32.gmra.mxu0 %v415
  %v471 = vpop.f32.mrf.mxu0
  %v472 = vadd.f32 0.0, %v471
  %473 = vmatmul.f32.gmra.mxu0 %v418
  %v474 = vpop.f32.mrf.mxu0
  %v475 = vadd.f32 0.0, %v474
  %476 = vdwg.mxu0
  %vm477 = vcmask 39936
  %478 = vst.msk [vmem:[%s4] sm:$0xff] %vm477, %v442
  %479 = vst.msk [vmem:[%s4 + $0x8] sm:$0xff] %vm477, %v445
  %480 = vst.msk [vmem:[%s4 + $0x10] sm:$0xff] %vm477, %v448
  %481 = vst.msk [vmem:[%s4 + $0x18] sm:$0xff] %vm477, %v451
  %482 = vst.msk [vmem:[%s4 + $0x20] sm:$0xff] %vm477, %v454
  %483 = vst.msk [vmem:[%s4 + $0x28] sm:$0xff] %vm477, %v457
  %484 = vst.msk [vmem:[%s4 + $0x30] sm:$0xff] %vm477, %v460
  %485 = vst.msk [vmem:[%s4 + $0x38] sm:$0xff] %vm477, %v463
  %486 = vst.msk [vmem:[%s4 + $0x40] sm:$0xff] %vm477, %v466
  %487 = vst.msk [vmem:[%s4 + $0x48] sm:$0xff] %vm477, %v469
  %488 = vst.msk [vmem:[%s4 + $0x50] sm:$0xff] %vm477, %v472
  %489 = vst.msk [vmem:[%s4 + $0x58] sm:$0xff] %vm477, %v475
  // Predicated region
  $region18: #{graph_matrix_completion_forward.9} parent=0 // pred_check
    _
  $region19: #{graph_matrix_completion_forward.9} parent=0 // pred_check_branch
    %491 = sbr.rel (0) target = $region21
  $region20: #{graph_matrix_completion_forward.9} parent=0 // pred_region
    _
  $region21: #{graph_matrix_completion_forward.9} parent=0 // pred_fallthru
    _
  // Predicated region
  $region22: #{graph_matrix_completion_forward.9} parent=0 // pred_check
    _
  $region23: #{graph_matrix_completion_forward.9} parent=0 // pred_check_branch
    %493 = sbr.rel (0) target = $region25
  $region24: #{graph_matrix_completion_forward.9} parent=0 // pred_region
    _
  $region25: #{graph_matrix_completion_forward.9} parent=0 // pred_fallthru
    _

</llo_original>
